<compile_context>
chip_gen: v5e
topology: v5e:2x2
jax: 0.10.0
libtpu: 0.0.40
codegen_flags: <defaults>
</compile_context>

<pallas_src>
import functools

import jax
import jax.numpy as jnp
import numpy as np
from jax.experimental import pallas as pl
from jax.experimental.pallas import tpu as pltpu


def _conv_stats_kernel(xlo_ref, xhi_ref, w_ref, y_ref, sum_ref, ssq_ref, xwin_ref,
                       *, Td, H, KD, KH, CinW, CoutW):
    """One (batch, depth-tile) step: 3x3x3 conv as 9 fat MXU matmuls + partial stats.

    xlo_ref : (1, Td,   Hp, Cin*W) bf16  body depth window
    xhi_ref : (1, halo, Hp, Cin*W) bf16  next-depth halo (only first KD-1 rows used)
    w_ref   : (KD, KH, Cin*W, Cout*W) bf16 block-Toeplitz weights (W padding folded in)
    y_ref   : (1, Td*H, Cout*W) bf16     lane-dense conv output
    sum_ref : (1, 1, 1, Cout*W) f32      per-(n,d) partial channel sums (folded layout)
    ssq_ref : (1, 1, 1, Cout*W) f32      per-(n,d) partial channel sums of squares
    xwin_ref: (Td+KD-1, Hp, Cin*W) bf16  contiguous depth-window scratch
    """
    # Assemble the contiguous (Td + KD - 1)-deep window once per step.
    xwin_ref[pl.ds(0, Td)] = xlo_ref[0]
    xwin_ref[pl.ds(Td, KD - 1)] = xhi_ref[0, pl.ds(0, KD - 1)]

    M = Td * H
    acc = jnp.zeros((M, CoutW), jnp.float32)
    for kd in range(KD):                          # 9 static taps, one MXU matmul each
        for kh in range(KH):
            lhs = xwin_ref[pl.ds(kd, Td), pl.ds(kh, H), :].reshape(M, CinW)
            acc = acc + jnp.dot(lhs, w_ref[kd, kh],
                                preferred_element_type=jnp.float32)

    y_ref[0] = acc.astype(y_ref.dtype)            # dense 128-lane store
    # TODO(synk): E[x^2]-E[x]^2 can cancel for large-|mean| activations / huge N*D*H*W;
    #             switch to a shifted / two-pass variance beyond toy scales.
    sum_ref[0, 0] = jnp.sum(acc, axis=0, keepdims=True)
    ssq_ref[0, 0] = jnp.sum(acc * acc, axis=0, keepdims=True)


def _bn_act_kernel(y_ref, scale_ref, shift_ref, o_ref, *, slope):
    """Folded BN affine + leaky_relu on the lane-dense (1, Td*H, Cout*W) layout."""
    y = y_ref[...].astype(jnp.float32)
    z = y * scale_ref[...].reshape(1, 1, -1) + shift_ref[...].reshape(1, 1, -1)
    o_ref[...] = jnp.where(z >= 0, z, slope * z)


def _toeplitz_weights(weight_oidhw, W, pad):
    """(Cout, Cin, KD, KH, KW) -> (KD, KH, Cin*W, Cout*W) block-Toeplitz bf16.

    T[kd, kh, ci*W + wi, co*W + wo] = weight[co, ci, kd, kh, wi - wo + pad]
    (zero when the tap falls outside the kernel => implicit zero padding along W).
    """
    Cout, Cin, KD, KH, KW = weight_oidhw.shape
    wi = jnp.arange(W)[:, None]
    wo = jnp.arange(W)[None, :]
    kw = wi - wo + pad                                        # (W, W)
    valid = (kw >= 0) & (kw < KW)
    kw = jnp.clip(kw, 0, KW - 1)
    wt = jnp.transpose(weight_oidhw, (2, 3, 1, 0, 4))         # (KD, KH, Cin, Cout, KW)
    t = wt[:, :, :, :, kw]                                    # (KD, KH, Cin, Cout, W, W)
    t = t * valid[None, None, None, None].astype(wt.dtype)
    t = jnp.transpose(t, (0, 1, 2, 4, 3, 5))                  # (KD, KH, Cin, Wi, Cout, Wo)
    return t.reshape(KD, KH, Cin * W, Cout * W).astype(jnp.bfloat16)


def _pick_depth_tile(D, depth_tile, KD):
    """Largest divisor of D <= depth_tile, preferring multiples of (KD-1) so the
    halo window can be a (KD-1)-row block."""
    if D < 2:
        # TODO(synk): D == 1 needs a third halo window; not supported here.
        raise NotImplementedError("depth must be >= 2")
    limit = min(depth_tile, D)
    divs = [t for t in range(2, limit + 1) if D % t == 0]
    pref = [t for t in divs if t % (KD - 1) == 0]
    if pref:
        return max(pref)
    if divs:
        return max(divs)
    # TODO(synk): D with no divisor <= depth_tile -> cdiv grid + masked tail stats.
    return D


def conv_bn_relu_3d(x_ncdhw, weight_oidhw, gamma, beta, *,
                    eps=1e-5, slope=0.01, depth_tile=16):
    N, Cin, D, H, W = x_ncdhw.shape
    Cout, Cin_w, KD, KH, KW = weight_oidhw.shape
    assert Cin_w == Cin and KD == KH == KW, "cubic kernel expected (module default k=3)"
    pad = (KD - 1) // 2
    assert pad == 1, "ConvBnReLU3D defaults: kernel_size=3, stride=1, pad=1"
    assert H % 8 == 0, "H must be a multiple of 8 (sublane tile)"

    Td = _pick_depth_tile(D, depth_tile, KD)
    Dg = D // Td
    halo = (KD - 1) if Td % (KD - 1) == 0 else Td   # 2-row halo when Td is even
    halo_step = Td // halo                          # halo block index = (d+1)*halo_step
    end_pad = halo - pad                            # 1 row in the common (even Td) case

    Hp = H + 2 * pad
    CinW, CoutW = Cin * W, Cout * W

    # One fused re-layout pass over x: NCDHW -> (N, pad+D+end_pad, Hp, Cin*W) bf16.
    # Width padding lives inside the block-Toeplitz weights, not in x.
    xt = jnp.transpose(x_ncdhw, (0, 2, 3, 1, 4)).reshape(N, D, H, CinW)
    xp = jnp.pad(xt, ((0, 0), (pad, end_pad), (pad, pad), (0, 0))).astype(jnp.bfloat16)

    tw = _toeplitz_weights(weight_oidhw.astype(jnp.float32), W, pad)

    conv_kernel = functools.partial(_conv_stats_kernel, Td=Td, H=H, KD=KD, KH=KH,
                                    CinW=CinW, CoutW=CoutW)
    y, ssum, ssq = pl.pallas_call(
        conv_kernel,
        out_shape=(
            jax.ShapeDtypeStruct((N, D * H, CoutW), jnp.bfloat16),
            jax.ShapeDtypeStruct((N, Dg, 1, CoutW), jnp.float32),
            jax.ShapeDtypeStruct((N, Dg, 1, CoutW), jnp.float32),
        ),
        grid_spec=pltpu.PrefetchScalarGridSpec(
            num_scalar_prefetch=0,
            grid=(N, Dg),
            in_specs=[
                pl.BlockSpec((1, Td, Hp, CinW), lambda n, d: (n, d, 0, 0)),
                pl.BlockSpec((1, halo, Hp, CinW),
                             lambda n, d: (n, (d + 1) * halo_step, 0, 0)),
                pl.BlockSpec((KD, KH, CinW, CoutW), lambda n, d: (0, 0, 0, 0)),
            ],
            out_specs=[
                pl.BlockSpec((1, Td * H, CoutW), lambda n, d: (n, d, 0)),
                pl.BlockSpec((1, 1, 1, CoutW), lambda n, d: (n, d, 0, 0)),
                pl.BlockSpec((1, 1, 1, CoutW), lambda n, d: (n, d, 0, 0)),
            ],
            scratch_shapes=[pltpu.VMEM((Td + KD - 1, Hp, CinW), jnp.bfloat16)],
        ),
        compiler_params=pltpu.CompilerParams(
            dimension_semantics=("parallel", "parallel"),
            vmem_limit_bytes=32 * 1024 * 1024),
    )(xp, xp, tw)

    # Fold training-mode batch norm (biased variance) into a per-channel affine on host.
    count = jnp.float32(N * D * H * W)
    sum_c = jnp.sum(ssum, axis=(0, 1, 2)).reshape(Cout, W).sum(axis=1)
    ssq_c = jnp.sum(ssq, axis=(0, 1, 2)).reshape(Cout, W).sum(axis=1)
    mean = sum_c / count
    var = jnp.maximum(ssq_c / count - mean * mean, 0.0)
    scale = gamma.astype(jnp.float32) / jnp.sqrt(var + eps)
    shift = beta.astype(jnp.float32) - mean * scale
    scale_f = jnp.repeat(scale, W).reshape(1, CoutW)     # folded (co*W + w) layout
    shift_f = jnp.repeat(shift, W).reshape(1, CoutW)

    bn_kernel = functools.partial(_bn_act_kernel, slope=slope)
    z = pl.pallas_call(
        bn_kernel,
        out_shape=jax.ShapeDtypeStruct((N, D * H, CoutW), jnp.float32),
        grid_spec=pltpu.PrefetchScalarGridSpec(
            num_scalar_prefetch=0,
            grid=(N, Dg),
            in_specs=[
                pl.BlockSpec((1, Td * H, CoutW), lambda n, d: (n, d, 0)),
                pl.BlockSpec((1, CoutW), lambda n, d: (0, 0)),
                pl.BlockSpec((1, CoutW), lambda n, d: (0, 0)),
            ],
            out_specs=pl.BlockSpec((1, Td * H, CoutW), lambda n, d: (n, d, 0)),
        ),
        compiler_params=pltpu.CompilerParams(
            dimension_semantics=("parallel", "parallel")),
    )(y, scale_f, shift_f)

    # Lane-dense kernel output -> NCDHW via a single XLA transpose (fused with the
    # surrounding graph).  Kept f32 to match the PyTorch module's output dtype.
    out = z.reshape(N, D, H, Cout, W)
    return jnp.transpose(out, (0, 3, 1, 2, 4))


if __name__ == "__main__":
    key = jax.random.PRNGKey(0)
    k1, k2, k3, k4 = jax.random.split(key, 4)

    # Small shapes consistent with Conv3d(in=4, out=8, k=3, stride=1, pad=1)
    N, Cin, Cout, D, H, W = 2, 4, 8, 8, 16, 16
    x = jax.random.normal(k1, (N, Cin, D, H, W), dtype=jnp.float32)
    weight = 0.1 * jax.random.normal(k2, (Cout, Cin, 3, 3, 3), dtype=jnp.float32)
    gamma = 1.0 + 0.1 * jax.random.normal(k3, (Cout,), dtype=jnp.float32)
    beta = 0.1 * jax.random.normal(k4, (Cout,), dtype=jnp.float32)

    out = jax.jit(conv_bn_relu_3d)(x, weight, gamma, beta)
    out = jax.block_until_ready(out)

    # Pure-JAX f32 reference (conv3d + training-mode BN + leaky_relu(0.01)).
    ref_conv = jax.lax.conv_general_dilated(
        x, weight, window_strides=(1, 1, 1), padding=[(1, 1)] * 3,
        dimension_numbers=("NCDHW", "OIDHW", "NCDHW"))
    mean_r = ref_conv.mean(axis=(0, 2, 3, 4))
    var_r = ref_conv.var(axis=(0, 2, 3, 4))
    zr = (ref_conv - mean_r[None, :, None, None, None]) / \
        jnp.sqrt(var_r + 1e-5)[None, :, None, None, None]
    zr = zr * gamma[None, :, None, None, None] + beta[None, :, None, None, None]
    ref = jnp.where(zr >= 0, zr, 0.01 * zr)

    # bf16 matmuls + bf16 intermediate => relaxed tolerance vs. the f32 reference.
    np.testing.assert_allclose(np.asarray(out), np.asarray(ref), rtol=2e-2, atol=2e-2)
    print("KERNEL_OK")
</pallas_src>

<mosaic_0001>
module attributes {stable_mosaic.version = 11 : i64} {
  func.func @_conv_stats_kernel(%arg0: i32, %arg1: i32, %arg2: memref<1x8x18x64xbf16, #tpu.memory_space<vmem>>, %arg3: memref<1x2x18x64xbf16, #tpu.memory_space<vmem>>, %arg4: memref<3x3x64x128xbf16, #tpu.memory_space<vmem>>, %arg5: memref<1x128x128xbf16, #tpu.memory_space<vmem>>, %arg6: memref<1x1x1x128xf32, #tpu.memory_space<vmem>>, %arg7: memref<1x1x1x128xf32, #tpu.memory_space<vmem>>, %arg8: memref<10x18x64xbf16, #tpu.memory_space<vmem>>) attributes {dimension_semantics = [#tpu.dimension_semantics<parallel>, #tpu.dimension_semantics<parallel>], iteration_bounds = array<i64: 2, 1>, scalar_prefetch = 0 : i64, scratch_operands = 1 : i64, tpu.core_type = #tpu.core_type<tc>, window_params = [{transform_indices = @transform_0, window_bounds = array<i64: 1, 8, 18, 64>}, {transform_indices = @transform_1, window_bounds = array<i64: 1, 2, 18, 64>}, {pipeline_mode = #tpu.pipeline_mode<synchronous>, transform_indices = @transform_2, window_bounds = array<i64: 3, 3, 64, 128>}, {transform_indices = @transform_3, window_bounds = array<i64: 1, 128, 128>}, {transform_indices = @transform_4, window_bounds = array<i64: 1, 1, 1, 128>}, {transform_indices = @transform_5, window_bounds = array<i64: 1, 1, 1, 128>}]} {
    %c0 = arith.constant 0 : index
    %c0_0 = arith.constant 0 : index
    %c0_1 = arith.constant 0 : index
    %c0_2 = arith.constant 0 : index
    %0 = vector.load %arg2[%c0, %c0_0, %c0_1, %c0_2] : memref<1x8x18x64xbf16, #tpu.memory_space<vmem>>, vector<1x8x18x64xbf16>
    %1 = vector.shape_cast %0 : vector<1x8x18x64xbf16> to vector<8x18x64xbf16>
    %c0_3 = arith.constant 0 : index
    %c0_4 = arith.constant 0 : index
    %c0_5 = arith.constant 0 : index
    %2 = vector.load %arg8[%c0_3, %c0_4, %c0_5] : memref<10x18x64xbf16, #tpu.memory_space<vmem>>, vector<8x18x64xbf16>
    tpu.vector_store %arg8[%c0_3, %c0_4, %c0_5], %1 {strides = array<i32>} : memref<10x18x64xbf16, #tpu.memory_space<vmem>>, vector<8x18x64xbf16>,
    %c0_6 = arith.constant 0 : index
    %c0_7 = arith.constant 0 : index
    %c0_8 = arith.constant 0 : index
    %c0_9 = arith.constant 0 : index
    %3 = vector.load %arg3[%c0_6, %c0_7, %c0_8, %c0_9] : memref<1x2x18x64xbf16, #tpu.memory_space<vmem>>, vector<1x2x18x64xbf16>
    %4 = vector.shape_cast %3 : vector<1x2x18x64xbf16> to vector<2x18x64xbf16>
    %c8 = arith.constant 8 : index
    %c0_10 = arith.constant 0 : index
    %c0_11 = arith.constant 0 : index
    %5 = vector.load %arg8[%c8, %c0_10, %c0_11] : memref<10x18x64xbf16, #tpu.memory_space<vmem>>, vector<2x18x64xbf16>
    tpu.vector_store %arg8[%c8, %c0_10, %c0_11], %4 {strides = array<i32>} : memref<10x18x64xbf16, #tpu.memory_space<vmem>>, vector<2x18x64xbf16>,
    %cst = arith.constant 0.000000e+00 : f32
    %6 = vector.broadcast %cst : f32 to vector<128x128xf32>
    %c0_12 = arith.constant 0 : index
    %c0_13 = arith.constant 0 : index
    %c0_14 = arith.constant 0 : index
    %7 = vector.load %arg8[%c0_12, %c0_13, %c0_14] : memref<10x18x64xbf16, #tpu.memory_space<vmem>>, vector<8x16x64xbf16>
    %8 = vector.shape_cast %7 : vector<8x16x64xbf16> to vector<128x64xbf16>
    %c0_15 = arith.constant 0 : index
    %c0_16 = arith.constant 0 : index
    %c0_17 = arith.constant 0 : index
    %c0_18 = arith.constant 0 : index
    %9 = vector.load %arg4[%c0_15, %c0_16, %c0_17, %c0_18] : memref<3x3x64x128xbf16, #tpu.memory_space<vmem>>, vector<1x1x64x128xbf16>
    %10 = vector.shape_cast %9 : vector<1x1x64x128xbf16> to vector<64x128xbf16>
    %cst_19 = arith.constant dense<0.000000e+00> : vector<128x128xf32>
    %11 = tpu.matmul %8, %10, %cst_19 {dimension_numbers = #tpu.dot_dimension_numbers<[1], [0], [0], [1], [0, 0, 1, 1], [], []>} : vector<128x64xbf16>, vector<64x128xbf16>, vector<128x128xf32> -> vector<128x128xf32>
    %12 = arith.addf %6, %11 : vector<128x128xf32>
    %c0_20 = arith.constant 0 : index
    %c1 = arith.constant 1 : index
    %c0_21 = arith.constant 0 : index
    %13 = vector.load %arg8[%c0_20, %c1, %c0_21] : memref<10x18x64xbf16, #tpu.memory_space<vmem>>, vector<8x16x64xbf16>
    %14 = vector.shape_cast %13 : vector<8x16x64xbf16> to vector<128x64xbf16>
    %c0_22 = arith.constant 0 : index
    %c1_23 = arith.constant 1 : index
    %c0_24 = arith.constant 0 : index
    %c0_25 = arith.constant 0 : index
    %15 = vector.load %arg4[%c0_22, %c1_23, %c0_24, %c0_25] : memref<3x3x64x128xbf16, #tpu.memory_space<vmem>>, vector<1x1x64x128xbf16>
    %16 = vector.shape_cast %15 : vector<1x1x64x128xbf16> to vector<64x128xbf16>
    %cst_26 = arith.constant dense<0.000000e+00> : vector<128x128xf32>
    %17 = tpu.matmul %14, %16, %cst_26 {dimension_numbers = #tpu.dot_dimension_numbers<[1], [0], [0], [1], [0, 0, 1, 1], [], []>} : vector<128x64xbf16>, vector<64x128xbf16>, vector<128x128xf32> -> vector<128x128xf32>
    %18 = arith.addf %12, %17 : vector<128x128xf32>
    %c0_27 = arith.constant 0 : index
    %c2 = arith.constant 2 : index
    %c0_28 = arith.constant 0 : index
    %19 = vector.load %arg8[%c0_27, %c2, %c0_28] : memref<10x18x64xbf16, #tpu.memory_space<vmem>>, vector<8x16x64xbf16>
    %20 = vector.shape_cast %19 : vector<8x16x64xbf16> to vector<128x64xbf16>
    %c0_29 = arith.constant 0 : index
    %c2_30 = arith.constant 2 : index
    %c0_31 = arith.constant 0 : index
    %c0_32 = arith.constant 0 : index
    %21 = vector.load %arg4[%c0_29, %c2_30, %c0_31, %c0_32] : memref<3x3x64x128xbf16, #tpu.memory_space<vmem>>, vector<1x1x64x128xbf16>
    %22 = vector.shape_cast %21 : vector<1x1x64x128xbf16> to vector<64x128xbf16>
    %cst_33 = arith.constant dense<0.000000e+00> : vector<128x128xf32>
    %23 = tpu.matmul %20, %22, %cst_33 {dimension_numbers = #tpu.dot_dimension_numbers<[1], [0], [0], [1], [0, 0, 1, 1], [], []>} : vector<128x64xbf16>, vector<64x128xbf16>, vector<128x128xf32> -> vector<128x128xf32>
    %24 = arith.addf %18, %23 : vector<128x128xf32>
    %c1_34 = arith.constant 1 : index
    %c0_35 = arith.constant 0 : index
    %c0_36 = arith.constant 0 : index
    %25 = vector.load %arg8[%c1_34, %c0_35, %c0_36] : memref<10x18x64xbf16, #tpu.memory_space<vmem>>, vector<8x16x64xbf16>
    %26 = vector.shape_cast %25 : vector<8x16x64xbf16> to vector<128x64xbf16>
    %c1_37 = arith.constant 1 : index
    %c0_38 = arith.constant 0 : index
    %c0_39 = arith.constant 0 : index
    %c0_40 = arith.constant 0 : index
    %27 = vector.load %arg4[%c1_37, %c0_38, %c0_39, %c0_40] : memref<3x3x64x128xbf16, #tpu.memory_space<vmem>>, vector<1x1x64x128xbf16>
    %28 = vector.shape_cast %27 : vector<1x1x64x128xbf16> to vector<64x128xbf16>
    %cst_41 = arith.constant dense<0.000000e+00> : vector<128x128xf32>
    %29 = tpu.matmul %26, %28, %cst_41 {dimension_numbers = #tpu.dot_dimension_numbers<[1], [0], [0], [1], [0, 0, 1, 1], [], []>} : vector<128x64xbf16>, vector<64x128xbf16>, vector<128x128xf32> -> vector<128x128xf32>
    %30 = arith.addf %24, %29 : vector<128x128xf32>
    %c1_42 = arith.constant 1 : index
    %c1_43 = arith.constant 1 : index
    %c0_44 = arith.constant 0 : index
    %31 = vector.load %arg8[%c1_42, %c1_43, %c0_44] : memref<10x18x64xbf16, #tpu.memory_space<vmem>>, vector<8x16x64xbf16>
    %32 = vector.shape_cast %31 : vector<8x16x64xbf16> to vector<128x64xbf16>
    %c1_45 = arith.constant 1 : index
    %c1_46 = arith.constant 1 : index
    %c0_47 = arith.constant 0 : index
    %c0_48 = arith.constant 0 : index
    %33 = vector.load %arg4[%c1_45, %c1_46, %c0_47, %c0_48] : memref<3x3x64x128xbf16, #tpu.memory_space<vmem>>, vector<1x1x64x128xbf16>
    %34 = vector.shape_cast %33 : vector<1x1x64x128xbf16> to vector<64x128xbf16>
    %cst_49 = arith.constant dense<0.000000e+00> : vector<128x128xf32>
    %35 = tpu.matmul %32, %34, %cst_49 {dimension_numbers = #tpu.dot_dimension_numbers<[1], [0], [0], [1], [0, 0, 1, 1], [], []>} : vector<128x64xbf16>, vector<64x128xbf16>, vector<128x128xf32> -> vector<128x128xf32>
    %36 = arith.addf %30, %35 : vector<128x128xf32>
    %c1_50 = arith.constant 1 : index
    %c2_51 = arith.constant 2 : index
    %c0_52 = arith.constant 0 : index
    %37 = vector.load %arg8[%c1_50, %c2_51, %c0_52] : memref<10x18x64xbf16, #tpu.memory_space<vmem>>, vector<8x16x64xbf16>
    %38 = vector.shape_cast %37 : vector<8x16x64xbf16> to vector<128x64xbf16>
    %c1_53 = arith.constant 1 : index
    %c2_54 = arith.constant 2 : index
    %c0_55 = arith.constant 0 : index
    %c0_56 = arith.constant 0 : index
    %39 = vector.load %arg4[%c1_53, %c2_54, %c0_55, %c0_56] : memref<3x3x64x128xbf16, #tpu.memory_space<vmem>>, vector<1x1x64x128xbf16>
    %40 = vector.shape_cast %39 : vector<1x1x64x128xbf16> to vector<64x128xbf16>
    %cst_57 = arith.constant dense<0.000000e+00> : vector<128x128xf32>
    %41 = tpu.matmul %38, %40, %cst_57 {dimension_numbers = #tpu.dot_dimension_numbers<[1], [0], [0], [1], [0, 0, 1, 1], [], []>} : vector<128x64xbf16>, vector<64x128xbf16>, vector<128x128xf32> -> vector<128x128xf32>
    %42 = arith.addf %36, %41 : vector<128x128xf32>
    %c2_58 = arith.constant 2 : index
    %c0_59 = arith.constant 0 : index
    %c0_60 = arith.constant 0 : index
    %43 = vector.load %arg8[%c2_58, %c0_59, %c0_60] : memref<10x18x64xbf16, #tpu.memory_space<vmem>>, vector<8x16x64xbf16>
    %44 = vector.shape_cast %43 : vector<8x16x64xbf16> to vector<128x64xbf16>
    %c2_61 = arith.constant 2 : index
    %c0_62 = arith.constant 0 : index
    %c0_63 = arith.constant 0 : index
    %c0_64 = arith.constant 0 : index
    %45 = vector.load %arg4[%c2_61, %c0_62, %c0_63, %c0_64] : memref<3x3x64x128xbf16, #tpu.memory_space<vmem>>, vector<1x1x64x128xbf16>
    %46 = vector.shape_cast %45 : vector<1x1x64x128xbf16> to vector<64x128xbf16>
    %cst_65 = arith.constant dense<0.000000e+00> : vector<128x128xf32>
    %47 = tpu.matmul %44, %46, %cst_65 {dimension_numbers = #tpu.dot_dimension_numbers<[1], [0], [0], [1], [0, 0, 1, 1], [], []>} : vector<128x64xbf16>, vector<64x128xbf16>, vector<128x128xf32> -> vector<128x128xf32>
    %48 = arith.addf %42, %47 : vector<128x128xf32>
    %c2_66 = arith.constant 2 : index
    %c1_67 = arith.constant 1 : index
    %c0_68 = arith.constant 0 : index
    %49 = vector.load %arg8[%c2_66, %c1_67, %c0_68] : memref<10x18x64xbf16, #tpu.memory_space<vmem>>, vector<8x16x64xbf16>
    %50 = vector.shape_cast %49 : vector<8x16x64xbf16> to vector<128x64xbf16>
    %c2_69 = arith.constant 2 : index
    %c1_70 = arith.constant 1 : index
    %c0_71 = arith.constant 0 : index
    %c0_72 = arith.constant 0 : index
    %51 = vector.load %arg4[%c2_69, %c1_70, %c0_71, %c0_72] : memref<3x3x64x128xbf16, #tpu.memory_space<vmem>>, vector<1x1x64x128xbf16>
    %52 = vector.shape_cast %51 : vector<1x1x64x128xbf16> to vector<64x128xbf16>
    %cst_73 = arith.constant dense<0.000000e+00> : vector<128x128xf32>
    %53 = tpu.matmul %50, %52, %cst_73 {dimension_numbers = #tpu.dot_dimension_numbers<[1], [0], [0], [1], [0, 0, 1, 1], [], []>} : vector<128x64xbf16>, vector<64x128xbf16>, vector<128x128xf32> -> vector<128x128xf32>
    %54 = arith.addf %48, %53 : vector<128x128xf32>
    %c2_74 = arith.constant 2 : index
    %c2_75 = arith.constant 2 : index
    %c0_76 = arith.constant 0 : index
    %55 = vector.load %arg8[%c2_74, %c2_75, %c0_76] : memref<10x18x64xbf16, #tpu.memory_space<vmem>>, vector<8x16x64xbf16>
    %56 = vector.shape_cast %55 : vector<8x16x64xbf16> to vector<128x64xbf16>
    %c2_77 = arith.constant 2 : index
    %c2_78 = arith.constant 2 : index
    %c0_79 = arith.constant 0 : index
    %c0_80 = arith.constant 0 : index
    %57 = vector.load %arg4[%c2_77, %c2_78, %c0_79, %c0_80] : memref<3x3x64x128xbf16, #tpu.memory_space<vmem>>, vector<1x1x64x128xbf16>
    %58 = vector.shape_cast %57 : vector<1x1x64x128xbf16> to vector<64x128xbf16>
    %cst_81 = arith.constant dense<0.000000e+00> : vector<128x128xf32>
    %59 = tpu.matmul %56, %58, %cst_81 {dimension_numbers = #tpu.dot_dimension_numbers<[1], [0], [0], [1], [0, 0, 1, 1], [], []>} : vector<128x64xbf16>, vector<64x128xbf16>, vector<128x128xf32> -> vector<128x128xf32>
    %60 = arith.addf %54, %59 : vector<128x128xf32>
    %61 = arith.truncf %60 : vector<128x128xf32> to vector<128x128xbf16>
    %c0_82 = arith.constant 0 : index
    %c0_83 = arith.constant 0 : index
    %c0_84 = arith.constant 0 : index
    %62 = vector.load %arg5[%c0_82, %c0_83, %c0_84] : memref<1x128x128xbf16, #tpu.memory_space<vmem>>, vector<1x128x128xbf16>
    %63 = vector.shape_cast %62 : vector<1x128x128xbf16> to vector<128x128xbf16>
    %64 = vector.shape_cast %61 : vector<128x128xbf16> to vector<1x128x128xbf16>
    tpu.vector_store %arg5[%c0_82, %c0_83, %c0_84], %64 {strides = array<i32>} : memref<1x128x128xbf16, #tpu.memory_space<vmem>>, vector<1x128x128xbf16>,
    %cst_85 = arith.constant dense<0.000000e+00> : vector<128xf32>
    %65 = vector.multi_reduction <add>, %60, %cst_85 [0] : vector<128x128xf32> to vector<128xf32>
    %66 = vector.shape_cast %65 : vector<128xf32> to vector<1x128xf32>
    %c0_86 = arith.constant 0 : index
    %c0_87 = arith.constant 0 : index
    %c0_88 = arith.constant 0 : index
    %c0_89 = arith.constant 0 : index
    %67 = vector.load %arg6[%c0_86, %c0_87, %c0_88, %c0_89] : memref<1x1x1x128xf32, #tpu.memory_space<vmem>>, vector<1x1x1x128xf32>
    %68 = vector.shape_cast %67 : vector<1x1x1x128xf32> to vector<1x128xf32>
    %69 = vector.shape_cast %66 : vector<1x128xf32> to vector<1x1x1x128xf32>
    tpu.vector_store %arg6[%c0_86, %c0_87, %c0_88, %c0_89], %69 {strides = array<i32>} : memref<1x1x1x128xf32, #tpu.memory_space<vmem>>, vector<1x1x1x128xf32>,
    %70 = arith.mulf %60, %60 : vector<128x128xf32>
    %cst_90 = arith.constant dense<0.000000e+00> : vector<128xf32>
    %71 = vector.multi_reduction <add>, %70, %cst_90 [0] : vector<128x128xf32> to vector<128xf32>
    %72 = vector.shape_cast %71 : vector<128xf32> to vector<1x128xf32>
    %c0_91 = arith.constant 0 : index
    %c0_92 = arith.constant 0 : index
    %c0_93 = arith.constant 0 : index
    %c0_94 = arith.constant 0 : index
    %73 = vector.load %arg7[%c0_91, %c0_92, %c0_93, %c0_94] : memref<1x1x1x128xf32, #tpu.memory_space<vmem>>, vector<1x1x1x128xf32>
    %74 = vector.shape_cast %73 : vector<1x1x1x128xf32> to vector<1x128xf32>
    %75 = vector.shape_cast %72 : vector<1x128xf32> to vector<1x1x1x128xf32>
    tpu.vector_store %arg7[%c0_91, %c0_92, %c0_93, %c0_94], %75 {strides = array<i32>} : memref<1x1x1x128xf32, #tpu.memory_space<vmem>>, vector<1x1x1x128xf32>,
    return
  }
  func.func @transform_0(%arg0: i32, %arg1: i32) -> (i32, i32, i32, i32) {
    %c0_i32 = arith.constant 0 : i32
    %c0_i32_0 = arith.constant 0 : i32
    %c0_i32_1 = arith.constant 0 : i32
    return %arg0, %arg1, %c0_i32, %c0_i32_0 : i32, i32, i32, i32
  }
  func.func @transform_1(%arg0: i32, %arg1: i32) -> (i32, i32, i32, i32) {
    %c1_i32 = arith.constant 1 : i32
    %0 = arith.addi %arg1, %c1_i32 : i32
    %c4_i32 = arith.constant 4 : i32
    %1 = arith.muli %0, %c4_i32 : i32
    %c0_i32 = arith.constant 0 : i32
    %c0_i32_0 = arith.constant 0 : i32
    %c0_i32_1 = arith.constant 0 : i32
    return %arg0, %1, %c0_i32, %c0_i32_0 : i32, i32, i32, i32
  }
  func.func @transform_2(%arg0: i32, %arg1: i32) -> (i32, i32, i32, i32) {
    %c0_i32 = arith.constant 0 : i32
    %c0_i32_0 = arith.constant 0 : i32
    %c0_i32_1 = arith.constant 0 : i32
    %c0_i32_2 = arith.constant 0 : i32
    %c0_i32_3 = arith.constant 0 : i32
    return %c0_i32, %c0_i32_0, %c0_i32_1, %c0_i32_2 : i32, i32, i32, i32
  }
  func.func @transform_3(%arg0: i32, %arg1: i32) -> (i32, i32, i32) {
    %c0_i32 = arith.constant 0 : i32
    %c0_i32_0 = arith.constant 0 : i32
    return %arg0, %arg1, %c0_i32 : i32, i32, i32
  }
  func.func @transform_4(%arg0: i32, %arg1: i32) -> (i32, i32, i32, i32) {
    %c0_i32 = arith.constant 0 : i32
    %c0_i32_0 = arith.constant 0 : i32
    %c0_i32_1 = arith.constant 0 : i32
    return %arg0, %arg1, %c0_i32, %c0_i32_0 : i32, i32, i32, i32
  }
  func.func @transform_5(%arg0: i32, %arg1: i32) -> (i32, i32, i32, i32) {
    %c0_i32 = arith.constant 0 : i32
    %c0_i32_0 = arith.constant 0 : i32
    %c0_i32_1 = arith.constant 0 : i32
    return %arg0, %arg1, %c0_i32, %c0_i32_0 : i32, i32, i32, i32
  }
}

module attributes {stable_mosaic.version = 11 : i64} {
  func.func @_bn_act_kernel(%arg0: i32, %arg1: i32, %arg2: memref<1x128x128xbf16, #tpu.memory_space<vmem>>, %arg3: memref<1x128xf32, #tpu.memory_space<vmem>>, %arg4: memref<1x128xf32, #tpu.memory_space<vmem>>, %arg5: memref<1x128x128xf32, #tpu.memory_space<vmem>>) attributes {dimension_semantics = [#tpu.dimension_semantics<parallel>, #tpu.dimension_semantics<parallel>], iteration_bounds = array<i64: 2, 1>, scalar_prefetch = 0 : i64, scratch_operands = 0 : i64, tpu.core_type = #tpu.core_type<tc>, window_params = [{transform_indices = @transform_0, window_bounds = array<i64: 1, 128, 128>}, {pipeline_mode = #tpu.pipeline_mode<synchronous>, transform_indices = @transform_1, window_bounds = array<i64: 1, 128>}, {pipeline_mode = #tpu.pipeline_mode<synchronous>, transform_indices = @transform_2, window_bounds = array<i64: 1, 128>}, {transform_indices = @transform_3, window_bounds = array<i64: 1, 128, 128>}]} {
    %c0 = arith.constant 0 : index
    %c0_0 = arith.constant 0 : index
    %c0_1 = arith.constant 0 : index
    %0 = vector.load %arg2[%c0, %c0_0, %c0_1] : memref<1x128x128xbf16, #tpu.memory_space<vmem>>, vector<1x128x128xbf16>
    %1 = arith.extf %0 : vector<1x128x128xbf16> to vector<1x128x128xf32>
    %c0_2 = arith.constant 0 : index
    %c0_3 = arith.constant 0 : index
    %2 = vector.load %arg3[%c0_2, %c0_3] : memref<1x128xf32, #tpu.memory_space<vmem>>, vector<1x128xf32>
    %3 = vector.shape_cast %2 : vector<1x128xf32> to vector<1x1x128xf32>
    %4 = vector.broadcast %3 : vector<1x1x128xf32> to vector<1x128x128xf32>
    %5 = arith.mulf %1, %4 : vector<1x128x128xf32>
    %c0_4 = arith.constant 0 : index
    %c0_5 = arith.constant 0 : index
    %6 = vector.load %arg4[%c0_4, %c0_5] : memref<1x128xf32, #tpu.memory_space<vmem>>, vector<1x128xf32>
    %7 = vector.shape_cast %6 : vector<1x128xf32> to vector<1x1x128xf32>
    %8 = vector.broadcast %7 : vector<1x1x128xf32> to vector<1x128x128xf32>
    %9 = arith.addf %5, %8 : vector<1x128x128xf32>
    %cst = arith.constant 0.000000e+00 : f32
    %10 = vector.broadcast %cst : f32 to vector<1x128x128xf32>
    %11 = arith.cmpf oge, %9, %10 : vector<1x128x128xf32>
    %cst_6 = arith.constant 0.00999999977 : f32
    %12 = vector.broadcast %cst_6 : f32 to vector<1x128x128xf32>
    %13 = arith.mulf %12, %9 : vector<1x128x128xf32>
    %14 = arith.select %11, %9, %13 : vector<1x128x128xi1>, vector<1x128x128xf32>
    %c0_7 = arith.constant 0 : index
    %c0_8 = arith.constant 0 : index
    %c0_9 = arith.constant 0 : index
    %15 = vector.load %arg5[%c0_7, %c0_8, %c0_9] : memref<1x128x128xf32, #tpu.memory_space<vmem>>, vector<1x128x128xf32>
    tpu.vector_store %arg5[%c0_7, %c0_8, %c0_9], %14 {strides = array<i32>} : memref<1x128x128xf32, #tpu.memory_space<vmem>>, vector<1x128x128xf32>,
    return
  }
  func.func @transform_0(%arg0: i32, %arg1: i32) -> (i32, i32, i32) {
    %c0_i32 = arith.constant 0 : i32
    %c0_i32_0 = arith.constant 0 : i32
    return %arg0, %arg1, %c0_i32 : i32, i32, i32
  }
  func.func @transform_1(%arg0: i32, %arg1: i32) -> (i32, i32) {
    %c0_i32 = arith.constant 0 : i32
    %c0_i32_0 = arith.constant 0 : i32
    %c0_i32_1 = arith.constant 0 : i32
    return %c0_i32, %c0_i32_0 : i32, i32
  }
  func.func @transform_2(%arg0: i32, %arg1: i32) -> (i32, i32) {
    %c0_i32 = arith.constant 0 : i32
    %c0_i32_0 = arith.constant 0 : i32
    %c0_i32_1 = arith.constant 0 : i32
    return %c0_i32, %c0_i32_0 : i32, i32
  }
  func.func @transform_3(%arg0: i32, %arg1: i32) -> (i32, i32, i32) {
    %c0_i32 = arith.constant 0 : i32
    %c0_i32_0 = arith.constant 0 : i32
    return %arg0, %arg1, %c0_i32 : i32, i32, i32
  }
}

</mosaic_0001>

<llo_original>
// kernel: conv_bn_relu_3d.3
$region0: #{conv_bn_relu_3d.3}
  #allocation0 [shape = 'u32[]', space=smem, size = 0x4, offset = 0x4, fixed_abs, tag = 'smem constant byte address 0x4 - core index']
  #allocation1 [shape = 'u32[72,128]{1,0:T(1,128)}', space=vmem, size = 0x9000, scoped, tag = 'internal scratch']
  %s0 = inlined_call_operand.vmem [shape: bf16[2,128,128], index: 0, kind: input, shape index: {}]
  %s1 = inlined_call_operand.vmem [shape: f32[1,128], index: 1, kind: input, shape index: {}]
  %s2 = inlined_call_operand.vmem [shape: f32[1,128], index: 2, kind: input, shape index: {}]
  %s3 = inlined_call_operand.vmem [shape: f32[2,128,128], index: 3, kind: output, shape index: {}]
  %s4 = sld [smem:[#allocation0]]
  $region45: #{conv_bn_relu_3d.3} parent=0
    _
  %s6 = ssub.s32 1, %s4
  %s7 = scalar_select 0, %s6, %s4
  loop: start=0, step=1, limit=4
  $region2: #{conv_bn_relu_3d.3} parent=0 // loop_pre_header
    _
  $region3: #{conv_bn_relu_3d.3} parent=0 // loop_header
    %s9 = sphi 0, %s13
    %p10 = scmp.ge.s32.totalorder %s9, 4
    %s16 = sphi 0, %s28
    %s17 = sphi 0, %s24
    %s18 = sphi 0, %s16
    %s19 = sphi 0, %s17
    %s20 = sphi 0, %s18
    %s21 = sphi 0, %s19
    %s33 = sphi 0, %s35
    %s36 = sphi 0, %s33
    %s37 = sphi 0, %s36
    %s53 = sphi 0, %s37
    %s57 = sphi 0, %s57
    %s59 = sphi 0, %s57
    %s60 = sphi 0, %s59
    %s74 = sphi 0, %s60
    %s78 = sphi 0, %s78
    %s80 = sphi 0, %s78
    %s81 = sphi 0, %s80
    %s95 = sphi 0, %s81
    %s103 = sphi 0, %s105
    %s106 = sphi 0, %s103
    %s107 = sphi 0, %s106
    %s123 = sphi 0, %s107
  $region4: #{conv_bn_relu_3d.3} parent=0 // loop_header_branch
    %12 = sbr.rel (%p10) target = $region8
  $region5: #{conv_bn_relu_3d.3} parent=0 // loop_body
    %s14 = ssub.s32 %s9, 1
    %s15 = ssub.s32 %s9, 2
    %s22 = sadd.s32 1, %s17
    %p23 = scmp.ge.s32.totalorder %s22, 1
    %s24 = scalar_select %p23, 0, %s22
    %s25 = sadd.s32 1, %s16
    %s26 = scalar_select %p23, %s25, %s16
    %p27 = scmp.ge.s32.totalorder %s26, 2
    %s28 = scalar_select %p27, 0, %s26
    %s29 = ssub.s32 %s16, %s28
    %s30 = ssub.s32 %s17, %s24
    %s31 = sor.u32 %s29, %s30
    %p32 = scmp.eq.s32.totalorder %s31, 0
    %s34 = sadd.s32 %s33, 1
    %s35 = scalar_select %p32, %s33, %s34
    %p38 = pneg %p32
    %p39 = scmp.eq.s32.totalorder %s9, 1
    %p40 = por %p38, %p39
    %p41 = scmp.ne.s32.totalorder %s33, %s36
    %p42 = scmp.eq.s32.totalorder %s9, 0
    %p43 = por %p41, %p42
    %p44 = scmp.ne.s32.totalorder %s33, %s36
    %p45 = scmp.eq.s32.totalorder %s14, 1
    %p46 = por %p44, %p45
    %p47 = scmp.ne.s32.totalorder %s36, %s37
    %p48 = scmp.eq.s32.totalorder %s14, 0
    %p49 = por %p47, %p48
    %p50 = scmp.ne.s32.totalorder %s36, %s37
    %p51 = scmp.eq.s32.totalorder %s15, 1
    %p52 = por %p50, %p51
    %p54 = scmp.ne.s32.totalorder %s37, %s53
    %p55 = scmp.eq.s32.totalorder %s15, 0
    %p56 = por %p54, %p55
    %s58 = sadd.s32 %s57, 1
    %p61 = scmp.eq.s32.totalorder %s9, 1
    %p62 = scmp.ne.s32.totalorder %s57, %s59
    %p63 = scmp.eq.s32.totalorder %s9, 0
    %p64 = por %p62, %p63
    %p65 = scmp.ne.s32.totalorder %s57, %s59
    %p66 = scmp.eq.s32.totalorder %s14, 1
    %p67 = por %p65, %p66
    %p68 = scmp.ne.s32.totalorder %s59, %s60
    %p69 = scmp.eq.s32.totalorder %s14, 0
    %p70 = por %p68, %p69
    %p71 = scmp.ne.s32.totalorder %s59, %s60
    %p72 = scmp.eq.s32.totalorder %s15, 1
    %p73 = por %p71, %p72
    %p75 = scmp.ne.s32.totalorder %s60, %s74
    %p76 = scmp.eq.s32.totalorder %s15, 0
    %p77 = por %p75, %p76
    %s79 = sadd.s32 %s78, 1
    %p82 = scmp.eq.s32.totalorder %s9, 1
    %p83 = scmp.ne.s32.totalorder %s78, %s80
    %p84 = scmp.eq.s32.totalorder %s9, 0
    %p85 = por %p83, %p84
    %p86 = scmp.ne.s32.totalorder %s78, %s80
    %p87 = scmp.eq.s32.totalorder %s14, 1
    %p88 = por %p86, %p87
    %p89 = scmp.ne.s32.totalorder %s80, %s81
    %p90 = scmp.eq.s32.totalorder %s14, 0
    %p91 = por %p89, %p90
    %p92 = scmp.ne.s32.totalorder %s80, %s81
    %p93 = scmp.eq.s32.totalorder %s15, 1
    %p94 = por %p92, %p93
    %p96 = scmp.ne.s32.totalorder %s81, %s95
    %p97 = scmp.eq.s32.totalorder %s15, 0
    %p98 = por %p96, %p97
    %s99 = ssub.s32 %s16, %s28
    %s100 = ssub.s32 %s17, %s24
    %s101 = sor.u32 %s99, %s100
    %p102 = scmp.eq.s32.totalorder %s101, 0
    %s104 = sadd.s32 %s103, 1
    %s105 = scalar_select %p102, %s103, %s104
    %p108 = pneg %p102
    %p109 = scmp.eq.s32.totalorder %s9, 1
    %p110 = por %p108, %p109
    %p111 = scmp.ne.s32.totalorder %s103, %s106
    %p112 = scmp.eq.s32.totalorder %s9, 0
    %p113 = por %p111, %p112
    %p114 = scmp.ne.s32.totalorder %s103, %s106
    %p115 = scmp.eq.s32.totalorder %s14, 1
    %p116 = por %p114, %p115
    %p117 = scmp.ne.s32.totalorder %s106, %s107
    %p118 = scmp.eq.s32.totalorder %s14, 0
    %p119 = por %p117, %p118
    %p120 = scmp.ne.s32.totalorder %s106, %s107
    %p121 = scmp.eq.s32.totalorder %s15, 1
    %p122 = por %p120, %p121
    %p124 = scmp.ne.s32.totalorder %s107, %s123
    %p125 = scmp.eq.s32.totalorder %s15, 0
    %p126 = por %p124, %p125
    %p127 = scmp.le.s32.totalorder 1, %s9
    %p128 = scmp.lt.s32.totalorder %s9, 3
    %p129 = pnand %p127, %p128
    %p130 = pneg %p129
    // Predicated region
    $region9: #{conv_bn_relu_3d.3} parent=5 // pred_check
      _
    $region10: #{conv_bn_relu_3d.3} parent=5 // pred_check_branch
      %132 = sbr.rel (%p129) target = $region12
    $region11: #{conv_bn_relu_3d.3} parent=5 // pred_region
      %s133 = ssub.s32 %s9, 1
      // Predicated region
      $region13: #{conv_bn_relu_3d.3} parent=11 // pred_check
        %p134 = pneg %p70
      $region14: #{conv_bn_relu_3d.3} parent=11 // pred_check_branch
        %136 = sbr.rel (%p134) target = $region16
      $region15: #{conv_bn_relu_3d.3} parent=11 // pred_region
        _
      $region16: #{conv_bn_relu_3d.3} parent=11 // pred_fallthru
        _
      // Predicated region
      $region17: #{conv_bn_relu_3d.3} parent=11 // pred_check
        %p137 = pneg %p91
      $region18: #{conv_bn_relu_3d.3} parent=11 // pred_check_branch
        %139 = sbr.rel (%p137) target = $region20
      $region19: #{conv_bn_relu_3d.3} parent=11 // pred_region
        _
      $region20: #{conv_bn_relu_3d.3} parent=11 // pred_fallthru
        _
    $region12: #{conv_bn_relu_3d.3} parent=5 // pred_fallthru
      _
    %p140 = scmp.lt.s32.totalorder %s9, 2
    // Predicated region
    $region21: #{conv_bn_relu_3d.3} parent=5 // pred_check
      %p141 = pneg %p140
    $region22: #{conv_bn_relu_3d.3} parent=5 // pred_check_branch
      %143 = sbr.rel (%p141) target = $region24
    $region23: #{conv_bn_relu_3d.3} parent=5 // pred_region
      // Predicated region
      $region25: #{conv_bn_relu_3d.3} parent=23 // pred_check
        %p144 = pneg %p43
      $region26: #{conv_bn_relu_3d.3} parent=23 // pred_check_branch
        %146 = sbr.rel (%p144) target = $region28
      $region27: #{conv_bn_relu_3d.3} parent=23 // pred_region
        %s147 = smul.u32 16, %s17
        %p148 = scmp.lt.s32.totalorder %s16, 1
        %s149 = scalar_select %p148, %s16, 1
        %p150 = scmp.lt.s32.totalorder %s147, 15
        %s151 = scalar_select %p150, %s147, 15
        %s152 = smul.addr %s149, 16
        %s153 = sadd.s32 %s151, %s152
        %s154 = smul.addr %s153, 4
        %s155 = scalar_lea.vmem %s0, %s154
        %s156 = smul.u32 16, %s17
      $region28: #{conv_bn_relu_3d.3} parent=23 // pred_fallthru
        _
    $region24: #{conv_bn_relu_3d.3} parent=5 // pred_fallthru
      _
    %p157 = scmp.le.s32.totalorder 1, %s9
    %p158 = scmp.lt.s32.totalorder %s9, 3
    %p159 = pnand %p157, %p158
    %p160 = pneg %p159
    // Predicated region
    $region29: #{conv_bn_relu_3d.3} parent=5 // pred_check
      _
    $region30: #{conv_bn_relu_3d.3} parent=5 // pred_check_branch
      %162 = sbr.rel (%p159) target = $region32
    $region31: #{conv_bn_relu_3d.3} parent=5 // pred_region
      %s163 = ssub.s32 %s9, 1
      %s164 = smul.u32 16, %s19
      %p165 = scmp.lt.s32.totalorder %s18, 1
      %s166 = scalar_select %p165, %s18, 1
      %p167 = scmp.lt.s32.totalorder %s164, 15
      %s168 = scalar_select %p167, %s164, 15
      %s169 = smul.addr %s166, 16
      %s170 = sadd.s32 %s168, %s169
      %s171 = smul.addr %s170, 4
      %s172 = scalar_lea.vmem %s0, %s171
      %p173 = pneg %p49
      %p174 = pneg %p46
      %p175 = pneg %p70
      %p176 = pneg %p67
      %p177 = pneg %p91
      %p178 = pneg %p88
      %p179 = pneg %p119
      %p180 = pneg %p116
      %s181 = smul.u32 16, %s19
      %p182 = scmp.lt.s32.totalorder %s18, 1
      %s183 = scalar_select %p182, %s18, 1
      %p184 = scmp.lt.s32.totalorder %s181, 15
      %s185 = scalar_select %p184, %s181, 15
      %s186 = smul.addr %s183, 16
      %s187 = sadd.s32 %s185, %s186
      %s188 = smul.addr %s187, 8
      %s189 = scalar_lea.vmem %s3, %s188
      %s190 = smul.u32 16, %s19
      %p191 = scmp.lt.s32.totalorder %s18, 1
      %s192 = scalar_select %p191, %s18, 1
      %p193 = scmp.lt.s32.totalorder %s190, 15
      %s194 = scalar_select %p193, %s190, 15
      %s195 = smul.addr %s192, 16
      %s196 = sadd.s32 %s194, %s195
      %s197 = smul.addr %s196, 4
      %s198 = scalar_lea.vmem %s0, %s197
      %s199 = smul.u32 16, %s19
      %s200 = smul.u32 16, %s19
      %p201 = scmp.lt.s32.totalorder %s18, 1
      %s202 = scalar_select %p201, %s18, 1
      %p203 = scmp.lt.s32.totalorder %s200, 15
      %s204 = scalar_select %p203, %s200, 15
      %s205 = smul.addr %s202, 16
      %s206 = sadd.s32 %s204, %s205
      %s207 = smul.addr %s206, 8
      %s208 = scalar_lea.vmem %s3, %s207
      %s209 = smul.u32 16, %s19
      %v210 = vld [vmem:[%s198] sm:$0xf]
      %v211 = vld [vmem:[%s198 + $0x4] sm:$0xf]
      %v212 = vld [vmem:[%s198 + $0x8] sm:$0xf]
      %v213 = vld [vmem:[%s198 + $0xc] sm:$0xf]
      %v214 = vld [vmem:[%s198 + $0x10] sm:$0xf]
      %v215 = vld [vmem:[%s198 + $0x14] sm:$0xf]
      %v216 = vld [vmem:[%s198 + $0x18] sm:$0xf]
      %v217 = vld [vmem:[%s198 + $0x1c] sm:$0xf]
      %v218 = vld [vmem:[%s198 + $0x20] sm:$0xf]
      %v219 = vld [vmem:[%s198 + $0x24] sm:$0xf]
      %v220 = vld [vmem:[%s198 + $0x28] sm:$0xf]
      %v221 = vld [vmem:[%s198 + $0x2c] sm:$0xf]
      %v222 = vld [vmem:[%s198 + $0x30] sm:$0xf]
      %v223 = vld [vmem:[%s198 + $0x34] sm:$0xf]
      %v224 = vld [vmem:[%s198 + $0x38] sm:$0xf]
      %v225 = vld [vmem:[%s198 + $0x3c] sm:$0xf]
      %v226 = vunpack.c.l.bf16 %v210
      %v227 = vunpack.c.l.bf16 %v211
      %v228 = vunpack.c.l.bf16 %v212
      %v229 = vunpack.c.l.bf16 %v213
      %v230 = vunpack.c.l.bf16 %v214
      %v231 = vunpack.c.l.bf16 %v215
      %v232 = vunpack.c.l.bf16 %v216
      %v233 = vunpack.c.l.bf16 %v217
      %v234 = vunpack.c.l.bf16 %v218
      %v235 = vunpack.c.l.bf16 %v219
      %v236 = vunpack.c.l.bf16 %v220
      %v237 = vunpack.c.l.bf16 %v221
      %v238 = vunpack.c.l.bf16 %v222
      %v239 = vunpack.c.l.bf16 %v223
      %v240 = vunpack.c.l.bf16 %v224
      %v241 = vunpack.c.l.bf16 %v225
      %v242 = vld [vmem:[%s1] sm:$0x1]
      %v244 = vperm.slane %v242, 0
      %v246 = vmul.f32 %v226, %v244
      %v247 = vmul.f32 %v227, %v244
      %v248 = vmul.f32 %v228, %v244
      %v249 = vmul.f32 %v229, %v244
      %v250 = vmul.f32 %v230, %v244
      %v251 = vmul.f32 %v231, %v244
      %v252 = vmul.f32 %v232, %v244
      %v253 = vmul.f32 %v233, %v244
      %v254 = vmul.f32 %v234, %v244
      %v255 = vmul.f32 %v235, %v244
      %v256 = vmul.f32 %v236, %v244
      %v257 = vmul.f32 %v237, %v244
      %v258 = vmul.f32 %v238, %v244
      %v259 = vmul.f32 %v239, %v244
      %v260 = vmul.f32 %v240, %v244
      %v261 = vmul.f32 %v241, %v244
      %v262 = vld [vmem:[%s2] sm:$0x1]
      %v264 = vperm.slane %v262, 0
      %v266 = vadd.f32 %v246, %v264
      %v267 = vadd.f32 %v247, %v264
      %v268 = vadd.f32 %v248, %v264
      %v269 = vadd.f32 %v249, %v264
      %v270 = vadd.f32 %v250, %v264
      %v271 = vadd.f32 %v251, %v264
      %v272 = vadd.f32 %v252, %v264
      %v273 = vadd.f32 %v253, %v264
      %v274 = vadd.f32 %v254, %v264
      %v275 = vadd.f32 %v255, %v264
      %v276 = vadd.f32 %v256, %v264
      %v277 = vadd.f32 %v257, %v264
      %v278 = vadd.f32 %v258, %v264
      %v279 = vadd.f32 %v259, %v264
      %v280 = vadd.f32 %v260, %v264
      %v281 = vadd.f32 %v261, %v264
      %vm282 = vcmp.ge.f32.partialorder %v266, 0.0
      %vm283 = vcmp.ge.f32.partialorder %v267, 0.0
      %vm284 = vcmp.ge.f32.partialorder %v268, 0.0
      %vm285 = vcmp.ge.f32.partialorder %v269, 0.0
      %vm286 = vcmp.ge.f32.partialorder %v270, 0.0
      %vm287 = vcmp.ge.f32.partialorder %v271, 0.0
      %vm288 = vcmp.ge.f32.partialorder %v272, 0.0
      %vm289 = vcmp.ge.f32.partialorder %v273, 0.0
      %vm290 = vcmp.ge.f32.partialorder %v274, 0.0
      %vm291 = vcmp.ge.f32.partialorder %v275, 0.0
      %vm292 = vcmp.ge.f32.partialorder %v276, 0.0
      %vm293 = vcmp.ge.f32.partialorder %v277, 0.0
      %vm294 = vcmp.ge.f32.partialorder %v278, 0.0
      %vm295 = vcmp.ge.f32.partialorder %v279, 0.0
      %vm296 = vcmp.ge.f32.partialorder %v280, 0.0
      %vm297 = vcmp.ge.f32.partialorder %v281, 0.0
      %v298 = vmul.f32 %v266, 0.01
      %v299 = vmul.f32 %v267, 0.01
      %v300 = vmul.f32 %v268, 0.01
      %v301 = vmul.f32 %v269, 0.01
      %v302 = vmul.f32 %v270, 0.01
      %v303 = vmul.f32 %v271, 0.01
      %v304 = vmul.f32 %v272, 0.01
      %v305 = vmul.f32 %v273, 0.01
      %v306 = vmul.f32 %v274, 0.01
      %v307 = vmul.f32 %v275, 0.01
      %v308 = vmul.f32 %v276, 0.01
      %v309 = vmul.f32 %v277, 0.01
      %v310 = vmul.f32 %v278, 0.01
      %v311 = vmul.f32 %v279, 0.01
      %v312 = vmul.f32 %v280, 0.01
      %v313 = vmul.f32 %v281, 0.01
      %v314 = vsel %vm282, %v266, %v298
      %v315 = vsel %vm283, %v267, %v299
      %v316 = vsel %vm284, %v268, %v300
      %v317 = vsel %vm285, %v269, %v301
      %v318 = vsel %vm286, %v270, %v302
      %v319 = vsel %vm287, %v271, %v303
      %v320 = vsel %vm288, %v272, %v304
      %v321 = vsel %vm289, %v273, %v305
      %v322 = vsel %vm290, %v274, %v306
      %v323 = vsel %vm291, %v275, %v307
      %v324 = vsel %vm292, %v276, %v308
      %v325 = vsel %vm293, %v277, %v309
      %v326 = vsel %vm294, %v278, %v310
      %v327 = vsel %vm295, %v279, %v311
      %v328 = vsel %vm296, %v280, %v312
      %v329 = vsel %vm297, %v281, %v313
      %330 = vst [vmem:[%s208] sm:$0xff] %v314
      %331 = vst [vmem:[%s208 + $0x8] sm:$0xff] %v315
      %332 = vst [vmem:[%s208 + $0x10] sm:$0xff] %v316
      %333 = vst [vmem:[%s208 + $0x18] sm:$0xff] %v317
      %334 = vst [vmem:[%s208 + $0x20] sm:$0xff] %v318
      %335 = vst [vmem:[%s208 + $0x28] sm:$0xff] %v319
      %336 = vst [vmem:[%s208 + $0x30] sm:$0xff] %v320
      %337 = vst [vmem:[%s208 + $0x38] sm:$0xff] %v321
      %338 = vst [vmem:[%s208 + $0x40] sm:$0xff] %v322
      %339 = vst [vmem:[%s208 + $0x48] sm:$0xff] %v323
      %340 = vst [vmem:[%s208 + $0x50] sm:$0xff] %v324
      %341 = vst [vmem:[%s208 + $0x58] sm:$0xff] %v325
      %342 = vst [vmem:[%s208 + $0x60] sm:$0xff] %v326
      %343 = vst [vmem:[%s208 + $0x68] sm:$0xff] %v327
      %344 = vst [vmem:[%s208 + $0x70] sm:$0xff] %v328
      %345 = vst [vmem:[%s208 + $0x78] sm:$0xff] %v329
      %s346 = smul.u32 16, %s19
      %p347 = scmp.lt.s32.totalorder %s18, 1
      %s348 = scalar_select %p347, %s18, 1
      %p349 = scmp.lt.s32.totalorder %s346, 15
      %s350 = scalar_select %p349, %s346, 15
      %s351 = smul.addr %s348, 16
      %s352 = sadd.s32 %s350, %s351
      %s353 = smul.addr %s352, 8
      %s354 = scalar_lea.vmem %s3, %s353
      // Predicated region
      $region33: #{conv_bn_relu_3d.3} parent=31 // pred_check
        %p355 = pneg %p116
      $region34: #{conv_bn_relu_3d.3} parent=31 // pred_check_branch
        %357 = sbr.rel (%p355) target = $region36
      $region35: #{conv_bn_relu_3d.3} parent=31 // pred_region
        %s358 = smul.u32 16, %s19
      $region36: #{conv_bn_relu_3d.3} parent=31 // pred_fallthru
        _
    $region32: #{conv_bn_relu_3d.3} parent=5 // pred_fallthru
      _
    %p359 = scmp.le.s32.totalorder 2, %s9
    // Predicated region
    $region37: #{conv_bn_relu_3d.3} parent=5 // pred_check
      %p360 = pneg %p359
    $region38: #{conv_bn_relu_3d.3} parent=5 // pred_check_branch
      %362 = sbr.rel (%p360) target = $region40
    $region39: #{conv_bn_relu_3d.3} parent=5 // pred_region
      %s363 = ssub.s32 %s9, 2
      // Predicated region
      $region41: #{conv_bn_relu_3d.3} parent=39 // pred_check
        %p364 = pneg %p122
      $region42: #{conv_bn_relu_3d.3} parent=39 // pred_check_branch
        %366 = sbr.rel (%p364) target = $region44
      $region43: #{conv_bn_relu_3d.3} parent=39 // pred_region
        %s367 = smul.u32 16, %s21
        %p368 = scmp.lt.s32.totalorder %s20, 1
        %s369 = scalar_select %p368, %s20, 1
        %p370 = scmp.lt.s32.totalorder %s367, 15
        %s371 = scalar_select %p370, %s367, 15
        %s372 = smul.addr %s369, 16
        %s373 = sadd.s32 %s371, %s372
        %s374 = smul.addr %s373, 8
        %s375 = scalar_lea.vmem %s3, %s374
      $region44: #{conv_bn_relu_3d.3} parent=39 // pred_fallthru
        _
    $region40: #{conv_bn_relu_3d.3} parent=5 // pred_fallthru
      _
  $region6: #{conv_bn_relu_3d.3} parent=0 // loop_footer
    %s13 = sadd.s32 1, %s9
  $region7: #{conv_bn_relu_3d.3} parent=0 // loop_footer_branch
    %8 = sbr.rel target = $region3
  $region8: #{conv_bn_relu_3d.3} parent=0 // loop_exit
    _

// kernel: conv_bn_relu_3d.2
$region0: #{conv_bn_relu_3d.2}
  #allocation0 [shape = 'u32[]', space=smem, size = 0x4, offset = 0x4, fixed_abs, tag = 'smem constant byte address 0x4 - core index']
  #allocation1 [shape = 'u32[72,128]{1,0:T(1,128)}', space=vmem, size = 0x9000, scoped, tag = 'internal scratch']
  #allocation2 [shape = 'bf16[10,18,64]{2,1,0:T(8,128)(2,1)}', space=vmem, size = 0xf000, scoped, tag = 'scratch operand']
  %s0 = inlined_call_operand.vmem [shape: bf16[2,10,18,64], index: 0, kind: input, shape index: {}, may-alias: {0,1}]
  %s1 = inlined_call_operand.vmem [shape: bf16[2,10,18,64], index: 1, kind: input, shape index: {}, may-alias: {0,1}]
  %s2 = inlined_call_operand.vmem [shape: bf16[3,3,64,128], index: 2, kind: input, shape index: {}]
  %s3 = inlined_call_operand.vmem [shape: bf16[2,128,128], index: 3, kind: output, shape index: {0}]
  %s4 = inlined_call_operand.vmem [shape: f32[2,1,1,128], index: 4, kind: output, shape index: {1}]
  %s5 = inlined_call_operand.vmem [shape: f32[2,1,1,128], index: 5, kind: output, shape index: {2}]
  %6 = xla_tuple %s3, %s4, %s5
  %s7 = sld [smem:[#allocation0]]
  $region61: #{conv_bn_relu_3d.2} parent=0
    _
  %s9 = ssub.s32 1, %s7
  %s10 = scalar_select 0, %s9, %s7
  loop: start=0, step=1, limit=4
  $region2: #{conv_bn_relu_3d.2} parent=0 // loop_pre_header
    _
  $region3: #{conv_bn_relu_3d.2} parent=0 // loop_header
    %s12 = sphi 0, %s16
    %p13 = scmp.ge.s32.totalorder %s12, 4
    %s19 = sphi 0, %s31
    %s20 = sphi 0, %s27
    %s21 = sphi 0, %s19
    %s22 = sphi 0, %s20
    %s23 = sphi 0, %s21
    %s24 = sphi 0, %s22
    %s36 = sphi 0, %s38
    %s39 = sphi 0, %s36
    %s40 = sphi 0, %s39
    %s56 = sphi 0, %s40
    %s68 = sphi 0, %s70
    %s71 = sphi 0, %s68
    %s72 = sphi 0, %s71
    %s88 = sphi 0, %s72
    %s92 = sphi 0, %s92
    %s94 = sphi 0, %s92
    %s95 = sphi 0, %s94
    %s109 = sphi 0, %s95
    %s117 = sphi 0, %s119
    %s120 = sphi 0, %s117
    %s121 = sphi 0, %s120
    %s137 = sphi 0, %s121
    %s145 = sphi 0, %s147
    %s148 = sphi 0, %s145
    %s149 = sphi 0, %s148
    %s165 = sphi 0, %s149
    %s173 = sphi 0, %s175
    %s176 = sphi 0, %s173
    %s177 = sphi 0, %s176
    %s193 = sphi 0, %s177
  $region4: #{conv_bn_relu_3d.2} parent=0 // loop_header_branch
    %15 = sbr.rel (%p13) target = $region8
  $region5: #{conv_bn_relu_3d.2} parent=0 // loop_body
    %s17 = ssub.s32 %s12, 1
    %s18 = ssub.s32 %s12, 2
    %s25 = sadd.s32 1, %s20
    %p26 = scmp.ge.s32.totalorder %s25, 1
    %s27 = scalar_select %p26, 0, %s25
    %s28 = sadd.s32 1, %s19
    %s29 = scalar_select %p26, %s28, %s19
    %p30 = scmp.ge.s32.totalorder %s29, 2
    %s31 = scalar_select %p30, 0, %s29
    %s32 = ssub.s32 %s19, %s31
    %s33 = ssub.s32 %s20, %s27
    %s34 = sor.u32 %s32, %s33
    %p35 = scmp.eq.s32.totalorder %s34, 0
    %s37 = sadd.s32 %s36, 1
    %s38 = scalar_select %p35, %s36, %s37
    %p41 = pneg %p35
    %p42 = scmp.eq.s32.totalorder %s12, 1
    %p43 = por %p41, %p42
    %p44 = scmp.ne.s32.totalorder %s36, %s39
    %p45 = scmp.eq.s32.totalorder %s12, 0
    %p46 = por %p44, %p45
    %p47 = scmp.ne.s32.totalorder %s36, %s39
    %p48 = scmp.eq.s32.totalorder %s17, 1
    %p49 = por %p47, %p48
    %p50 = scmp.ne.s32.totalorder %s39, %s40
    %p51 = scmp.eq.s32.totalorder %s17, 0
    %p52 = por %p50, %p51
    %p53 = scmp.ne.s32.totalorder %s39, %s40
    %p54 = scmp.eq.s32.totalorder %s18, 1
    %p55 = por %p53, %p54
    %p57 = scmp.ne.s32.totalorder %s40, %s56
    %p58 = scmp.eq.s32.totalorder %s18, 0
    %p59 = por %p57, %p58
    %s60 = sadd.s32 %s20, 1
    %s61 = smul.u32 %s60, 4
    %s62 = sadd.s32 %s27, 1
    %s63 = smul.u32 %s62, 4
    %s64 = ssub.s32 %s19, %s31
    %s65 = ssub.s32 %s61, %s63
    %s66 = sor.u32 %s64, %s65
    %p67 = scmp.eq.s32.totalorder %s66, 0
    %s69 = sadd.s32 %s68, 1
    %s70 = scalar_select %p67, %s68, %s69
    %p73 = pneg %p67
    %p74 = scmp.eq.s32.totalorder %s12, 1
    %p75 = por %p73, %p74
    %p76 = scmp.ne.s32.totalorder %s68, %s71
    %p77 = scmp.eq.s32.totalorder %s12, 0
    %p78 = por %p76, %p77
    %p79 = scmp.ne.s32.totalorder %s68, %s71
    %p80 = scmp.eq.s32.totalorder %s17, 1
    %p81 = por %p79, %p80
    %p82 = scmp.ne.s32.totalorder %s71, %s72
    %p83 = scmp.eq.s32.totalorder %s17, 0
    %p84 = por %p82, %p83
    %p85 = scmp.ne.s32.totalorder %s71, %s72
    %p86 = scmp.eq.s32.totalorder %s18, 1
    %p87 = por %p85, %p86
    %p89 = scmp.ne.s32.totalorder %s72, %s88
    %p90 = scmp.eq.s32.totalorder %s18, 0
    %p91 = por %p89, %p90
    %s93 = sadd.s32 %s92, 1
    %p96 = scmp.eq.s32.totalorder %s12, 1
    %p97 = scmp.ne.s32.totalorder %s92, %s94
    %p98 = scmp.eq.s32.totalorder %s12, 0
    %p99 = por %p97, %p98
    %p100 = scmp.ne.s32.totalorder %s92, %s94
    %p101 = scmp.eq.s32.totalorder %s17, 1
    %p102 = por %p100, %p101
    %p103 = scmp.ne.s32.totalorder %s94, %s95
    %p104 = scmp.eq.s32.totalorder %s17, 0
    %p105 = por %p103, %p104
    %p106 = scmp.ne.s32.totalorder %s94, %s95
    %p107 = scmp.eq.s32.totalorder %s18, 1
    %p108 = por %p106, %p107
    %p110 = scmp.ne.s32.totalorder %s95, %s109
    %p111 = scmp.eq.s32.totalorder %s18, 0
    %p112 = por %p110, %p111
    %s113 = ssub.s32 %s19, %s31
    %s114 = ssub.s32 %s20, %s27
    %s115 = sor.u32 %s113, %s114
    %p116 = scmp.eq.s32.totalorder %s115, 0
    %s118 = sadd.s32 %s117, 1
    %s119 = scalar_select %p116, %s117, %s118
    %p122 = pneg %p116
    %p123 = scmp.eq.s32.totalorder %s12, 1
    %p124 = por %p122, %p123
    %p125 = scmp.ne.s32.totalorder %s117, %s120
    %p126 = scmp.eq.s32.totalorder %s12, 0
    %p127 = por %p125, %p126
    %p128 = scmp.ne.s32.totalorder %s117, %s120
    %p129 = scmp.eq.s32.totalorder %s17, 1
    %p130 = por %p128, %p129
    %p131 = scmp.ne.s32.totalorder %s120, %s121
    %p132 = scmp.eq.s32.totalorder %s17, 0
    %p133 = por %p131, %p132
    %p134 = scmp.ne.s32.totalorder %s120, %s121
    %p135 = scmp.eq.s32.totalorder %s18, 1
    %p136 = por %p134, %p135
    %p138 = scmp.ne.s32.totalorder %s121, %s137
    %p139 = scmp.eq.s32.totalorder %s18, 0
    %p140 = por %p138, %p139
    %s141 = ssub.s32 %s19, %s31
    %s142 = ssub.s32 %s20, %s27
    %s143 = sor.u32 %s141, %s142
    %p144 = scmp.eq.s32.totalorder %s143, 0
    %s146 = sadd.s32 %s145, 1
    %s147 = scalar_select %p144, %s145, %s146
    %p150 = pneg %p144
    %p151 = scmp.eq.s32.totalorder %s12, 1
    %p152 = por %p150, %p151
    %p153 = scmp.ne.s32.totalorder %s145, %s148
    %p154 = scmp.eq.s32.totalorder %s12, 0
    %p155 = por %p153, %p154
    %p156 = scmp.ne.s32.totalorder %s145, %s148
    %p157 = scmp.eq.s32.totalorder %s17, 1
    %p158 = por %p156, %p157
    %p159 = scmp.ne.s32.totalorder %s148, %s149
    %p160 = scmp.eq.s32.totalorder %s17, 0
    %p161 = por %p159, %p160
    %p162 = scmp.ne.s32.totalorder %s148, %s149
    %p163 = scmp.eq.s32.totalorder %s18, 1
    %p164 = por %p162, %p163
    %p166 = scmp.ne.s32.totalorder %s149, %s165
    %p167 = scmp.eq.s32.totalorder %s18, 0
    %p168 = por %p166, %p167
    %s169 = ssub.s32 %s19, %s31
    %s170 = ssub.s32 %s20, %s27
    %s171 = sor.u32 %s169, %s170
    %p172 = scmp.eq.s32.totalorder %s171, 0
    %s174 = sadd.s32 %s173, 1
    %s175 = scalar_select %p172, %s173, %s174
    %p178 = pneg %p172
    %p179 = scmp.eq.s32.totalorder %s12, 1
    %p180 = por %p178, %p179
    %p181 = scmp.ne.s32.totalorder %s173, %s176
    %p182 = scmp.eq.s32.totalorder %s12, 0
    %p183 = por %p181, %p182
    %p184 = scmp.ne.s32.totalorder %s173, %s176
    %p185 = scmp.eq.s32.totalorder %s17, 1
    %p186 = por %p184, %p185
    %p187 = scmp.ne.s32.totalorder %s176, %s177
    %p188 = scmp.eq.s32.totalorder %s17, 0
    %p189 = por %p187, %p188
    %p190 = scmp.ne.s32.totalorder %s176, %s177
    %p191 = scmp.eq.s32.totalorder %s18, 1
    %p192 = por %p190, %p191
    %p194 = scmp.ne.s32.totalorder %s177, %s193
    %p195 = scmp.eq.s32.totalorder %s18, 0
    %p196 = por %p194, %p195
    %p197 = scmp.le.s32.totalorder 1, %s12
    %p198 = scmp.lt.s32.totalorder %s12, 3
    %p199 = pnand %p197, %p198
    %p200 = pneg %p199
    // Predicated region
    $region9: #{conv_bn_relu_3d.2} parent=5 // pred_check
      _
    $region10: #{conv_bn_relu_3d.2} parent=5 // pred_check_branch
      %202 = sbr.rel (%p199) target = $region12
    $region11: #{conv_bn_relu_3d.2} parent=5 // pred_region
      %s203 = ssub.s32 %s12, 1
      // Predicated region
      $region13: #{conv_bn_relu_3d.2} parent=11 // pred_check
        %p204 = pneg %p105
      $region14: #{conv_bn_relu_3d.2} parent=11 // pred_check_branch
        %206 = sbr.rel (%p204) target = $region16
      $region15: #{conv_bn_relu_3d.2} parent=11 // pred_region
        _
      $region16: #{conv_bn_relu_3d.2} parent=11 // pred_fallthru
        _
    $region12: #{conv_bn_relu_3d.2} parent=5 // pred_fallthru
      _
    %p207 = scmp.lt.s32.totalorder %s12, 2
    // Predicated region
    $region17: #{conv_bn_relu_3d.2} parent=5 // pred_check
      %p208 = pneg %p207
    $region18: #{conv_bn_relu_3d.2} parent=5 // pred_check_branch
      %210 = sbr.rel (%p208) target = $region20
    $region19: #{conv_bn_relu_3d.2} parent=5 // pred_region
      // Predicated region
      $region21: #{conv_bn_relu_3d.2} parent=19 // pred_check
        %p211 = pneg %p46
      $region22: #{conv_bn_relu_3d.2} parent=19 // pred_check_branch
        %213 = sbr.rel (%p211) target = $region24
      $region23: #{conv_bn_relu_3d.2} parent=19 // pred_region
        %s214 = smul.u32 8, %s20
        %s215 = ssub.s32 10, %s214
        %p216 = scmp.lt.s32.totalorder %s215, 8
        %s217 = scalar_select %p216, %s215, 8
        %s218 = smul.u32 4, %s217
        %s219 = smul.u32 %s218, 3
        %p220 = scmp.lt.s32.totalorder %s19, 1
        %s221 = scalar_select %p220, %s19, 1
        %p222 = scmp.lt.s32.totalorder %s214, 9
        %s223 = scalar_select %p222, %s214, 9
        %s224 = smul.addr %s223, 3
        %s225 = smul.addr %s221, 30
        %s226 = sadd.s32 %s224, %s225
        %s227 = smul.addr %s226, 4
        %s228 = scalar_lea.vmem %s0, %s227
        %s229 = smul.u32 8, %s20
        %s230 = ssub.s32 10, %s229
        %p231 = scmp.lt.s32.totalorder %s230, 8
        %s232 = scalar_select %p231, %s230, 8
        %s233 = smul.u32 4, %s232
        %s234 = smul.u32 %s233, 3
      $region24: #{conv_bn_relu_3d.2} parent=19 // pred_fallthru
        _
      // Predicated region
      $region25: #{conv_bn_relu_3d.2} parent=19 // pred_check
        %p235 = pneg %p78
      $region26: #{conv_bn_relu_3d.2} parent=19 // pred_check_branch
        %237 = sbr.rel (%p235) target = $region28
      $region27: #{conv_bn_relu_3d.2} parent=19 // pred_region
        %s238 = sadd.s32 %s20, 1
        %s239 = smul.u32 %s238, 4
        %s240 = smul.u32 2, %s239
        %p241 = scmp.lt.s32.totalorder %s19, 1
        %s242 = scalar_select %p241, %s19, 1
        %p243 = scmp.lt.s32.totalorder %s240, 9
        %s244 = scalar_select %p243, %s240, 9
        %s245 = smul.addr %s244, 3
        %s246 = smul.addr %s242, 30
        %s247 = sadd.s32 %s245, %s246
        %s248 = smul.addr %s247, 4
        %s249 = scalar_lea.vmem %s1, %s248
        %s250 = sadd.s32 %s20, 1
        %s251 = smul.u32 %s250, 4
        %s252 = smul.u32 2, %s251
      $region28: #{conv_bn_relu_3d.2} parent=19 // pred_fallthru
        _
    $region20: #{conv_bn_relu_3d.2} parent=5 // pred_fallthru
      _
    %p253 = scmp.le.s32.totalorder 1, %s12
    %p254 = scmp.lt.s32.totalorder %s12, 3
    %p255 = pnand %p253, %p254
    %p256 = pneg %p255
    // Predicated region
    $region29: #{conv_bn_relu_3d.2} parent=5 // pred_check
      _
    $region30: #{conv_bn_relu_3d.2} parent=5 // pred_check_branch
      %258 = sbr.rel (%p255) target = $region32
    $region31: #{conv_bn_relu_3d.2} parent=5 // pred_region
      %s259 = ssub.s32 %s12, 1
      %s260 = smul.u32 8, %s22
      %s261 = ssub.s32 10, %s260
      %p262 = scmp.lt.s32.totalorder %s261, 8
      %s263 = scalar_select %p262, %s261, 8
      %s264 = smul.u32 4, %s263
      %s265 = smul.u32 %s264, 3
      %p266 = scmp.lt.s32.totalorder %s21, 1
      %s267 = scalar_select %p266, %s21, 1
      %p268 = scmp.lt.s32.totalorder %s260, 9
      %s269 = scalar_select %p268, %s260, 9
      %s270 = smul.addr %s269, 3
      %s271 = smul.addr %s267, 30
      %s272 = sadd.s32 %s270, %s271
      %s273 = smul.addr %s272, 4
      %s274 = scalar_lea.vmem %s0, %s273
      %p275 = pneg %p52
      %p276 = pneg %p49
      %s277 = sadd.s32 %s22, 1
      %s278 = smul.u32 %s277, 4
      %s279 = smul.u32 2, %s278
      %p280 = scmp.lt.s32.totalorder %s21, 1
      %s281 = scalar_select %p280, %s21, 1
      %p282 = scmp.lt.s32.totalorder %s279, 9
      %s283 = scalar_select %p282, %s279, 9
      %s284 = smul.addr %s283, 3
      %s285 = smul.addr %s281, 30
      %s286 = sadd.s32 %s284, %s285
      %s287 = smul.addr %s286, 4
      %s288 = scalar_lea.vmem %s1, %s287
      %p289 = pneg %p84
      %p290 = pneg %p81
      %p291 = pneg %p105
      %p292 = pneg %p102
      %p293 = pneg %p133
      %p294 = pneg %p130
      %s295 = smul.u32 16, %s22
      %p296 = scmp.lt.s32.totalorder %s21, 1
      %s297 = scalar_select %p296, %s21, 1
      %p298 = scmp.lt.s32.totalorder %s295, 15
      %s299 = scalar_select %p298, %s295, 15
      %s300 = smul.addr %s297, 16
      %s301 = sadd.s32 %s299, %s300
      %s302 = smul.addr %s301, 4
      %s303 = scalar_lea.vmem %s3, %s302
      %p304 = pneg %p161
      %p305 = pneg %p158
      %p306 = scmp.lt.s32.totalorder %s21, 1
      %s307 = scalar_select %p306, %s21, 1
      %p308 = scmp.lt.s32.totalorder %s22, 0
      %s309 = scalar_select %p308, %s22, 0
      %s310 = sadd.s32 %s309, %s307
      %s311 = scalar_lea.vmem %s4, %s310
      %p312 = pneg %p189
      %p313 = pneg %p186
      %p314 = scmp.lt.s32.totalorder %s21, 1
      %s315 = scalar_select %p314, %s21, 1
      %p316 = scmp.lt.s32.totalorder %s22, 0
      %s317 = scalar_select %p316, %s22, 0
      %s318 = sadd.s32 %s317, %s315
      %s319 = scalar_lea.vmem %s5, %s318
      %s320 = smul.u32 8, %s22
      %s321 = ssub.s32 10, %s320
      %p322 = scmp.lt.s32.totalorder %s321, 8
      %s323 = scalar_select %p322, %s321, 8
      %s324 = smul.u32 4, %s323
      %s325 = smul.u32 %s324, 3
      %p326 = scmp.lt.s32.totalorder %s21, 1
      %s327 = scalar_select %p326, %s21, 1
      %p328 = scmp.lt.s32.totalorder %s320, 9
      %s329 = scalar_select %p328, %s320, 9
      %s330 = smul.addr %s329, 3
      %s331 = smul.addr %s327, 30
      %s332 = sadd.s32 %s330, %s331
      %s333 = smul.addr %s332, 4
      %s334 = scalar_lea.vmem %s0, %s333
      %s335 = smul.u32 8, %s22
      %s336 = ssub.s32 10, %s335
      %p337 = scmp.lt.s32.totalorder %s336, 8
      %s338 = scalar_select %p337, %s336, 8
      %s339 = smul.u32 4, %s338
      %s340 = smul.u32 %s339, 3
      %s341 = sadd.s32 %s22, 1
      %s342 = smul.u32 %s341, 4
      %s343 = smul.u32 2, %s342
      %p344 = scmp.lt.s32.totalorder %s21, 1
      %s345 = scalar_select %p344, %s21, 1
      %p346 = scmp.lt.s32.totalorder %s343, 9
      %s347 = scalar_select %p346, %s343, 9
      %s348 = smul.addr %s347, 3
      %s349 = smul.addr %s345, 30
      %s350 = sadd.s32 %s348, %s349
      %s351 = smul.addr %s350, 4
      %s352 = scalar_lea.vmem %s1, %s351
      %s353 = sadd.s32 %s22, 1
      %s354 = smul.u32 %s353, 4
      %s355 = smul.u32 2, %s354
      %s356 = smul.u32 16, %s22
      %p357 = scmp.lt.s32.totalorder %s21, 1
      %s358 = scalar_select %p357, %s21, 1
      %p359 = scmp.lt.s32.totalorder %s356, 15
      %s360 = scalar_select %p359, %s356, 15
      %s361 = smul.addr %s358, 16
      %s362 = sadd.s32 %s360, %s361
      %s363 = smul.addr %s362, 4
      %s364 = scalar_lea.vmem %s3, %s363
      %s365 = smul.u32 16, %s22
      %p366 = scmp.lt.s32.totalorder %s21, 1
      %s367 = scalar_select %p366, %s21, 1
      %p368 = scmp.lt.s32.totalorder %s22, 0
      %s369 = scalar_select %p368, %s22, 0
      %s370 = sadd.s32 %s369, %s367
      %s371 = scalar_lea.vmem %s4, %s370
      %p372 = scmp.lt.s32.totalorder %s21, 1
      %s373 = scalar_select %p372, %s21, 1
      %p374 = scmp.lt.s32.totalorder %s22, 0
      %s375 = scalar_select %p374, %s22, 0
      %s376 = sadd.s32 %s375, %s373
      %s377 = scalar_lea.vmem %s5, %s376
      %v379 = vld [vmem:[%s334] sm:$0xf]
      %v380 = vld [vmem:[%s334 + $0x4] sm:$0xf]
      %v381 = vld [vmem:[%s334 + $0x8] sm:$0x1]
      %v382 = vld [vmem:[%s334 + $0xc] sm:$0xf]
      %v383 = vld [vmem:[%s334 + $0x10] sm:$0xf]
      %v384 = vld [vmem:[%s334 + $0x14] sm:$0x1]
      %v385 = vld [vmem:[%s334 + $0x18] sm:$0xf]
      %v386 = vld [vmem:[%s334 + $0x1c] sm:$0xf]
      %v387 = vld [vmem:[%s334 + $0x20] sm:$0x1]
      %v388 = vld [vmem:[%s334 + $0x24] sm:$0xf]
      %v389 = vld [vmem:[%s334 + $0x28] sm:$0xf]
      %v390 = vld [vmem:[%s334 + $0x2c] sm:$0x1]
      %v391 = vld [vmem:[%s334 + $0x30] sm:$0xf]
      %v392 = vld [vmem:[%s334 + $0x34] sm:$0xf]
      %v393 = vld [vmem:[%s334 + $0x38] sm:$0x1]
      %v394 = vld [vmem:[%s334 + $0x3c] sm:$0xf]
      %v395 = vld [vmem:[%s334 + $0x40] sm:$0xf]
      %v396 = vld [vmem:[%s334 + $0x44] sm:$0x1]
      %v397 = vld [vmem:[%s334 + $0x48] sm:$0xf]
      %v398 = vld [vmem:[%s334 + $0x4c] sm:$0xf]
      %v399 = vld [vmem:[%s334 + $0x50] sm:$0x1]
      %v400 = vld [vmem:[%s334 + $0x54] sm:$0xf]
      %v401 = vld [vmem:[%s334 + $0x58] sm:$0xf]
      %v402 = vld [vmem:[%s334 + $0x5c] sm:$0x1]
      %vm403 = vcmask 519168
      %404 = vst.msk [vmem:[#allocation2] sm:$0xf] %vm403, %v379
      %405 = vst.msk [vmem:[#allocation2 + $0x4] sm:$0xf] %vm403, %v380
      %vm406 = vcmask 516096
      %407 = vst.msk [vmem:[#allocation2 + $0x8] sm:$0x1] %vm406, %v381
      %408 = vst.msk [vmem:[#allocation2 + $0xc] sm:$0xf] %vm403, %v382
      %409 = vst.msk [vmem:[#allocation2 + $0x10] sm:$0xf] %vm403, %v383
      %410 = vst.msk [vmem:[#allocation2 + $0x14] sm:$0x1] %vm406, %v384
      %411 = vst.msk [vmem:[#allocation2 + $0x18] sm:$0xf] %vm403, %v385
      %412 = vst.msk [vmem:[#allocation2 + $0x1c] sm:$0xf] %vm403, %v386
      %413 = vst.msk [vmem:[#allocation2 + $0x20] sm:$0x1] %vm406, %v387
      %414 = vst.msk [vmem:[#allocation2 + $0x24] sm:$0xf] %vm403, %v388
      %415 = vst.msk [vmem:[#allocation2 + $0x28] sm:$0xf] %vm403, %v389
      %416 = vst.msk [vmem:[#allocation2 + $0x2c] sm:$0x1] %vm406, %v390
      %417 = vst.msk [vmem:[#allocation2 + $0x30] sm:$0xf] %vm403, %v391
      %418 = vst.msk [vmem:[#allocation2 + $0x34] sm:$0xf] %vm403, %v392
      %419 = vst.msk [vmem:[#allocation2 + $0x38] sm:$0x1] %vm406, %v393
      %420 = vst.msk [vmem:[#allocation2 + $0x3c] sm:$0xf] %vm403, %v394
      %421 = vst.msk [vmem:[#allocation2 + $0x40] sm:$0xf] %vm403, %v395
      %422 = vst.msk [vmem:[#allocation2 + $0x44] sm:$0x1] %vm406, %v396
      %423 = vst.msk [vmem:[#allocation2 + $0x48] sm:$0xf] %vm403, %v397
      %424 = vst.msk [vmem:[#allocation2 + $0x4c] sm:$0xf] %vm403, %v398
      %425 = vst.msk [vmem:[#allocation2 + $0x50] sm:$0x1] %vm406, %v399
      %426 = vst.msk [vmem:[#allocation2 + $0x54] sm:$0xf] %vm403, %v400
      %427 = vst.msk [vmem:[#allocation2 + $0x58] sm:$0xf] %vm403, %v401
      %428 = vst.msk [vmem:[#allocation2 + $0x5c] sm:$0x1] %vm406, %v402
      %v429 = vld [vmem:[%s352] sm:$0xf]
      %v430 = vld [vmem:[%s352 + $0x4] sm:$0xf]
      %v431 = vld [vmem:[%s352 + $0x8] sm:$0x1]
      %v432 = vld [vmem:[%s352 + $0xc] sm:$0xf]
      %v433 = vld [vmem:[%s352 + $0x10] sm:$0xf]
      %v434 = vld [vmem:[%s352 + $0x14] sm:$0x1]
      %s435 = scalar_lea.vmem [#allocation2], 96
      %436 = vst.msk [vmem:[%s435] sm:$0xf] %vm403, %v429
      %437 = vst.msk [vmem:[%s435 + $0x4] sm:$0xf] %vm403, %v430
      %438 = vst.msk [vmem:[%s435 + $0x8] sm:$0x1] %vm406, %v431
      %439 = vst.msk [vmem:[%s435 + $0xc] sm:$0xf] %vm403, %v432
      %440 = vst.msk [vmem:[%s435 + $0x10] sm:$0xf] %vm403, %v433
      %441 = vst.msk [vmem:[%s435 + $0x14] sm:$0x1] %vm406, %v434
      %v442 = vld [vmem:[#allocation2] sm:$0xf]
      %v443 = vld [vmem:[#allocation2 + $0x4] sm:$0xf]
      %v444 = vld [vmem:[#allocation2 + $0xc] sm:$0xf]
      %v445 = vld [vmem:[#allocation2 + $0x10] sm:$0xf]
      %v446 = vld [vmem:[#allocation2 + $0x18] sm:$0xf]
      %v447 = vld [vmem:[#allocation2 + $0x1c] sm:$0xf]
      %v448 = vld [vmem:[#allocation2 + $0x24] sm:$0xf]
      %v449 = vld [vmem:[#allocation2 + $0x28] sm:$0xf]
      %v450 = vld [vmem:[#allocation2 + $0x30] sm:$0xf]
      %v451 = vld [vmem:[#allocation2 + $0x34] sm:$0xf]
      %v452 = vld [vmem:[#allocation2 + $0x3c] sm:$0xf]
      %v453 = vld [vmem:[#allocation2 + $0x40] sm:$0xf]
      %v454 = vld [vmem:[#allocation2 + $0x48] sm:$0xf]
      %v455 = vld [vmem:[#allocation2 + $0x4c] sm:$0xf]
      %v456 = vld [vmem:[#allocation2 + $0x54] sm:$0xf]
      %v457 = vld [vmem:[#allocation2 + $0x58] sm:$0xf]
      %v458 = vld [vmem:[%s2] sm:$0xf]
      %v459 = vld [vmem:[%s2 + $0x4] sm:$0xf]
      %v460 = vld [vmem:[%s2 + $0x8] sm:$0xf]
      %v461 = vld [vmem:[%s2 + $0xc] sm:$0xf]
      %v462 = vld [vmem:[%s2 + $0x10] sm:$0xf]
      %v463 = vld [vmem:[%s2 + $0x14] sm:$0xf]
      %v464 = vld [vmem:[%s2 + $0x18] sm:$0xf]
      %v465 = vld [vmem:[%s2 + $0x1c] sm:$0xf]
      %v466 = vld [vmem:[#allocation2 + $0x8] sm:$0x1]
      %v467 = vld [vmem:[#allocation2 + $0x14] sm:$0x1]
      %v468 = vld [vmem:[#allocation2 + $0x20] sm:$0x1]
      %v469 = vld [vmem:[#allocation2 + $0x2c] sm:$0x1]
      %v470 = vld [vmem:[#allocation2 + $0x38] sm:$0x1]
      %v471 = vld [vmem:[#allocation2 + $0x44] sm:$0x1]
      %v472 = vld [vmem:[#allocation2 + $0x50] sm:$0x1]
      %v473 = vld [vmem:[#allocation2 + $0x5c] sm:$0x1]
      %vm474 = vsmask.f32 3328
      %vm475 = vsmask.f32 7440
      %vm476 = vmor %vm474, %vm475
      %v478 = vshrl.u32 %v442, 16
      %v480 = vrot.slane %v478, 4
      %v481 = vshll.u32 %v442, 16
      %v483 = vrot.slane %v481, 5
      %v484 = vor.u32 %v480, %v483
      %v485 = vrot.slane %v484, 4
      %v487 = vshll.u32 %v443, 16
      %v489 = vrot.slane %v487, 5
      %v490 = vsel %vm476, %v485, %v489
      %v491 = vshrl.u32 %v443, 16
      %v493 = vrot.slane %v491, 4
      %v494 = vor.u32 %v493, %v489
      %v495 = vrot.slane %v494, 4
      %v497 = vshll.u32 %v466, 16
      %v499 = vrot.slane %v497, 5
      %v500 = vsel %vm476, %v495, %v499
      %v502 = vshrl.u32 %v444, 16
      %v504 = vrot.slane %v502, 4
      %v505 = vshll.u32 %v444, 16
      %v507 = vrot.slane %v505, 5
      %v508 = vor.u32 %v504, %v507
      %v509 = vrot.slane %v508, 4
      %v511 = vshll.u32 %v445, 16
      %v513 = vrot.slane %v511, 5
      %v514 = vsel %vm476, %v509, %v513
      %v515 = vshrl.u32 %v445, 16
      %v517 = vrot.slane %v515, 4
      %v518 = vor.u32 %v517, %v513
      %v519 = vrot.slane %v518, 4
      %v521 = vshll.u32 %v467, 16
      %v523 = vrot.slane %v521, 5
      %v524 = vsel %vm476, %v519, %v523
      %v526 = vshrl.u32 %v446, 16
      %v528 = vrot.slane %v526, 4
      %v529 = vshll.u32 %v446, 16
      %v531 = vrot.slane %v529, 5
      %v532 = vor.u32 %v528, %v531
      %v533 = vrot.slane %v532, 4
      %v535 = vshll.u32 %v447, 16
      %v537 = vrot.slane %v535, 5
      %v538 = vsel %vm476, %v533, %v537
      %v539 = vshrl.u32 %v447, 16
      %v541 = vrot.slane %v539, 4
      %v542 = vor.u32 %v541, %v537
      %v543 = vrot.slane %v542, 4
      %v545 = vshll.u32 %v468, 16
      %v547 = vrot.slane %v545, 5
      %v548 = vsel %vm476, %v543, %v547
      %v550 = vshrl.u32 %v448, 16
      %v552 = vrot.slane %v550, 4
      %v553 = vshll.u32 %v448, 16
      %v555 = vrot.slane %v553, 5
      %v556 = vor.u32 %v552, %v555
      %v557 = vrot.slane %v556, 4
      %v559 = vshll.u32 %v449, 16
      %v561 = vrot.slane %v559, 5
      %v562 = vsel %vm476, %v557, %v561
      %v563 = vshrl.u32 %v449, 16
      %v565 = vrot.slane %v563, 4
      %v566 = vor.u32 %v565, %v561
      %v567 = vrot.slane %v566, 4
      %v569 = vshll.u32 %v469, 16
      %v571 = vrot.slane %v569, 5
      %v572 = vsel %vm476, %v567, %v571
      %v574 = vshrl.u32 %v450, 16
      %v576 = vrot.slane %v574, 4
      %v577 = vshll.u32 %v450, 16
      %v579 = vrot.slane %v577, 5
      %v580 = vor.u32 %v576, %v579
      %v581 = vrot.slane %v580, 4
      %v583 = vshll.u32 %v451, 16
      %v585 = vrot.slane %v583, 5
      %v586 = vsel %vm476, %v581, %v585
      %v587 = vshrl.u32 %v451, 16
      %v589 = vrot.slane %v587, 4
      %v590 = vor.u32 %v589, %v585
      %v591 = vrot.slane %v590, 4
      %v593 = vshll.u32 %v470, 16
      %v595 = vrot.slane %v593, 5
      %v596 = vsel %vm476, %v591, %v595
      %v598 = vshrl.u32 %v452, 16
      %v600 = vrot.slane %v598, 4
      %v601 = vshll.u32 %v452, 16
      %v603 = vrot.slane %v601, 5
      %v604 = vor.u32 %v600, %v603
      %v605 = vrot.slane %v604, 4
      %v607 = vshll.u32 %v453, 16
      %v609 = vrot.slane %v607, 5
      %v610 = vsel %vm476, %v605, %v609
      %v611 = vshrl.u32 %v453, 16
      %v613 = vrot.slane %v611, 4
      %v614 = vor.u32 %v613, %v609
      %v615 = vrot.slane %v614, 4
      %v617 = vshll.u32 %v471, 16
      %v619 = vrot.slane %v617, 5
      %v620 = vsel %vm476, %v615, %v619
      %v622 = vshrl.u32 %v454, 16
      %v624 = vrot.slane %v622, 4
      %v625 = vshll.u32 %v454, 16
      %v627 = vrot.slane %v625, 5
      %v628 = vor.u32 %v624, %v627
      %v629 = vrot.slane %v628, 4
      %v631 = vshll.u32 %v455, 16
      %v633 = vrot.slane %v631, 5
      %v634 = vsel %vm476, %v629, %v633
      %v635 = vshrl.u32 %v455, 16
      %v637 = vrot.slane %v635, 4
      %v638 = vor.u32 %v637, %v633
      %v639 = vrot.slane %v638, 4
      %v641 = vshll.u32 %v472, 16
      %v643 = vrot.slane %v641, 5
      %v644 = vsel %vm476, %v639, %v643
      %v646 = vshrl.u32 %v456, 16
      %v648 = vrot.slane %v646, 4
      %v649 = vshll.u32 %v456, 16
      %v651 = vrot.slane %v649, 5
      %v652 = vor.u32 %v648, %v651
      %v653 = vrot.slane %v652, 4
      %v655 = vshll.u32 %v457, 16
      %v657 = vrot.slane %v655, 5
      %v658 = vsel %vm476, %v653, %v657
      %v659 = vshrl.u32 %v457, 16
      %v661 = vrot.slane %v659, 4
      %v662 = vor.u32 %v661, %v657
      %v663 = vrot.slane %v662, 4
      %v665 = vshll.u32 %v473, 16
      %v667 = vrot.slane %v665, 5
      %v668 = vsel %vm476, %v663, %v667
      %s669 = scalar_lea.vmem %s2, 32
      %v670 = vld [vmem:[%s669] sm:$0xf]
      %v671 = vld [vmem:[%s669 + $0x4] sm:$0xf]
      %v672 = vld [vmem:[%s669 + $0x8] sm:$0xf]
      %v673 = vld [vmem:[%s669 + $0xc] sm:$0xf]
      %v674 = vld [vmem:[%s669 + $0x10] sm:$0xf]
      %v675 = vld [vmem:[%s669 + $0x14] sm:$0xf]
      %v676 = vld [vmem:[%s669 + $0x18] sm:$0xf]
      %v677 = vld [vmem:[%s669 + $0x1c] sm:$0xf]
      %v678 = vunpack.c.l.b16 %v490
      %v679 = vunpack.c.l.b16 %v500
      %v680 = vunpack.c.l.b16 %v514
      %v681 = vunpack.c.l.b16 %v524
      %v682 = vunpack.c.l.b16 %v538
      %v683 = vunpack.c.l.b16 %v548
      %v684 = vunpack.c.l.b16 %v562
      %v685 = vunpack.c.l.b16 %v572
      %v686 = vunpack.c.l.b16 %v586
      %v687 = vunpack.c.l.b16 %v596
      %v688 = vunpack.c.l.b16 %v610
      %v689 = vunpack.c.l.b16 %v620
      %v690 = vunpack.c.l.b16 %v634
      %v691 = vunpack.c.l.b16 %v644
      %v692 = vunpack.c.l.b16 %v658
      %v693 = vunpack.c.l.b16 %v668
      %v694 = vpack.c.b16 %v679, %v678
      %v695 = vpack.c.b16 %v681, %v680
      %v696 = vpack.c.b16 %v683, %v682
      %v697 = vpack.c.b16 %v685, %v684
      %v698 = vpack.c.b16 %v687, %v686
      %v699 = vpack.c.b16 %v689, %v688
      %v700 = vpack.c.b16 %v691, %v690
      %v701 = vpack.c.b16 %v693, %v692
      %v710 = vunpack.c.l.b16 %v670
      %v711 = vunpack.c.l.b16 %v671
      %v712 = vunpack.c.l.b16 %v672
      %v713 = vunpack.c.l.b16 %v673
      %v714 = vunpack.c.l.b16 %v674
      %v715 = vunpack.c.l.b16 %v675
      %v716 = vunpack.c.l.b16 %v676
      %v717 = vunpack.c.l.b16 %v677
      %v718 = vpack.c.b16 %v711, %v710
      %v719 = vpack.c.b16 %v713, %v712
      %v720 = vpack.c.b16 %v715, %v714
      %v721 = vpack.c.b16 %v717, %v716
      %vm726 = vcmask 523264
      %v728 = vsel %vm726, %v694, 0
      %v731 = vsel %vm726, %v695, 0
      %v734 = vsel %vm726, %v696, 0
      %v737 = vsel %vm726, %v697, 0
      %v740 = vsel %vm726, %v698, 0
      %v743 = vsel %vm726, %v699, 0
      %v746 = vsel %vm726, %v700, 0
      %v749 = vsel %vm726, %v701, 0
      %751 = vmatpush.bf16.msra.mxu0 0
      %752 = vmatpush.bf16.msra.mxu0 0
      %753 = vmatpush.bf16.msra.mxu0 0
      %754 = vmatpush.bf16.msra.mxu0 0
      %755 = vmatpush.bf16.msra.mxu0 %v721
      %756 = vmatpush.bf16.msra.mxu0 %v720
      %757 = vmatpush.bf16.msra.mxu0 %v719
      %758 = vmatpush.bf16.msra.mxu0 %v718
      %759 = vmatmul.bf16.gmra.mxu0 %v728
      %v760 = vpop.f32.mrf.mxu0
      %v761 = vadd.f32 0.0, %v760
      %v762 = vpop.f32.mrf.mxu0
      %v763 = vadd.f32 0.0, %v762
      %764 = vmatmul.bf16.gmra.mxu0 %v731
      %v765 = vpop.f32.mrf.mxu0
      %v766 = vadd.f32 0.0, %v765
      %v767 = vpop.f32.mrf.mxu0
      %v768 = vadd.f32 0.0, %v767
      %769 = vmatmul.bf16.gmra.mxu0 %v734
      %v770 = vpop.f32.mrf.mxu0
      %v771 = vadd.f32 0.0, %v770
      %v772 = vpop.f32.mrf.mxu0
      %v773 = vadd.f32 0.0, %v772
      %774 = vmatmul.bf16.gmra.mxu0 %v737
      %v775 = vpop.f32.mrf.mxu0
      %v776 = vadd.f32 0.0, %v775
      %v777 = vpop.f32.mrf.mxu0
      %v778 = vadd.f32 0.0, %v777
      %779 = vmatmul.bf16.gmra.mxu0 %v740
      %v780 = vpop.f32.mrf.mxu0
      %v781 = vadd.f32 0.0, %v780
      %v782 = vpop.f32.mrf.mxu0
      %v783 = vadd.f32 0.0, %v782
      %784 = vmatmul.bf16.gmra.mxu0 %v743
      %v785 = vpop.f32.mrf.mxu0
      %v786 = vadd.f32 0.0, %v785
      %v787 = vpop.f32.mrf.mxu0
      %v788 = vadd.f32 0.0, %v787
      %789 = vmatmul.bf16.gmra.mxu0 %v746
      %v790 = vpop.f32.mrf.mxu0
      %v791 = vadd.f32 0.0, %v790
      %v792 = vpop.f32.mrf.mxu0
      %v793 = vadd.f32 0.0, %v792
      %794 = vmatmul.bf16.gmra.mxu0 %v749
      %v795 = vpop.f32.mrf.mxu0
      %v796 = vadd.f32 0.0, %v795
      %v797 = vpop.f32.mrf.mxu0
      %v798 = vadd.f32 0.0, %v797
      %799 = vdwg.mxu0
      %v816 = vunpack.c.l.b16 %v442
      %v817 = vunpack.c.l.b16 %v443
      %v818 = vunpack.c.l.b16 %v444
      %v819 = vunpack.c.l.b16 %v445
      %v820 = vunpack.c.l.b16 %v446
      %v821 = vunpack.c.l.b16 %v447
      %v822 = vunpack.c.l.b16 %v448
      %v823 = vunpack.c.l.b16 %v449
      %v824 = vunpack.c.l.b16 %v450
      %v825 = vunpack.c.l.b16 %v451
      %v826 = vunpack.c.l.b16 %v452
      %v827 = vunpack.c.l.b16 %v453
      %v828 = vunpack.c.l.b16 %v454
      %v829 = vunpack.c.l.b16 %v455
      %v830 = vunpack.c.l.b16 %v456
      %v831 = vunpack.c.l.b16 %v457
      %v832 = vpack.c.b16 %v817, %v816
      %v833 = vpack.c.b16 %v819, %v818
      %v834 = vpack.c.b16 %v821, %v820
      %v835 = vpack.c.b16 %v823, %v822
      %v836 = vpack.c.b16 %v825, %v824
      %v837 = vpack.c.b16 %v827, %v826
      %v838 = vpack.c.b16 %v829, %v828
      %v839 = vpack.c.b16 %v831, %v830
      %v848 = vunpack.c.l.b16 %v458
      %v849 = vunpack.c.l.b16 %v459
      %v850 = vunpack.c.l.b16 %v460
      %v851 = vunpack.c.l.b16 %v461
      %v852 = vunpack.c.l.b16 %v462
      %v853 = vunpack.c.l.b16 %v463
      %v854 = vunpack.c.l.b16 %v464
      %v855 = vunpack.c.l.b16 %v465
      %v856 = vpack.c.b16 %v849, %v848
      %v857 = vpack.c.b16 %v851, %v850
      %v858 = vpack.c.b16 %v853, %v852
      %v859 = vpack.c.b16 %v855, %v854
      %v865 = vsel %vm726, %v832, 0
      %v868 = vsel %vm726, %v833, 0
      %v871 = vsel %vm726, %v834, 0
      %v874 = vsel %vm726, %v835, 0
      %v877 = vsel %vm726, %v836, 0
      %v880 = vsel %vm726, %v837, 0
      %v883 = vsel %vm726, %v838, 0
      %v886 = vsel %vm726, %v839, 0
      %888 = vmatpush.bf16.msra.mxu0 0
      %889 = vmatpush.bf16.msra.mxu0 0
      %890 = vmatpush.bf16.msra.mxu0 0
      %891 = vmatpush.bf16.msra.mxu0 0
      %892 = vmatpush.bf16.msra.mxu0 %v859
      %893 = vmatpush.bf16.msra.mxu0 %v858
      %894 = vmatpush.bf16.msra.mxu0 %v857
      %895 = vmatpush.bf16.msra.mxu0 %v856
      %896 = vmatmul.bf16.gmra.mxu0 %v865
      %v897 = vpop.f32.mrf.mxu0
      %v898 = vadd.f32 %v761, %v897
      %v899 = vpop.f32.mrf.mxu0
      %v900 = vadd.f32 %v763, %v899
      %901 = vmatmul.bf16.gmra.mxu0 %v868
      %v902 = vpop.f32.mrf.mxu0
      %v903 = vadd.f32 %v766, %v902
      %v904 = vpop.f32.mrf.mxu0
      %v905 = vadd.f32 %v768, %v904
      %906 = vmatmul.bf16.gmra.mxu0 %v871
      %v907 = vpop.f32.mrf.mxu0
      %v908 = vadd.f32 %v771, %v907
      %v909 = vpop.f32.mrf.mxu0
      %v910 = vadd.f32 %v773, %v909
      %911 = vmatmul.bf16.gmra.mxu0 %v874
      %v912 = vpop.f32.mrf.mxu0
      %v913 = vadd.f32 %v776, %v912
      %v914 = vpop.f32.mrf.mxu0
      %v915 = vadd.f32 %v778, %v914
      %916 = vmatmul.bf16.gmra.mxu0 %v877
      %v917 = vpop.f32.mrf.mxu0
      %v918 = vadd.f32 %v781, %v917
      %v919 = vpop.f32.mrf.mxu0
      %v920 = vadd.f32 %v783, %v919
      %921 = vmatmul.bf16.gmra.mxu0 %v880
      %v922 = vpop.f32.mrf.mxu0
      %v923 = vadd.f32 %v786, %v922
      %v924 = vpop.f32.mrf.mxu0
      %v925 = vadd.f32 %v788, %v924
      %926 = vmatmul.bf16.gmra.mxu0 %v883
      %v927 = vpop.f32.mrf.mxu0
      %v928 = vadd.f32 %v791, %v927
      %v929 = vpop.f32.mrf.mxu0
      %v930 = vadd.f32 %v793, %v929
      %931 = vmatmul.bf16.gmra.mxu0 %v886
      %v932 = vpop.f32.mrf.mxu0
      %v933 = vadd.f32 %v796, %v932
      %v934 = vpop.f32.mrf.mxu0
      %v935 = vadd.f32 %v798, %v934
      %936 = vdwg.mxu0
      %v937 = vld [vmem:[#allocation2] sm:$0xe]
      %v938 = vld [vmem:[#allocation2 + $0xc] sm:$0xe]
      %v939 = vld [vmem:[#allocation2 + $0x18] sm:$0xe]
      %v940 = vld [vmem:[#allocation2 + $0x24] sm:$0xe]
      %v941 = vld [vmem:[#allocation2 + $0x30] sm:$0xe]
      %v942 = vld [vmem:[#allocation2 + $0x3c] sm:$0xe]
      %v943 = vld [vmem:[#allocation2 + $0x48] sm:$0xe]
      %v944 = vld [vmem:[#allocation2 + $0x54] sm:$0xe]
      %vm961 = vcmask 1042432
      %vm962 = vcmask 1046532
      %vm963 = vmor %vm961, %vm962
      %v964 = vrot.slane %v937, 5
      %v965 = vrot.slane %v964, 4
      %v966 = vrot.slane %v443, 5
      %v967 = vsel %vm963, %v965, %v966
      %v968 = vrot.slane %v966, 4
      %v969 = vrot.slane %v466, 5
      %v970 = vsel %vm963, %v968, %v969
      %v971 = vrot.slane %v938, 5
      %v972 = vrot.slane %v971, 4
      %v973 = vrot.slane %v445, 5
      %v974 = vsel %vm963, %v972, %v973
      %v975 = vrot.slane %v973, 4
      %v976 = vrot.slane %v467, 5
      %v977 = vsel %vm963, %v975, %v976
      %v978 = vrot.slane %v939, 5
      %v979 = vrot.slane %v978, 4
      %v980 = vrot.slane %v447, 5
      %v981 = vsel %vm963, %v979, %v980
      %v982 = vrot.slane %v980, 4
      %v983 = vrot.slane %v468, 5
      %v984 = vsel %vm963, %v982, %v983
      %v985 = vrot.slane %v940, 5
      %v986 = vrot.slane %v985, 4
      %v987 = vrot.slane %v449, 5
      %v988 = vsel %vm963, %v986, %v987
      %v989 = vrot.slane %v987, 4
      %v990 = vrot.slane %v469, 5
      %v991 = vsel %vm963, %v989, %v990
      %v992 = vrot.slane %v941, 5
      %v993 = vrot.slane %v992, 4
      %v994 = vrot.slane %v451, 5
      %v995 = vsel %vm963, %v993, %v994
      %v996 = vrot.slane %v994, 4
      %v997 = vrot.slane %v470, 5
      %v998 = vsel %vm963, %v996, %v997
      %v999 = vrot.slane %v942, 5
      %v1000 = vrot.slane %v999, 4
      %v1001 = vrot.slane %v453, 5
      %v1002 = vsel %vm963, %v1000, %v1001
      %v1003 = vrot.slane %v1001, 4
      %v1004 = vrot.slane %v471, 5
      %v1005 = vsel %vm963, %v1003, %v1004
      %v1006 = vrot.slane %v943, 5
      %v1007 = vrot.slane %v1006, 4
      %v1008 = vrot.slane %v455, 5
      %v1009 = vsel %vm963, %v1007, %v1008
      %v1010 = vrot.slane %v1008, 4
      %v1011 = vrot.slane %v472, 5
      %v1012 = vsel %vm963, %v1010, %v1011
      %v1013 = vrot.slane %v944, 5
      %v1014 = vrot.slane %v1013, 4
      %v1015 = vrot.slane %v457, 5
      %v1016 = vsel %vm963, %v1014, %v1015
      %v1017 = vrot.slane %v1015, 4
      %v1018 = vrot.slane %v473, 5
      %v1019 = vsel %vm963, %v1017, %v1018
      %s1020 = scalar_lea.vmem %s2, 64
      %v1021 = vld [vmem:[%s1020] sm:$0xf]
      %v1022 = vld [vmem:[%s1020 + $0x4] sm:$0xf]
      %v1023 = vld [vmem:[%s1020 + $0x8] sm:$0xf]
      %v1024 = vld [vmem:[%s1020 + $0xc] sm:$0xf]
      %v1025 = vld [vmem:[%s1020 + $0x10] sm:$0xf]
      %v1026 = vld [vmem:[%s1020 + $0x14] sm:$0xf]
      %v1027 = vld [vmem:[%s1020 + $0x18] sm:$0xf]
      %v1028 = vld [vmem:[%s1020 + $0x1c] sm:$0xf]
      %v1029 = vunpack.c.l.b16 %v967
      %v1030 = vunpack.c.l.b16 %v970
      %v1031 = vunpack.c.l.b16 %v974
      %v1032 = vunpack.c.l.b16 %v977
      %v1033 = vunpack.c.l.b16 %v981
      %v1034 = vunpack.c.l.b16 %v984
      %v1035 = vunpack.c.l.b16 %v988
      %v1036 = vunpack.c.l.b16 %v991
      %v1037 = vunpack.c.l.b16 %v995
      %v1038 = vunpack.c.l.b16 %v998
      %v1039 = vunpack.c.l.b16 %v1002
      %v1040 = vunpack.c.l.b16 %v1005
      %v1041 = vunpack.c.l.b16 %v1009
      %v1042 = vunpack.c.l.b16 %v1012
      %v1043 = vunpack.c.l.b16 %v1016
      %v1044 = vunpack.c.l.b16 %v1019
      %v1045 = vpack.c.b16 %v1030, %v1029
      %v1046 = vpack.c.b16 %v1032, %v1031
      %v1047 = vpack.c.b16 %v1034, %v1033
      %v1048 = vpack.c.b16 %v1036, %v1035
      %v1049 = vpack.c.b16 %v1038, %v1037
      %v1050 = vpack.c.b16 %v1040, %v1039
      %v1051 = vpack.c.b16 %v1042, %v1041
      %v1052 = vpack.c.b16 %v1044, %v1043
      %v1061 = vunpack.c.l.b16 %v1021
      %v1062 = vunpack.c.l.b16 %v1022
      %v1063 = vunpack.c.l.b16 %v1023
      %v1064 = vunpack.c.l.b16 %v1024
      %v1065 = vunpack.c.l.b16 %v1025
      %v1066 = vunpack.c.l.b16 %v1026
      %v1067 = vunpack.c.l.b16 %v1027
      %v1068 = vunpack.c.l.b16 %v1028
      %v1069 = vpack.c.b16 %v1062, %v1061
      %v1070 = vpack.c.b16 %v1064, %v1063
      %v1071 = vpack.c.b16 %v1066, %v1065
      %v1072 = vpack.c.b16 %v1068, %v1067
      %v1078 = vsel %vm726, %v1045, 0
      %v1081 = vsel %vm726, %v1046, 0
      %v1084 = vsel %vm726, %v1047, 0
      %v1087 = vsel %vm726, %v1048, 0
      %v1090 = vsel %vm726, %v1049, 0
      %v1093 = vsel %vm726, %v1050, 0
      %v1096 = vsel %vm726, %v1051, 0
      %v1099 = vsel %vm726, %v1052, 0
      %1101 = vmatpush.bf16.msra.mxu0 0
      %1102 = vmatpush.bf16.msra.mxu0 0
      %1103 = vmatpush.bf16.msra.mxu0 0
      %1104 = vmatpush.bf16.msra.mxu0 0
      %1105 = vmatpush.bf16.msra.mxu0 %v1072
      %1106 = vmatpush.bf16.msra.mxu0 %v1071
      %1107 = vmatpush.bf16.msra.mxu0 %v1070
      %1108 = vmatpush.bf16.msra.mxu0 %v1069
      %1109 = vmatmul.bf16.gmra.mxu0 %v1078
      %v1110 = vpop.f32.mrf.mxu0
      %v1111 = vadd.f32 0.0, %v1110
      %v1112 = vpop.f32.mrf.mxu0
      %v1113 = vadd.f32 0.0, %v1112
      %1114 = vmatmul.bf16.gmra.mxu0 %v1081
      %v1115 = vpop.f32.mrf.mxu0
      %v1116 = vadd.f32 0.0, %v1115
      %v1117 = vpop.f32.mrf.mxu0
      %v1118 = vadd.f32 0.0, %v1117
      %1119 = vmatmul.bf16.gmra.mxu0 %v1084
      %v1120 = vpop.f32.mrf.mxu0
      %v1121 = vadd.f32 0.0, %v1120
      %v1122 = vpop.f32.mrf.mxu0
      %v1123 = vadd.f32 0.0, %v1122
      %1124 = vmatmul.bf16.gmra.mxu0 %v1087
      %v1125 = vpop.f32.mrf.mxu0
      %v1126 = vadd.f32 0.0, %v1125
      %v1127 = vpop.f32.mrf.mxu0
      %v1128 = vadd.f32 0.0, %v1127
      %1129 = vmatmul.bf16.gmra.mxu0 %v1090
      %v1130 = vpop.f32.mrf.mxu0
      %v1131 = vadd.f32 0.0, %v1130
      %v1132 = vpop.f32.mrf.mxu0
      %v1133 = vadd.f32 0.0, %v1132
      %1134 = vmatmul.bf16.gmra.mxu0 %v1093
      %v1135 = vpop.f32.mrf.mxu0
      %v1136 = vadd.f32 0.0, %v1135
      %v1137 = vpop.f32.mrf.mxu0
      %v1138 = vadd.f32 0.0, %v1137
      %1139 = vmatmul.bf16.gmra.mxu0 %v1096
      %v1140 = vpop.f32.mrf.mxu0
      %v1141 = vadd.f32 0.0, %v1140
      %v1142 = vpop.f32.mrf.mxu0
      %v1143 = vadd.f32 0.0, %v1142
      %1144 = vmatmul.bf16.gmra.mxu0 %v1099
      %v1145 = vpop.f32.mrf.mxu0
      %v1146 = vadd.f32 0.0, %v1145
      %v1147 = vpop.f32.mrf.mxu0
      %v1148 = vadd.f32 0.0, %v1147
      %1149 = vdwg.mxu0
      %v1150 = vadd.f32 %v898, %v1111
      %v1151 = vadd.f32 %v900, %v1113
      %v1152 = vadd.f32 %v903, %v1116
      %v1153 = vadd.f32 %v905, %v1118
      %v1154 = vadd.f32 %v908, %v1121
      %v1155 = vadd.f32 %v910, %v1123
      %v1156 = vadd.f32 %v913, %v1126
      %v1157 = vadd.f32 %v915, %v1128
      %v1158 = vadd.f32 %v918, %v1131
      %v1159 = vadd.f32 %v920, %v1133
      %v1160 = vadd.f32 %v923, %v1136
      %v1161 = vadd.f32 %v925, %v1138
      %v1162 = vadd.f32 %v928, %v1141
      %v1163 = vadd.f32 %v930, %v1143
      %v1164 = vadd.f32 %v933, %v1146
      %v1165 = vadd.f32 %v935, %v1148
      %s1166 = scalar_lea.vmem [#allocation2], 12
      %v1167 = vld [vmem:[%s1166] sm:$0xf]
      %v1168 = vld [vmem:[%s1166 + $0x4] sm:$0xf]
      %v1169 = vld [vmem:[%s1166 + $0xc] sm:$0xf]
      %v1170 = vld [vmem:[%s1166 + $0x10] sm:$0xf]
      %v1171 = vld [vmem:[%s1166 + $0x18] sm:$0xf]
      %v1172 = vld [vmem:[%s1166 + $0x1c] sm:$0xf]
      %v1173 = vld [vmem:[%s1166 + $0x24] sm:$0xf]
      %v1174 = vld [vmem:[%s1166 + $0x28] sm:$0xf]
      %v1175 = vld [vmem:[%s1166 + $0x30] sm:$0xf]
      %v1176 = vld [vmem:[%s1166 + $0x34] sm:$0xf]
      %v1177 = vld [vmem:[%s1166 + $0x3c] sm:$0xf]
      %v1178 = vld [vmem:[%s1166 + $0x40] sm:$0xf]
      %v1179 = vld [vmem:[%s1166 + $0x48] sm:$0xf]
      %v1180 = vld [vmem:[%s1166 + $0x4c] sm:$0xf]
      %v1181 = vld [vmem:[%s1166 + $0x54] sm:$0xf]
      %v1182 = vld [vmem:[%s1166 + $0x58] sm:$0xf]
      %s1183 = scalar_lea.vmem %s2, 96
      %v1184 = vld [vmem:[%s1183] sm:$0xf]
      %v1185 = vld [vmem:[%s1183 + $0x4] sm:$0xf]
      %v1186 = vld [vmem:[%s1183 + $0x8] sm:$0xf]
      %v1187 = vld [vmem:[%s1183 + $0xc] sm:$0xf]
      %v1188 = vld [vmem:[%s1183 + $0x10] sm:$0xf]
      %v1189 = vld [vmem:[%s1183 + $0x14] sm:$0xf]
      %v1190 = vld [vmem:[%s1183 + $0x18] sm:$0xf]
      %v1191 = vld [vmem:[%s1183 + $0x1c] sm:$0xf]
      %v1208 = vunpack.c.l.b16 %v1167
      %v1209 = vunpack.c.l.b16 %v1168
      %v1210 = vunpack.c.l.b16 %v1169
      %v1211 = vunpack.c.l.b16 %v1170
      %v1212 = vunpack.c.l.b16 %v1171
      %v1213 = vunpack.c.l.b16 %v1172
      %v1214 = vunpack.c.l.b16 %v1173
      %v1215 = vunpack.c.l.b16 %v1174
      %v1216 = vunpack.c.l.b16 %v1175
      %v1217 = vunpack.c.l.b16 %v1176
      %v1218 = vunpack.c.l.b16 %v1177
      %v1219 = vunpack.c.l.b16 %v1178
      %v1220 = vunpack.c.l.b16 %v1179
      %v1221 = vunpack.c.l.b16 %v1180
      %v1222 = vunpack.c.l.b16 %v1181
      %v1223 = vunpack.c.l.b16 %v1182
      %v1224 = vpack.c.b16 %v1209, %v1208
      %v1225 = vpack.c.b16 %v1211, %v1210
      %v1226 = vpack.c.b16 %v1213, %v1212
      %v1227 = vpack.c.b16 %v1215, %v1214
      %v1228 = vpack.c.b16 %v1217, %v1216
      %v1229 = vpack.c.b16 %v1219, %v1218
      %v1230 = vpack.c.b16 %v1221, %v1220
      %v1231 = vpack.c.b16 %v1223, %v1222
      %v1240 = vunpack.c.l.b16 %v1184
      %v1241 = vunpack.c.l.b16 %v1185
      %v1242 = vunpack.c.l.b16 %v1186
      %v1243 = vunpack.c.l.b16 %v1187
      %v1244 = vunpack.c.l.b16 %v1188
      %v1245 = vunpack.c.l.b16 %v1189
      %v1246 = vunpack.c.l.b16 %v1190
      %v1247 = vunpack.c.l.b16 %v1191
      %v1248 = vpack.c.b16 %v1241, %v1240
      %v1249 = vpack.c.b16 %v1243, %v1242
      %v1250 = vpack.c.b16 %v1245, %v1244
      %v1251 = vpack.c.b16 %v1247, %v1246
      %v1257 = vsel %vm726, %v1224, 0
      %v1260 = vsel %vm726, %v1225, 0
      %v1263 = vsel %vm726, %v1226, 0
      %v1266 = vsel %vm726, %v1227, 0
      %v1269 = vsel %vm726, %v1228, 0
      %v1272 = vsel %vm726, %v1229, 0
      %v1275 = vsel %vm726, %v1230, 0
      %v1278 = vsel %vm726, %v1231, 0
      %1280 = vmatpush.bf16.msra.mxu0 0
      %1281 = vmatpush.bf16.msra.mxu0 0
      %1282 = vmatpush.bf16.msra.mxu0 0
      %1283 = vmatpush.bf16.msra.mxu0 0
      %1284 = vmatpush.bf16.msra.mxu0 %v1251
      %1285 = vmatpush.bf16.msra.mxu0 %v1250
      %1286 = vmatpush.bf16.msra.mxu0 %v1249
      %1287 = vmatpush.bf16.msra.mxu0 %v1248
      %1288 = vmatmul.bf16.gmra.mxu0 %v1257
      %v1289 = vpop.f32.mrf.mxu0
      %v1290 = vadd.f32 0.0, %v1289
      %v1291 = vpop.f32.mrf.mxu0
      %v1292 = vadd.f32 0.0, %v1291
      %1293 = vmatmul.bf16.gmra.mxu0 %v1260
      %v1294 = vpop.f32.mrf.mxu0
      %v1295 = vadd.f32 0.0, %v1294
      %v1296 = vpop.f32.mrf.mxu0
      %v1297 = vadd.f32 0.0, %v1296
      %1298 = vmatmul.bf16.gmra.mxu0 %v1263
      %v1299 = vpop.f32.mrf.mxu0
      %v1300 = vadd.f32 0.0, %v1299
      %v1301 = vpop.f32.mrf.mxu0
      %v1302 = vadd.f32 0.0, %v1301
      %1303 = vmatmul.bf16.gmra.mxu0 %v1266
      %v1304 = vpop.f32.mrf.mxu0
      %v1305 = vadd.f32 0.0, %v1304
      %v1306 = vpop.f32.mrf.mxu0
      %v1307 = vadd.f32 0.0, %v1306
      %1308 = vmatmul.bf16.gmra.mxu0 %v1269
      %v1309 = vpop.f32.mrf.mxu0
      %v1310 = vadd.f32 0.0, %v1309
      %v1311 = vpop.f32.mrf.mxu0
      %v1312 = vadd.f32 0.0, %v1311
      %1313 = vmatmul.bf16.gmra.mxu0 %v1272
      %v1314 = vpop.f32.mrf.mxu0
      %v1315 = vadd.f32 0.0, %v1314
      %v1316 = vpop.f32.mrf.mxu0
      %v1317 = vadd.f32 0.0, %v1316
      %1318 = vmatmul.bf16.gmra.mxu0 %v1275
      %v1319 = vpop.f32.mrf.mxu0
      %v1320 = vadd.f32 0.0, %v1319
      %v1321 = vpop.f32.mrf.mxu0
      %v1322 = vadd.f32 0.0, %v1321
      %1323 = vmatmul.bf16.gmra.mxu0 %v1278
      %v1324 = vpop.f32.mrf.mxu0
      %v1325 = vadd.f32 0.0, %v1324
      %v1326 = vpop.f32.mrf.mxu0
      %v1327 = vadd.f32 0.0, %v1326
      %1328 = vdwg.mxu0
      %v1329 = vadd.f32 %v1150, %v1290
      %v1330 = vadd.f32 %v1151, %v1292
      %v1331 = vadd.f32 %v1152, %v1295
      %v1332 = vadd.f32 %v1153, %v1297
      %v1333 = vadd.f32 %v1154, %v1300
      %v1334 = vadd.f32 %v1155, %v1302
      %v1335 = vadd.f32 %v1156, %v1305
      %v1336 = vadd.f32 %v1157, %v1307
      %v1337 = vadd.f32 %v1158, %v1310
      %v1338 = vadd.f32 %v1159, %v1312
      %v1339 = vadd.f32 %v1160, %v1315
      %v1340 = vadd.f32 %v1161, %v1317
      %v1341 = vadd.f32 %v1162, %v1320
      %v1342 = vadd.f32 %v1163, %v1322
      %v1343 = vadd.f32 %v1164, %v1325
      %v1344 = vadd.f32 %v1165, %v1327
      %v1345 = vld [vmem:[%s1166] sm:$0xf]
      %v1346 = vld [vmem:[%s1166 + $0x4] sm:$0xf]
      %v1347 = vld [vmem:[%s1166 + $0x8] sm:$0x1]
      %v1348 = vld [vmem:[%s1166 + $0xc] sm:$0xf]
      %v1349 = vld [vmem:[%s1166 + $0x10] sm:$0xf]
      %v1350 = vld [vmem:[%s1166 + $0x14] sm:$0x1]
      %v1351 = vld [vmem:[%s1166 + $0x18] sm:$0xf]
      %v1352 = vld [vmem:[%s1166 + $0x1c] sm:$0xf]
      %v1353 = vld [vmem:[%s1166 + $0x20] sm:$0x1]
      %v1354 = vld [vmem:[%s1166 + $0x24] sm:$0xf]
      %v1355 = vld [vmem:[%s1166 + $0x28] sm:$0xf]
      %v1356 = vld [vmem:[%s1166 + $0x2c] sm:$0x1]
      %v1357 = vld [vmem:[%s1166 + $0x30] sm:$0xf]
      %v1358 = vld [vmem:[%s1166 + $0x34] sm:$0xf]
      %v1359 = vld [vmem:[%s1166 + $0x38] sm:$0x1]
      %v1360 = vld [vmem:[%s1166 + $0x3c] sm:$0xf]
      %v1361 = vld [vmem:[%s1166 + $0x40] sm:$0xf]
      %v1362 = vld [vmem:[%s1166 + $0x44] sm:$0x1]
      %v1363 = vld [vmem:[%s1166 + $0x48] sm:$0xf]
      %v1364 = vld [vmem:[%s1166 + $0x4c] sm:$0xf]
      %v1365 = vld [vmem:[%s1166 + $0x50] sm:$0x1]
      %v1366 = vld [vmem:[%s1166 + $0x54] sm:$0xf]
      %v1367 = vld [vmem:[%s1166 + $0x58] sm:$0xf]
      %v1368 = vld [vmem:[%s1166 + $0x5c] sm:$0x1]
      %v1370 = vshrl.u32 %v1345, 16
      %v1372 = vrot.slane %v1370, 4
      %v1373 = vshll.u32 %v1345, 16
      %v1375 = vrot.slane %v1373, 5
      %v1376 = vor.u32 %v1372, %v1375
      %v1377 = vrot.slane %v1376, 4
      %v1379 = vshll.u32 %v1346, 16
      %v1381 = vrot.slane %v1379, 5
      %v1382 = vsel %vm476, %v1377, %v1381
      %v1383 = vshrl.u32 %v1346, 16
      %v1385 = vrot.slane %v1383, 4
      %v1386 = vor.u32 %v1385, %v1381
      %v1387 = vrot.slane %v1386, 4
      %v1389 = vshll.u32 %v1347, 16
      %v1391 = vrot.slane %v1389, 5
      %v1392 = vsel %vm476, %v1387, %v1391
      %v1394 = vshrl.u32 %v1348, 16
      %v1396 = vrot.slane %v1394, 4
      %v1397 = vshll.u32 %v1348, 16
      %v1399 = vrot.slane %v1397, 5
      %v1400 = vor.u32 %v1396, %v1399
      %v1401 = vrot.slane %v1400, 4
      %v1403 = vshll.u32 %v1349, 16
      %v1405 = vrot.slane %v1403, 5
      %v1406 = vsel %vm476, %v1401, %v1405
      %v1407 = vshrl.u32 %v1349, 16
      %v1409 = vrot.slane %v1407, 4
      %v1410 = vor.u32 %v1409, %v1405
      %v1411 = vrot.slane %v1410, 4
      %v1413 = vshll.u32 %v1350, 16
      %v1415 = vrot.slane %v1413, 5
      %v1416 = vsel %vm476, %v1411, %v1415
      %v1418 = vshrl.u32 %v1351, 16
      %v1420 = vrot.slane %v1418, 4
      %v1421 = vshll.u32 %v1351, 16
      %v1423 = vrot.slane %v1421, 5
      %v1424 = vor.u32 %v1420, %v1423
      %v1425 = vrot.slane %v1424, 4
      %v1427 = vshll.u32 %v1352, 16
      %v1429 = vrot.slane %v1427, 5
      %v1430 = vsel %vm476, %v1425, %v1429
      %v1431 = vshrl.u32 %v1352, 16
      %v1433 = vrot.slane %v1431, 4
      %v1434 = vor.u32 %v1433, %v1429
      %v1435 = vrot.slane %v1434, 4
      %v1437 = vshll.u32 %v1353, 16
      %v1439 = vrot.slane %v1437, 5
      %v1440 = vsel %vm476, %v1435, %v1439
      %v1442 = vshrl.u32 %v1354, 16
      %v1444 = vrot.slane %v1442, 4
      %v1445 = vshll.u32 %v1354, 16
      %v1447 = vrot.slane %v1445, 5
      %v1448 = vor.u32 %v1444, %v1447
      %v1449 = vrot.slane %v1448, 4
      %v1451 = vshll.u32 %v1355, 16
      %v1453 = vrot.slane %v1451, 5
      %v1454 = vsel %vm476, %v1449, %v1453
      %v1455 = vshrl.u32 %v1355, 16
      %v1457 = vrot.slane %v1455, 4
      %v1458 = vor.u32 %v1457, %v1453
      %v1459 = vrot.slane %v1458, 4
      %v1461 = vshll.u32 %v1356, 16
      %v1463 = vrot.slane %v1461, 5
      %v1464 = vsel %vm476, %v1459, %v1463
      %v1466 = vshrl.u32 %v1357, 16
      %v1468 = vrot.slane %v1466, 4
      %v1469 = vshll.u32 %v1357, 16
      %v1471 = vrot.slane %v1469, 5
      %v1472 = vor.u32 %v1468, %v1471
      %v1473 = vrot.slane %v1472, 4
      %v1475 = vshll.u32 %v1358, 16
      %v1477 = vrot.slane %v1475, 5
      %v1478 = vsel %vm476, %v1473, %v1477
      %v1479 = vshrl.u32 %v1358, 16
      %v1481 = vrot.slane %v1479, 4
      %v1482 = vor.u32 %v1481, %v1477
      %v1483 = vrot.slane %v1482, 4
      %v1485 = vshll.u32 %v1359, 16
      %v1487 = vrot.slane %v1485, 5
      %v1488 = vsel %vm476, %v1483, %v1487
      %v1490 = vshrl.u32 %v1360, 16
      %v1492 = vrot.slane %v1490, 4
      %v1493 = vshll.u32 %v1360, 16
      %v1495 = vrot.slane %v1493, 5
      %v1496 = vor.u32 %v1492, %v1495
      %v1497 = vrot.slane %v1496, 4
      %v1499 = vshll.u32 %v1361, 16
      %v1501 = vrot.slane %v1499, 5
      %v1502 = vsel %vm476, %v1497, %v1501
      %v1503 = vshrl.u32 %v1361, 16
      %v1505 = vrot.slane %v1503, 4
      %v1506 = vor.u32 %v1505, %v1501
      %v1507 = vrot.slane %v1506, 4
      %v1509 = vshll.u32 %v1362, 16
      %v1511 = vrot.slane %v1509, 5
      %v1512 = vsel %vm476, %v1507, %v1511
      %v1514 = vshrl.u32 %v1363, 16
      %v1516 = vrot.slane %v1514, 4
      %v1517 = vshll.u32 %v1363, 16
      %v1519 = vrot.slane %v1517, 5
      %v1520 = vor.u32 %v1516, %v1519
      %v1521 = vrot.slane %v1520, 4
      %v1523 = vshll.u32 %v1364, 16
      %v1525 = vrot.slane %v1523, 5
      %v1526 = vsel %vm476, %v1521, %v1525
      %v1527 = vshrl.u32 %v1364, 16
      %v1529 = vrot.slane %v1527, 4
      %v1530 = vor.u32 %v1529, %v1525
      %v1531 = vrot.slane %v1530, 4
      %v1533 = vshll.u32 %v1365, 16
      %v1535 = vrot.slane %v1533, 5
      %v1536 = vsel %vm476, %v1531, %v1535
      %v1538 = vshrl.u32 %v1366, 16
      %v1540 = vrot.slane %v1538, 4
      %v1541 = vshll.u32 %v1366, 16
      %v1543 = vrot.slane %v1541, 5
      %v1544 = vor.u32 %v1540, %v1543
      %v1545 = vrot.slane %v1544, 4
      %v1547 = vshll.u32 %v1367, 16
      %v1549 = vrot.slane %v1547, 5
      %v1550 = vsel %vm476, %v1545, %v1549
      %v1551 = vshrl.u32 %v1367, 16
      %v1553 = vrot.slane %v1551, 4
      %v1554 = vor.u32 %v1553, %v1549
      %v1555 = vrot.slane %v1554, 4
      %v1557 = vshll.u32 %v1368, 16
      %v1559 = vrot.slane %v1557, 5
      %v1560 = vsel %vm476, %v1555, %v1559
      %s1561 = scalar_lea.vmem %s2, 128
      %v1562 = vld [vmem:[%s1561] sm:$0xf]
      %v1563 = vld [vmem:[%s1561 + $0x4] sm:$0xf]
      %v1564 = vld [vmem:[%s1561 + $0x8] sm:$0xf]
      %v1565 = vld [vmem:[%s1561 + $0xc] sm:$0xf]
      %v1566 = vld [vmem:[%s1561 + $0x10] sm:$0xf]
      %v1567 = vld [vmem:[%s1561 + $0x14] sm:$0xf]
      %v1568 = vld [vmem:[%s1561 + $0x18] sm:$0xf]
      %v1569 = vld [vmem:[%s1561 + $0x1c] sm:$0xf]
      %v1570 = vunpack.c.l.b16 %v1382
      %v1571 = vunpack.c.l.b16 %v1392
      %v1572 = vunpack.c.l.b16 %v1406
      %v1573 = vunpack.c.l.b16 %v1416
      %v1574 = vunpack.c.l.b16 %v1430
      %v1575 = vunpack.c.l.b16 %v1440
      %v1576 = vunpack.c.l.b16 %v1454
      %v1577 = vunpack.c.l.b16 %v1464
      %v1578 = vunpack.c.l.b16 %v1478
      %v1579 = vunpack.c.l.b16 %v1488
      %v1580 = vunpack.c.l.b16 %v1502
      %v1581 = vunpack.c.l.b16 %v1512
      %v1582 = vunpack.c.l.b16 %v1526
      %v1583 = vunpack.c.l.b16 %v1536
      %v1584 = vunpack.c.l.b16 %v1550
      %v1585 = vunpack.c.l.b16 %v1560
      %v1586 = vpack.c.b16 %v1571, %v1570
      %v1587 = vpack.c.b16 %v1573, %v1572
      %v1588 = vpack.c.b16 %v1575, %v1574
      %v1589 = vpack.c.b16 %v1577, %v1576
      %v1590 = vpack.c.b16 %v1579, %v1578
      %v1591 = vpack.c.b16 %v1581, %v1580
      %v1592 = vpack.c.b16 %v1583, %v1582
      %v1593 = vpack.c.b16 %v1585, %v1584
      %v1602 = vunpack.c.l.b16 %v1562
      %v1603 = vunpack.c.l.b16 %v1563
      %v1604 = vunpack.c.l.b16 %v1564
      %v1605 = vunpack.c.l.b16 %v1565
      %v1606 = vunpack.c.l.b16 %v1566
      %v1607 = vunpack.c.l.b16 %v1567
      %v1608 = vunpack.c.l.b16 %v1568
      %v1609 = vunpack.c.l.b16 %v1569
      %v1610 = vpack.c.b16 %v1603, %v1602
      %v1611 = vpack.c.b16 %v1605, %v1604
      %v1612 = vpack.c.b16 %v1607, %v1606
      %v1613 = vpack.c.b16 %v1609, %v1608
      %v1619 = vsel %vm726, %v1586, 0
      %v1622 = vsel %vm726, %v1587, 0
      %v1625 = vsel %vm726, %v1588, 0
      %v1628 = vsel %vm726, %v1589, 0
      %v1631 = vsel %vm726, %v1590, 0
      %v1634 = vsel %vm726, %v1591, 0
      %v1637 = vsel %vm726, %v1592, 0
      %v1640 = vsel %vm726, %v1593, 0
      %1642 = vmatpush.bf16.msra.mxu0 0
      %1643 = vmatpush.bf16.msra.mxu0 0
      %1644 = vmatpush.bf16.msra.mxu0 0
      %1645 = vmatpush.bf16.msra.mxu0 0
      %1646 = vmatpush.bf16.msra.mxu0 %v1613
      %1647 = vmatpush.bf16.msra.mxu0 %v1612
      %1648 = vmatpush.bf16.msra.mxu0 %v1611
      %1649 = vmatpush.bf16.msra.mxu0 %v1610
      %1650 = vmatmul.bf16.gmra.mxu0 %v1619
      %v1651 = vpop.f32.mrf.mxu0
      %v1652 = vadd.f32 0.0, %v1651
      %v1653 = vpop.f32.mrf.mxu0
      %v1654 = vadd.f32 0.0, %v1653
      %1655 = vmatmul.bf16.gmra.mxu0 %v1622
      %v1656 = vpop.f32.mrf.mxu0
      %v1657 = vadd.f32 0.0, %v1656
      %v1658 = vpop.f32.mrf.mxu0
      %v1659 = vadd.f32 0.0, %v1658
      %1660 = vmatmul.bf16.gmra.mxu0 %v1625
      %v1661 = vpop.f32.mrf.mxu0
      %v1662 = vadd.f32 0.0, %v1661
      %v1663 = vpop.f32.mrf.mxu0
      %v1664 = vadd.f32 0.0, %v1663
      %1665 = vmatmul.bf16.gmra.mxu0 %v1628
      %v1666 = vpop.f32.mrf.mxu0
      %v1667 = vadd.f32 0.0, %v1666
      %v1668 = vpop.f32.mrf.mxu0
      %v1669 = vadd.f32 0.0, %v1668
      %1670 = vmatmul.bf16.gmra.mxu0 %v1631
      %v1671 = vpop.f32.mrf.mxu0
      %v1672 = vadd.f32 0.0, %v1671
      %v1673 = vpop.f32.mrf.mxu0
      %v1674 = vadd.f32 0.0, %v1673
      %1675 = vmatmul.bf16.gmra.mxu0 %v1634
      %v1676 = vpop.f32.mrf.mxu0
      %v1677 = vadd.f32 0.0, %v1676
      %v1678 = vpop.f32.mrf.mxu0
      %v1679 = vadd.f32 0.0, %v1678
      %1680 = vmatmul.bf16.gmra.mxu0 %v1637
      %v1681 = vpop.f32.mrf.mxu0
      %v1682 = vadd.f32 0.0, %v1681
      %v1683 = vpop.f32.mrf.mxu0
      %v1684 = vadd.f32 0.0, %v1683
      %1685 = vmatmul.bf16.gmra.mxu0 %v1640
      %v1686 = vpop.f32.mrf.mxu0
      %v1687 = vadd.f32 0.0, %v1686
      %v1688 = vpop.f32.mrf.mxu0
      %v1689 = vadd.f32 0.0, %v1688
      %1690 = vdwg.mxu0
      %v1691 = vadd.f32 %v1329, %v1652
      %v1692 = vadd.f32 %v1330, %v1654
      %v1693 = vadd.f32 %v1331, %v1657
      %v1694 = vadd.f32 %v1332, %v1659
      %v1695 = vadd.f32 %v1333, %v1662
      %v1696 = vadd.f32 %v1334, %v1664
      %v1697 = vadd.f32 %v1335, %v1667
      %v1698 = vadd.f32 %v1336, %v1669
      %v1699 = vadd.f32 %v1337, %v1672
      %v1700 = vadd.f32 %v1338, %v1674
      %v1701 = vadd.f32 %v1339, %v1677
      %v1702 = vadd.f32 %v1340, %v1679
      %v1703 = vadd.f32 %v1341, %v1682
      %v1704 = vadd.f32 %v1342, %v1684
      %v1705 = vadd.f32 %v1343, %v1687
      %v1706 = vadd.f32 %v1344, %v1689
      %v1707 = vld [vmem:[%s1166] sm:$0xe]
      %v1708 = vld [vmem:[%s1166 + $0xc] sm:$0xe]
      %v1709 = vld [vmem:[%s1166 + $0x18] sm:$0xe]
      %v1710 = vld [vmem:[%s1166 + $0x24] sm:$0xe]
      %v1711 = vld [vmem:[%s1166 + $0x30] sm:$0xe]
      %v1712 = vld [vmem:[%s1166 + $0x3c] sm:$0xe]
      %v1713 = vld [vmem:[%s1166 + $0x48] sm:$0xe]
      %v1714 = vld [vmem:[%s1166 + $0x54] sm:$0xe]
      %v1739 = vrot.slane %v1707, 5
      %v1740 = vrot.slane %v1739, 4
      %v1741 = vrot.slane %v1346, 5
      %v1742 = vsel %vm963, %v1740, %v1741
      %v1743 = vrot.slane %v1741, 4
      %v1744 = vrot.slane %v1347, 5
      %v1745 = vsel %vm963, %v1743, %v1744
      %v1746 = vrot.slane %v1708, 5
      %v1747 = vrot.slane %v1746, 4
      %v1748 = vrot.slane %v1349, 5
      %v1749 = vsel %vm963, %v1747, %v1748
      %v1750 = vrot.slane %v1748, 4
      %v1751 = vrot.slane %v1350, 5
      %v1752 = vsel %vm963, %v1750, %v1751
      %v1753 = vrot.slane %v1709, 5
      %v1754 = vrot.slane %v1753, 4
      %v1755 = vrot.slane %v1352, 5
      %v1756 = vsel %vm963, %v1754, %v1755
      %v1757 = vrot.slane %v1755, 4
      %v1758 = vrot.slane %v1353, 5
      %v1759 = vsel %vm963, %v1757, %v1758
      %v1760 = vrot.slane %v1710, 5
      %v1761 = vrot.slane %v1760, 4
      %v1762 = vrot.slane %v1355, 5
      %v1763 = vsel %vm963, %v1761, %v1762
      %v1764 = vrot.slane %v1762, 4
      %v1765 = vrot.slane %v1356, 5
      %v1766 = vsel %vm963, %v1764, %v1765
      %v1767 = vrot.slane %v1711, 5
      %v1768 = vrot.slane %v1767, 4
      %v1769 = vrot.slane %v1358, 5
      %v1770 = vsel %vm963, %v1768, %v1769
      %v1771 = vrot.slane %v1769, 4
      %v1772 = vrot.slane %v1359, 5
      %v1773 = vsel %vm963, %v1771, %v1772
      %v1774 = vrot.slane %v1712, 5
      %v1775 = vrot.slane %v1774, 4
      %v1776 = vrot.slane %v1361, 5
      %v1777 = vsel %vm963, %v1775, %v1776
      %v1778 = vrot.slane %v1776, 4
      %v1779 = vrot.slane %v1362, 5
      %v1780 = vsel %vm963, %v1778, %v1779
      %v1781 = vrot.slane %v1713, 5
      %v1782 = vrot.slane %v1781, 4
      %v1783 = vrot.slane %v1364, 5
      %v1784 = vsel %vm963, %v1782, %v1783
      %v1785 = vrot.slane %v1783, 4
      %v1786 = vrot.slane %v1365, 5
      %v1787 = vsel %vm963, %v1785, %v1786
      %v1788 = vrot.slane %v1714, 5
      %v1789 = vrot.slane %v1788, 4
      %v1790 = vrot.slane %v1367, 5
      %v1791 = vsel %vm963, %v1789, %v1790
      %v1792 = vrot.slane %v1790, 4
      %v1793 = vrot.slane %v1368, 5
      %v1794 = vsel %vm963, %v1792, %v1793
      %s1795 = scalar_lea.vmem %s2, 160
      %v1796 = vld [vmem:[%s1795] sm:$0xf]
      %v1797 = vld [vmem:[%s1795 + $0x4] sm:$0xf]
      %v1798 = vld [vmem:[%s1795 + $0x8] sm:$0xf]
      %v1799 = vld [vmem:[%s1795 + $0xc] sm:$0xf]
      %v1800 = vld [vmem:[%s1795 + $0x10] sm:$0xf]
      %v1801 = vld [vmem:[%s1795 + $0x14] sm:$0xf]
      %v1802 = vld [vmem:[%s1795 + $0x18] sm:$0xf]
      %v1803 = vld [vmem:[%s1795 + $0x1c] sm:$0xf]
      %v1804 = vunpack.c.l.b16 %v1742
      %v1805 = vunpack.c.l.b16 %v1745
      %v1806 = vunpack.c.l.b16 %v1749
      %v1807 = vunpack.c.l.b16 %v1752
      %v1808 = vunpack.c.l.b16 %v1756
      %v1809 = vunpack.c.l.b16 %v1759
      %v1810 = vunpack.c.l.b16 %v1763
      %v1811 = vunpack.c.l.b16 %v1766
      %v1812 = vunpack.c.l.b16 %v1770
      %v1813 = vunpack.c.l.b16 %v1773
      %v1814 = vunpack.c.l.b16 %v1777
      %v1815 = vunpack.c.l.b16 %v1780
      %v1816 = vunpack.c.l.b16 %v1784
      %v1817 = vunpack.c.l.b16 %v1787
      %v1818 = vunpack.c.l.b16 %v1791
      %v1819 = vunpack.c.l.b16 %v1794
      %v1820 = vpack.c.b16 %v1805, %v1804
      %v1821 = vpack.c.b16 %v1807, %v1806
      %v1822 = vpack.c.b16 %v1809, %v1808
      %v1823 = vpack.c.b16 %v1811, %v1810
      %v1824 = vpack.c.b16 %v1813, %v1812
      %v1825 = vpack.c.b16 %v1815, %v1814
      %v1826 = vpack.c.b16 %v1817, %v1816
      %v1827 = vpack.c.b16 %v1819, %v1818
      %v1836 = vunpack.c.l.b16 %v1796
      %v1837 = vunpack.c.l.b16 %v1797
      %v1838 = vunpack.c.l.b16 %v1798
      %v1839 = vunpack.c.l.b16 %v1799
      %v1840 = vunpack.c.l.b16 %v1800
      %v1841 = vunpack.c.l.b16 %v1801
      %v1842 = vunpack.c.l.b16 %v1802
      %v1843 = vunpack.c.l.b16 %v1803
      %v1844 = vpack.c.b16 %v1837, %v1836
      %v1845 = vpack.c.b16 %v1839, %v1838
      %v1846 = vpack.c.b16 %v1841, %v1840
      %v1847 = vpack.c.b16 %v1843, %v1842
      %v1853 = vsel %vm726, %v1820, 0
      %v1856 = vsel %vm726, %v1821, 0
      %v1859 = vsel %vm726, %v1822, 0
      %v1862 = vsel %vm726, %v1823, 0
      %v1865 = vsel %vm726, %v1824, 0
      %v1868 = vsel %vm726, %v1825, 0
      %v1871 = vsel %vm726, %v1826, 0
      %v1874 = vsel %vm726, %v1827, 0
      %1876 = vmatpush.bf16.msra.mxu0 0
      %1877 = vmatpush.bf16.msra.mxu0 0
      %1878 = vmatpush.bf16.msra.mxu0 0
      %1879 = vmatpush.bf16.msra.mxu0 0
      %1880 = vmatpush.bf16.msra.mxu0 %v1847
      %1881 = vmatpush.bf16.msra.mxu0 %v1846
      %1882 = vmatpush.bf16.msra.mxu0 %v1845
      %1883 = vmatpush.bf16.msra.mxu0 %v1844
      %1884 = vmatmul.bf16.gmra.mxu0 %v1853
      %v1885 = vpop.f32.mrf.mxu0
      %v1886 = vadd.f32 0.0, %v1885
      %v1887 = vpop.f32.mrf.mxu0
      %v1888 = vadd.f32 0.0, %v1887
      %1889 = vmatmul.bf16.gmra.mxu0 %v1856
      %v1890 = vpop.f32.mrf.mxu0
      %v1891 = vadd.f32 0.0, %v1890
      %v1892 = vpop.f32.mrf.mxu0
      %v1893 = vadd.f32 0.0, %v1892
      %1894 = vmatmul.bf16.gmra.mxu0 %v1859
      %v1895 = vpop.f32.mrf.mxu0
      %v1896 = vadd.f32 0.0, %v1895
      %v1897 = vpop.f32.mrf.mxu0
      %v1898 = vadd.f32 0.0, %v1897
      %1899 = vmatmul.bf16.gmra.mxu0 %v1862
      %v1900 = vpop.f32.mrf.mxu0
      %v1901 = vadd.f32 0.0, %v1900
      %v1902 = vpop.f32.mrf.mxu0
      %v1903 = vadd.f32 0.0, %v1902
      %1904 = vmatmul.bf16.gmra.mxu0 %v1865
      %v1905 = vpop.f32.mrf.mxu0
      %v1906 = vadd.f32 0.0, %v1905
      %v1907 = vpop.f32.mrf.mxu0
      %v1908 = vadd.f32 0.0, %v1907
      %1909 = vmatmul.bf16.gmra.mxu0 %v1868
      %v1910 = vpop.f32.mrf.mxu0
      %v1911 = vadd.f32 0.0, %v1910
      %v1912 = vpop.f32.mrf.mxu0
      %v1913 = vadd.f32 0.0, %v1912
      %1914 = vmatmul.bf16.gmra.mxu0 %v1871
      %v1915 = vpop.f32.mrf.mxu0
      %v1916 = vadd.f32 0.0, %v1915
      %v1917 = vpop.f32.mrf.mxu0
      %v1918 = vadd.f32 0.0, %v1917
      %1919 = vmatmul.bf16.gmra.mxu0 %v1874
      %v1920 = vpop.f32.mrf.mxu0
      %v1921 = vadd.f32 0.0, %v1920
      %v1922 = vpop.f32.mrf.mxu0
      %v1923 = vadd.f32 0.0, %v1922
      %1924 = vdwg.mxu0
      %v1925 = vadd.f32 %v1691, %v1886
      %v1926 = vadd.f32 %v1692, %v1888
      %v1927 = vadd.f32 %v1693, %v1891
      %v1928 = vadd.f32 %v1694, %v1893
      %v1929 = vadd.f32 %v1695, %v1896
      %v1930 = vadd.f32 %v1696, %v1898
      %v1931 = vadd.f32 %v1697, %v1901
      %v1932 = vadd.f32 %v1698, %v1903
      %v1933 = vadd.f32 %v1699, %v1906
      %v1934 = vadd.f32 %v1700, %v1908
      %v1935 = vadd.f32 %v1701, %v1911
      %v1936 = vadd.f32 %v1702, %v1913
      %v1937 = vadd.f32 %v1703, %v1916
      %v1938 = vadd.f32 %v1704, %v1918
      %v1939 = vadd.f32 %v1705, %v1921
      %v1940 = vadd.f32 %v1706, %v1923
      %s1941 = scalar_lea.vmem [#allocation2], 24
      %v1942 = vld [vmem:[%s1941] sm:$0xf]
      %v1943 = vld [vmem:[%s1941 + $0x4] sm:$0xf]
      %v1944 = vld [vmem:[%s1941 + $0xc] sm:$0xf]
      %v1945 = vld [vmem:[%s1941 + $0x10] sm:$0xf]
      %v1946 = vld [vmem:[%s1941 + $0x18] sm:$0xf]
      %v1947 = vld [vmem:[%s1941 + $0x1c] sm:$0xf]
      %v1948 = vld [vmem:[%s1941 + $0x24] sm:$0xf]
      %v1949 = vld [vmem:[%s1941 + $0x28] sm:$0xf]
      %v1950 = vld [vmem:[%s1941 + $0x30] sm:$0xf]
      %v1951 = vld [vmem:[%s1941 + $0x34] sm:$0xf]
      %v1952 = vld [vmem:[%s1941 + $0x3c] sm:$0xf]
      %v1953 = vld [vmem:[%s1941 + $0x40] sm:$0xf]
      %v1954 = vld [vmem:[%s1941 + $0x48] sm:$0xf]
      %v1955 = vld [vmem:[%s1941 + $0x4c] sm:$0xf]
      %v1956 = vld [vmem:[%s1941 + $0x54] sm:$0xf]
      %v1957 = vld [vmem:[%s1941 + $0x58] sm:$0xf]
      %s1958 = scalar_lea.vmem %s2, 192
      %v1959 = vld [vmem:[%s1958] sm:$0xf]
      %v1960 = vld [vmem:[%s1958 + $0x4] sm:$0xf]
      %v1961 = vld [vmem:[%s1958 + $0x8] sm:$0xf]
      %v1962 = vld [vmem:[%s1958 + $0xc] sm:$0xf]
      %v1963 = vld [vmem:[%s1958 + $0x10] sm:$0xf]
      %v1964 = vld [vmem:[%s1958 + $0x14] sm:$0xf]
      %v1965 = vld [vmem:[%s1958 + $0x18] sm:$0xf]
      %v1966 = vld [vmem:[%s1958 + $0x1c] sm:$0xf]
      %v1983 = vunpack.c.l.b16 %v1942
      %v1984 = vunpack.c.l.b16 %v1943
      %v1985 = vunpack.c.l.b16 %v1944
      %v1986 = vunpack.c.l.b16 %v1945
      %v1987 = vunpack.c.l.b16 %v1946
      %v1988 = vunpack.c.l.b16 %v1947
      %v1989 = vunpack.c.l.b16 %v1948
      %v1990 = vunpack.c.l.b16 %v1949
      %v1991 = vunpack.c.l.b16 %v1950
      %v1992 = vunpack.c.l.b16 %v1951
      %v1993 = vunpack.c.l.b16 %v1952
      %v1994 = vunpack.c.l.b16 %v1953
      %v1995 = vunpack.c.l.b16 %v1954
      %v1996 = vunpack.c.l.b16 %v1955
      %v1997 = vunpack.c.l.b16 %v1956
      %v1998 = vunpack.c.l.b16 %v1957
      %v1999 = vpack.c.b16 %v1984, %v1983
      %v2000 = vpack.c.b16 %v1986, %v1985
      %v2001 = vpack.c.b16 %v1988, %v1987
      %v2002 = vpack.c.b16 %v1990, %v1989
      %v2003 = vpack.c.b16 %v1992, %v1991
      %v2004 = vpack.c.b16 %v1994, %v1993
      %v2005 = vpack.c.b16 %v1996, %v1995
      %v2006 = vpack.c.b16 %v1998, %v1997
      %v2015 = vunpack.c.l.b16 %v1959
      %v2016 = vunpack.c.l.b16 %v1960
      %v2017 = vunpack.c.l.b16 %v1961
      %v2018 = vunpack.c.l.b16 %v1962
      %v2019 = vunpack.c.l.b16 %v1963
      %v2020 = vunpack.c.l.b16 %v1964
      %v2021 = vunpack.c.l.b16 %v1965
      %v2022 = vunpack.c.l.b16 %v1966
      %v2023 = vpack.c.b16 %v2016, %v2015
      %v2024 = vpack.c.b16 %v2018, %v2017
      %v2025 = vpack.c.b16 %v2020, %v2019
      %v2026 = vpack.c.b16 %v2022, %v2021
      %v2032 = vsel %vm726, %v1999, 0
      %v2035 = vsel %vm726, %v2000, 0
      %v2038 = vsel %vm726, %v2001, 0
      %v2041 = vsel %vm726, %v2002, 0
      %v2044 = vsel %vm726, %v2003, 0
      %v2047 = vsel %vm726, %v2004, 0
      %v2050 = vsel %vm726, %v2005, 0
      %v2053 = vsel %vm726, %v2006, 0
      %2055 = vmatpush.bf16.msra.mxu0 0
      %2056 = vmatpush.bf16.msra.mxu0 0
      %2057 = vmatpush.bf16.msra.mxu0 0
      %2058 = vmatpush.bf16.msra.mxu0 0
      %2059 = vmatpush.bf16.msra.mxu0 %v2026
      %2060 = vmatpush.bf16.msra.mxu0 %v2025
      %2061 = vmatpush.bf16.msra.mxu0 %v2024
      %2062 = vmatpush.bf16.msra.mxu0 %v2023
      %2063 = vmatmul.bf16.gmra.mxu0 %v2032
      %v2064 = vpop.f32.mrf.mxu0
      %v2065 = vadd.f32 0.0, %v2064
      %v2066 = vpop.f32.mrf.mxu0
      %v2067 = vadd.f32 0.0, %v2066
      %2068 = vmatmul.bf16.gmra.mxu0 %v2035
      %v2069 = vpop.f32.mrf.mxu0
      %v2070 = vadd.f32 0.0, %v2069
      %v2071 = vpop.f32.mrf.mxu0
      %v2072 = vadd.f32 0.0, %v2071
      %2073 = vmatmul.bf16.gmra.mxu0 %v2038
      %v2074 = vpop.f32.mrf.mxu0
      %v2075 = vadd.f32 0.0, %v2074
      %v2076 = vpop.f32.mrf.mxu0
      %v2077 = vadd.f32 0.0, %v2076
      %2078 = vmatmul.bf16.gmra.mxu0 %v2041
      %v2079 = vpop.f32.mrf.mxu0
      %v2080 = vadd.f32 0.0, %v2079
      %v2081 = vpop.f32.mrf.mxu0
      %v2082 = vadd.f32 0.0, %v2081
      %2083 = vmatmul.bf16.gmra.mxu0 %v2044
      %v2084 = vpop.f32.mrf.mxu0
      %v2085 = vadd.f32 0.0, %v2084
      %v2086 = vpop.f32.mrf.mxu0
      %v2087 = vadd.f32 0.0, %v2086
      %2088 = vmatmul.bf16.gmra.mxu0 %v2047
      %v2089 = vpop.f32.mrf.mxu0
      %v2090 = vadd.f32 0.0, %v2089
      %v2091 = vpop.f32.mrf.mxu0
      %v2092 = vadd.f32 0.0, %v2091
      %2093 = vmatmul.bf16.gmra.mxu0 %v2050
      %v2094 = vpop.f32.mrf.mxu0
      %v2095 = vadd.f32 0.0, %v2094
      %v2096 = vpop.f32.mrf.mxu0
      %v2097 = vadd.f32 0.0, %v2096
      %2098 = vmatmul.bf16.gmra.mxu0 %v2053
      %v2099 = vpop.f32.mrf.mxu0
      %v2100 = vadd.f32 0.0, %v2099
      %v2101 = vpop.f32.mrf.mxu0
      %v2102 = vadd.f32 0.0, %v2101
      %2103 = vdwg.mxu0
      %v2104 = vadd.f32 %v1925, %v2065
      %v2105 = vadd.f32 %v1926, %v2067
      %v2106 = vadd.f32 %v1927, %v2070
      %v2107 = vadd.f32 %v1928, %v2072
      %v2108 = vadd.f32 %v1929, %v2075
      %v2109 = vadd.f32 %v1930, %v2077
      %v2110 = vadd.f32 %v1931, %v2080
      %v2111 = vadd.f32 %v1932, %v2082
      %v2112 = vadd.f32 %v1933, %v2085
      %v2113 = vadd.f32 %v1934, %v2087
      %v2114 = vadd.f32 %v1935, %v2090
      %v2115 = vadd.f32 %v1936, %v2092
      %v2116 = vadd.f32 %v1937, %v2095
      %v2117 = vadd.f32 %v1938, %v2097
      %v2118 = vadd.f32 %v1939, %v2100
      %v2119 = vadd.f32 %v1940, %v2102
      %v2120 = vld [vmem:[%s1941] sm:$0xf]
      %v2121 = vld [vmem:[%s1941 + $0x4] sm:$0xf]
      %v2122 = vld [vmem:[%s1941 + $0x8] sm:$0x1]
      %v2123 = vld [vmem:[%s1941 + $0xc] sm:$0xf]
      %v2124 = vld [vmem:[%s1941 + $0x10] sm:$0xf]
      %v2125 = vld [vmem:[%s1941 + $0x14] sm:$0x1]
      %v2126 = vld [vmem:[%s1941 + $0x18] sm:$0xf]
      %v2127 = vld [vmem:[%s1941 + $0x1c] sm:$0xf]
      %v2128 = vld [vmem:[%s1941 + $0x20] sm:$0x1]
      %v2129 = vld [vmem:[%s1941 + $0x24] sm:$0xf]
      %v2130 = vld [vmem:[%s1941 + $0x28] sm:$0xf]
      %v2131 = vld [vmem:[%s1941 + $0x2c] sm:$0x1]
      %v2132 = vld [vmem:[%s1941 + $0x30] sm:$0xf]
      %v2133 = vld [vmem:[%s1941 + $0x34] sm:$0xf]
      %v2134 = vld [vmem:[%s1941 + $0x38] sm:$0x1]
      %v2135 = vld [vmem:[%s1941 + $0x3c] sm:$0xf]
      %v2136 = vld [vmem:[%s1941 + $0x40] sm:$0xf]
      %v2137 = vld [vmem:[%s1941 + $0x44] sm:$0x1]
      %v2138 = vld [vmem:[%s1941 + $0x48] sm:$0xf]
      %v2139 = vld [vmem:[%s1941 + $0x4c] sm:$0xf]
      %v2140 = vld [vmem:[%s1941 + $0x50] sm:$0x1]
      %v2141 = vld [vmem:[%s1941 + $0x54] sm:$0xf]
      %v2142 = vld [vmem:[%s1941 + $0x58] sm:$0xf]
      %v2143 = vld [vmem:[%s1941 + $0x5c] sm:$0x1]
      %v2145 = vshrl.u32 %v2120, 16
      %v2147 = vrot.slane %v2145, 4
      %v2148 = vshll.u32 %v2120, 16
      %v2150 = vrot.slane %v2148, 5
      %v2151 = vor.u32 %v2147, %v2150
      %v2152 = vrot.slane %v2151, 4
      %v2154 = vshll.u32 %v2121, 16
      %v2156 = vrot.slane %v2154, 5
      %v2157 = vsel %vm476, %v2152, %v2156
      %v2158 = vshrl.u32 %v2121, 16
      %v2160 = vrot.slane %v2158, 4
      %v2161 = vor.u32 %v2160, %v2156
      %v2162 = vrot.slane %v2161, 4
      %v2164 = vshll.u32 %v2122, 16
      %v2166 = vrot.slane %v2164, 5
      %v2167 = vsel %vm476, %v2162, %v2166
      %v2169 = vshrl.u32 %v2123, 16
      %v2171 = vrot.slane %v2169, 4
      %v2172 = vshll.u32 %v2123, 16
      %v2174 = vrot.slane %v2172, 5
      %v2175 = vor.u32 %v2171, %v2174
      %v2176 = vrot.slane %v2175, 4
      %v2178 = vshll.u32 %v2124, 16
      %v2180 = vrot.slane %v2178, 5
      %v2181 = vsel %vm476, %v2176, %v2180
      %v2182 = vshrl.u32 %v2124, 16
      %v2184 = vrot.slane %v2182, 4
      %v2185 = vor.u32 %v2184, %v2180
      %v2186 = vrot.slane %v2185, 4
      %v2188 = vshll.u32 %v2125, 16
      %v2190 = vrot.slane %v2188, 5
      %v2191 = vsel %vm476, %v2186, %v2190
      %v2193 = vshrl.u32 %v2126, 16
      %v2195 = vrot.slane %v2193, 4
      %v2196 = vshll.u32 %v2126, 16
      %v2198 = vrot.slane %v2196, 5
      %v2199 = vor.u32 %v2195, %v2198
      %v2200 = vrot.slane %v2199, 4
      %v2202 = vshll.u32 %v2127, 16
      %v2204 = vrot.slane %v2202, 5
      %v2205 = vsel %vm476, %v2200, %v2204
      %v2206 = vshrl.u32 %v2127, 16
      %v2208 = vrot.slane %v2206, 4
      %v2209 = vor.u32 %v2208, %v2204
      %v2210 = vrot.slane %v2209, 4
      %v2212 = vshll.u32 %v2128, 16
      %v2214 = vrot.slane %v2212, 5
      %v2215 = vsel %vm476, %v2210, %v2214
      %v2217 = vshrl.u32 %v2129, 16
      %v2219 = vrot.slane %v2217, 4
      %v2220 = vshll.u32 %v2129, 16
      %v2222 = vrot.slane %v2220, 5
      %v2223 = vor.u32 %v2219, %v2222
      %v2224 = vrot.slane %v2223, 4
      %v2226 = vshll.u32 %v2130, 16
      %v2228 = vrot.slane %v2226, 5
      %v2229 = vsel %vm476, %v2224, %v2228
      %v2230 = vshrl.u32 %v2130, 16
      %v2232 = vrot.slane %v2230, 4
      %v2233 = vor.u32 %v2232, %v2228
      %v2234 = vrot.slane %v2233, 4
      %v2236 = vshll.u32 %v2131, 16
      %v2238 = vrot.slane %v2236, 5
      %v2239 = vsel %vm476, %v2234, %v2238
      %v2241 = vshrl.u32 %v2132, 16
      %v2243 = vrot.slane %v2241, 4
      %v2244 = vshll.u32 %v2132, 16
      %v2246 = vrot.slane %v2244, 5
      %v2247 = vor.u32 %v2243, %v2246
      %v2248 = vrot.slane %v2247, 4
      %v2250 = vshll.u32 %v2133, 16
      %v2252 = vrot.slane %v2250, 5
      %v2253 = vsel %vm476, %v2248, %v2252
      %v2254 = vshrl.u32 %v2133, 16
      %v2256 = vrot.slane %v2254, 4
      %v2257 = vor.u32 %v2256, %v2252
      %v2258 = vrot.slane %v2257, 4
      %v2260 = vshll.u32 %v2134, 16
      %v2262 = vrot.slane %v2260, 5
      %v2263 = vsel %vm476, %v2258, %v2262
      %v2265 = vshrl.u32 %v2135, 16
      %v2267 = vrot.slane %v2265, 4
      %v2268 = vshll.u32 %v2135, 16
      %v2270 = vrot.slane %v2268, 5
      %v2271 = vor.u32 %v2267, %v2270
      %v2272 = vrot.slane %v2271, 4
      %v2274 = vshll.u32 %v2136, 16
      %v2276 = vrot.slane %v2274, 5
      %v2277 = vsel %vm476, %v2272, %v2276
      %v2278 = vshrl.u32 %v2136, 16
      %v2280 = vrot.slane %v2278, 4
      %v2281 = vor.u32 %v2280, %v2276
      %v2282 = vrot.slane %v2281, 4
      %v2284 = vshll.u32 %v2137, 16
      %v2286 = vrot.slane %v2284, 5
      %v2287 = vsel %vm476, %v2282, %v2286
      %v2289 = vshrl.u32 %v2138, 16
      %v2291 = vrot.slane %v2289, 4
      %v2292 = vshll.u32 %v2138, 16
      %v2294 = vrot.slane %v2292, 5
      %v2295 = vor.u32 %v2291, %v2294
      %v2296 = vrot.slane %v2295, 4
      %v2298 = vshll.u32 %v2139, 16
      %v2300 = vrot.slane %v2298, 5
      %v2301 = vsel %vm476, %v2296, %v2300
      %v2302 = vshrl.u32 %v2139, 16
      %v2304 = vrot.slane %v2302, 4
      %v2305 = vor.u32 %v2304, %v2300
      %v2306 = vrot.slane %v2305, 4
      %v2308 = vshll.u32 %v2140, 16
      %v2310 = vrot.slane %v2308, 5
      %v2311 = vsel %vm476, %v2306, %v2310
      %v2313 = vshrl.u32 %v2141, 16
      %v2315 = vrot.slane %v2313, 4
      %v2316 = vshll.u32 %v2141, 16
      %v2318 = vrot.slane %v2316, 5
      %v2319 = vor.u32 %v2315, %v2318
      %v2320 = vrot.slane %v2319, 4
      %v2322 = vshll.u32 %v2142, 16
      %v2324 = vrot.slane %v2322, 5
      %v2325 = vsel %vm476, %v2320, %v2324
      %v2326 = vshrl.u32 %v2142, 16
      %v2328 = vrot.slane %v2326, 4
      %v2329 = vor.u32 %v2328, %v2324
      %v2330 = vrot.slane %v2329, 4
      %v2332 = vshll.u32 %v2143, 16
      %v2334 = vrot.slane %v2332, 5
      %v2335 = vsel %vm476, %v2330, %v2334
      %s2336 = scalar_lea.vmem %s2, 224
      %v2337 = vld [vmem:[%s2336] sm:$0xf]
      %v2338 = vld [vmem:[%s2336 + $0x4] sm:$0xf]
      %v2339 = vld [vmem:[%s2336 + $0x8] sm:$0xf]
      %v2340 = vld [vmem:[%s2336 + $0xc] sm:$0xf]
      %v2341 = vld [vmem:[%s2336 + $0x10] sm:$0xf]
      %v2342 = vld [vmem:[%s2336 + $0x14] sm:$0xf]
      %v2343 = vld [vmem:[%s2336 + $0x18] sm:$0xf]
      %v2344 = vld [vmem:[%s2336 + $0x1c] sm:$0xf]
      %v2345 = vunpack.c.l.b16 %v2157
      %v2346 = vunpack.c.l.b16 %v2167
      %v2347 = vunpack.c.l.b16 %v2181
      %v2348 = vunpack.c.l.b16 %v2191
      %v2349 = vunpack.c.l.b16 %v2205
      %v2350 = vunpack.c.l.b16 %v2215
      %v2351 = vunpack.c.l.b16 %v2229
      %v2352 = vunpack.c.l.b16 %v2239
      %v2353 = vunpack.c.l.b16 %v2253
      %v2354 = vunpack.c.l.b16 %v2263
      %v2355 = vunpack.c.l.b16 %v2277
      %v2356 = vunpack.c.l.b16 %v2287
      %v2357 = vunpack.c.l.b16 %v2301
      %v2358 = vunpack.c.l.b16 %v2311
      %v2359 = vunpack.c.l.b16 %v2325
      %v2360 = vunpack.c.l.b16 %v2335
      %v2361 = vpack.c.b16 %v2346, %v2345
      %v2362 = vpack.c.b16 %v2348, %v2347
      %v2363 = vpack.c.b16 %v2350, %v2349
      %v2364 = vpack.c.b16 %v2352, %v2351
      %v2365 = vpack.c.b16 %v2354, %v2353
      %v2366 = vpack.c.b16 %v2356, %v2355
      %v2367 = vpack.c.b16 %v2358, %v2357
      %v2368 = vpack.c.b16 %v2360, %v2359
      %v2377 = vunpack.c.l.b16 %v2337
      %v2378 = vunpack.c.l.b16 %v2338
      %v2379 = vunpack.c.l.b16 %v2339
      %v2380 = vunpack.c.l.b16 %v2340
      %v2381 = vunpack.c.l.b16 %v2341
      %v2382 = vunpack.c.l.b16 %v2342
      %v2383 = vunpack.c.l.b16 %v2343
      %v2384 = vunpack.c.l.b16 %v2344
      %v2385 = vpack.c.b16 %v2378, %v2377
      %v2386 = vpack.c.b16 %v2380, %v2379
      %v2387 = vpack.c.b16 %v2382, %v2381
      %v2388 = vpack.c.b16 %v2384, %v2383
      %v2394 = vsel %vm726, %v2361, 0
      %v2397 = vsel %vm726, %v2362, 0
      %v2400 = vsel %vm726, %v2363, 0
      %v2403 = vsel %vm726, %v2364, 0
      %v2406 = vsel %vm726, %v2365, 0
      %v2409 = vsel %vm726, %v2366, 0
      %v2412 = vsel %vm726, %v2367, 0
      %v2415 = vsel %vm726, %v2368, 0
      %2417 = vmatpush.bf16.msra.mxu0 0
      %2418 = vmatpush.bf16.msra.mxu0 0
      %2419 = vmatpush.bf16.msra.mxu0 0
      %2420 = vmatpush.bf16.msra.mxu0 0
      %2421 = vmatpush.bf16.msra.mxu0 %v2388
      %2422 = vmatpush.bf16.msra.mxu0 %v2387
      %2423 = vmatpush.bf16.msra.mxu0 %v2386
      %2424 = vmatpush.bf16.msra.mxu0 %v2385
      %2425 = vmatmul.bf16.gmra.mxu0 %v2394
      %v2426 = vpop.f32.mrf.mxu0
      %v2427 = vadd.f32 0.0, %v2426
      %v2428 = vpop.f32.mrf.mxu0
      %v2429 = vadd.f32 0.0, %v2428
      %2430 = vmatmul.bf16.gmra.mxu0 %v2397
      %v2431 = vpop.f32.mrf.mxu0
      %v2432 = vadd.f32 0.0, %v2431
      %v2433 = vpop.f32.mrf.mxu0
      %v2434 = vadd.f32 0.0, %v2433
      %2435 = vmatmul.bf16.gmra.mxu0 %v2400
      %v2436 = vpop.f32.mrf.mxu0
      %v2437 = vadd.f32 0.0, %v2436
      %v2438 = vpop.f32.mrf.mxu0
      %v2439 = vadd.f32 0.0, %v2438
      %2440 = vmatmul.bf16.gmra.mxu0 %v2403
      %v2441 = vpop.f32.mrf.mxu0
      %v2442 = vadd.f32 0.0, %v2441
      %v2443 = vpop.f32.mrf.mxu0
      %v2444 = vadd.f32 0.0, %v2443
      %2445 = vmatmul.bf16.gmra.mxu0 %v2406
      %v2446 = vpop.f32.mrf.mxu0
      %v2447 = vadd.f32 0.0, %v2446
      %v2448 = vpop.f32.mrf.mxu0
      %v2449 = vadd.f32 0.0, %v2448
      %2450 = vmatmul.bf16.gmra.mxu0 %v2409
      %v2451 = vpop.f32.mrf.mxu0
      %v2452 = vadd.f32 0.0, %v2451
      %v2453 = vpop.f32.mrf.mxu0
      %v2454 = vadd.f32 0.0, %v2453
      %2455 = vmatmul.bf16.gmra.mxu0 %v2412
      %v2456 = vpop.f32.mrf.mxu0
      %v2457 = vadd.f32 0.0, %v2456
      %v2458 = vpop.f32.mrf.mxu0
      %v2459 = vadd.f32 0.0, %v2458
      %2460 = vmatmul.bf16.gmra.mxu0 %v2415
      %v2461 = vpop.f32.mrf.mxu0
      %v2462 = vadd.f32 0.0, %v2461
      %v2463 = vpop.f32.mrf.mxu0
      %v2464 = vadd.f32 0.0, %v2463
      %2465 = vdwg.mxu0
      %v2466 = vadd.f32 %v2104, %v2427
      %v2467 = vadd.f32 %v2105, %v2429
      %v2468 = vadd.f32 %v2106, %v2432
      %v2469 = vadd.f32 %v2107, %v2434
      %v2470 = vadd.f32 %v2108, %v2437
      %v2471 = vadd.f32 %v2109, %v2439
      %v2472 = vadd.f32 %v2110, %v2442
      %v2473 = vadd.f32 %v2111, %v2444
      %v2474 = vadd.f32 %v2112, %v2447
      %v2475 = vadd.f32 %v2113, %v2449
      %v2476 = vadd.f32 %v2114, %v2452
      %v2477 = vadd.f32 %v2115, %v2454
      %v2478 = vadd.f32 %v2116, %v2457
      %v2479 = vadd.f32 %v2117, %v2459
      %v2480 = vadd.f32 %v2118, %v2462
      %v2481 = vadd.f32 %v2119, %v2464
      %v2482 = vld [vmem:[%s1941] sm:$0xe]
      %v2483 = vld [vmem:[%s1941 + $0xc] sm:$0xe]
      %v2484 = vld [vmem:[%s1941 + $0x18] sm:$0xe]
      %v2485 = vld [vmem:[%s1941 + $0x24] sm:$0xe]
      %v2486 = vld [vmem:[%s1941 + $0x30] sm:$0xe]
      %v2487 = vld [vmem:[%s1941 + $0x3c] sm:$0xe]
      %v2488 = vld [vmem:[%s1941 + $0x48] sm:$0xe]
      %v2489 = vld [vmem:[%s1941 + $0x54] sm:$0xe]
      %v2514 = vrot.slane %v2482, 5
      %v2515 = vrot.slane %v2514, 4
      %v2516 = vrot.slane %v2121, 5
      %v2517 = vsel %vm963, %v2515, %v2516
      %v2518 = vrot.slane %v2516, 4
      %v2519 = vrot.slane %v2122, 5
      %v2520 = vsel %vm963, %v2518, %v2519
      %v2521 = vrot.slane %v2483, 5
      %v2522 = vrot.slane %v2521, 4
      %v2523 = vrot.slane %v2124, 5
      %v2524 = vsel %vm963, %v2522, %v2523
      %v2525 = vrot.slane %v2523, 4
      %v2526 = vrot.slane %v2125, 5
      %v2527 = vsel %vm963, %v2525, %v2526
      %v2528 = vrot.slane %v2484, 5
      %v2529 = vrot.slane %v2528, 4
      %v2530 = vrot.slane %v2127, 5
      %v2531 = vsel %vm963, %v2529, %v2530
      %v2532 = vrot.slane %v2530, 4
      %v2533 = vrot.slane %v2128, 5
      %v2534 = vsel %vm963, %v2532, %v2533
      %v2535 = vrot.slane %v2485, 5
      %v2536 = vrot.slane %v2535, 4
      %v2537 = vrot.slane %v2130, 5
      %v2538 = vsel %vm963, %v2536, %v2537
      %v2539 = vrot.slane %v2537, 4
      %v2540 = vrot.slane %v2131, 5
      %v2541 = vsel %vm963, %v2539, %v2540
      %v2542 = vrot.slane %v2486, 5
      %v2543 = vrot.slane %v2542, 4
      %v2544 = vrot.slane %v2133, 5
      %v2545 = vsel %vm963, %v2543, %v2544
      %v2546 = vrot.slane %v2544, 4
      %v2547 = vrot.slane %v2134, 5
      %v2548 = vsel %vm963, %v2546, %v2547
      %v2549 = vrot.slane %v2487, 5
      %v2550 = vrot.slane %v2549, 4
      %v2551 = vrot.slane %v2136, 5
      %v2552 = vsel %vm963, %v2550, %v2551
      %v2553 = vrot.slane %v2551, 4
      %v2554 = vrot.slane %v2137, 5
      %v2555 = vsel %vm963, %v2553, %v2554
      %v2556 = vrot.slane %v2488, 5
      %v2557 = vrot.slane %v2556, 4
      %v2558 = vrot.slane %v2139, 5
      %v2559 = vsel %vm963, %v2557, %v2558
      %v2560 = vrot.slane %v2558, 4
      %v2561 = vrot.slane %v2140, 5
      %v2562 = vsel %vm963, %v2560, %v2561
      %v2563 = vrot.slane %v2489, 5
      %v2564 = vrot.slane %v2563, 4
      %v2565 = vrot.slane %v2142, 5
      %v2566 = vsel %vm963, %v2564, %v2565
      %v2567 = vrot.slane %v2565, 4
      %v2568 = vrot.slane %v2143, 5
      %v2569 = vsel %vm963, %v2567, %v2568
      %s2570 = scalar_lea.vmem %s2, 256
      %v2571 = vld [vmem:[%s2570] sm:$0xf]
      %v2572 = vld [vmem:[%s2570 + $0x4] sm:$0xf]
      %v2573 = vld [vmem:[%s2570 + $0x8] sm:$0xf]
      %v2574 = vld [vmem:[%s2570 + $0xc] sm:$0xf]
      %v2575 = vld [vmem:[%s2570 + $0x10] sm:$0xf]
      %v2576 = vld [vmem:[%s2570 + $0x14] sm:$0xf]
      %v2577 = vld [vmem:[%s2570 + $0x18] sm:$0xf]
      %v2578 = vld [vmem:[%s2570 + $0x1c] sm:$0xf]
      %v2579 = vunpack.c.l.b16 %v2517
      %v2580 = vunpack.c.l.b16 %v2520
      %v2581 = vunpack.c.l.b16 %v2524
      %v2582 = vunpack.c.l.b16 %v2527
      %v2583 = vunpack.c.l.b16 %v2531
      %v2584 = vunpack.c.l.b16 %v2534
      %v2585 = vunpack.c.l.b16 %v2538
      %v2586 = vunpack.c.l.b16 %v2541
      %v2587 = vunpack.c.l.b16 %v2545
      %v2588 = vunpack.c.l.b16 %v2548
      %v2589 = vunpack.c.l.b16 %v2552
      %v2590 = vunpack.c.l.b16 %v2555
      %v2591 = vunpack.c.l.b16 %v2559
      %v2592 = vunpack.c.l.b16 %v2562
      %v2593 = vunpack.c.l.b16 %v2566
      %v2594 = vunpack.c.l.b16 %v2569
      %v2595 = vpack.c.b16 %v2580, %v2579
      %v2596 = vpack.c.b16 %v2582, %v2581
      %v2597 = vpack.c.b16 %v2584, %v2583
      %v2598 = vpack.c.b16 %v2586, %v2585
      %v2599 = vpack.c.b16 %v2588, %v2587
      %v2600 = vpack.c.b16 %v2590, %v2589
      %v2601 = vpack.c.b16 %v2592, %v2591
      %v2602 = vpack.c.b16 %v2594, %v2593
      %v2611 = vunpack.c.l.b16 %v2571
      %v2612 = vunpack.c.l.b16 %v2572
      %v2613 = vunpack.c.l.b16 %v2573
      %v2614 = vunpack.c.l.b16 %v2574
      %v2615 = vunpack.c.l.b16 %v2575
      %v2616 = vunpack.c.l.b16 %v2576
      %v2617 = vunpack.c.l.b16 %v2577
      %v2618 = vunpack.c.l.b16 %v2578
      %v2619 = vpack.c.b16 %v2612, %v2611
      %v2620 = vpack.c.b16 %v2614, %v2613
      %v2621 = vpack.c.b16 %v2616, %v2615
      %v2622 = vpack.c.b16 %v2618, %v2617
      %v2628 = vsel %vm726, %v2595, 0
      %v2631 = vsel %vm726, %v2596, 0
      %v2634 = vsel %vm726, %v2597, 0
      %v2637 = vsel %vm726, %v2598, 0
      %v2640 = vsel %vm726, %v2599, 0
      %v2643 = vsel %vm726, %v2600, 0
      %v2646 = vsel %vm726, %v2601, 0
      %v2649 = vsel %vm726, %v2602, 0
      %2651 = vmatpush.bf16.msra.mxu0 0
      %2652 = vmatpush.bf16.msra.mxu0 0
      %2653 = vmatpush.bf16.msra.mxu0 0
      %2654 = vmatpush.bf16.msra.mxu0 0
      %2655 = vmatpush.bf16.msra.mxu0 %v2622
      %2656 = vmatpush.bf16.msra.mxu0 %v2621
      %2657 = vmatpush.bf16.msra.mxu0 %v2620
      %2658 = vmatpush.bf16.msra.mxu0 %v2619
      %2659 = vmatmul.bf16.gmra.mxu0 %v2628
      %v2660 = vpop.f32.mrf.mxu0
      %v2661 = vadd.f32 0.0, %v2660
      %v2662 = vpop.f32.mrf.mxu0
      %v2663 = vadd.f32 0.0, %v2662
      %2664 = vmatmul.bf16.gmra.mxu0 %v2631
      %v2665 = vpop.f32.mrf.mxu0
      %v2666 = vadd.f32 0.0, %v2665
      %v2667 = vpop.f32.mrf.mxu0
      %v2668 = vadd.f32 0.0, %v2667
      %2669 = vmatmul.bf16.gmra.mxu0 %v2634
      %v2670 = vpop.f32.mrf.mxu0
      %v2671 = vadd.f32 0.0, %v2670
      %v2672 = vpop.f32.mrf.mxu0
      %v2673 = vadd.f32 0.0, %v2672
      %2674 = vmatmul.bf16.gmra.mxu0 %v2637
      %v2675 = vpop.f32.mrf.mxu0
      %v2676 = vadd.f32 0.0, %v2675
      %v2677 = vpop.f32.mrf.mxu0
      %v2678 = vadd.f32 0.0, %v2677
      %2679 = vmatmul.bf16.gmra.mxu0 %v2640
      %v2680 = vpop.f32.mrf.mxu0
      %v2681 = vadd.f32 0.0, %v2680
      %v2682 = vpop.f32.mrf.mxu0
      %v2683 = vadd.f32 0.0, %v2682
      %2684 = vmatmul.bf16.gmra.mxu0 %v2643
      %v2685 = vpop.f32.mrf.mxu0
      %v2686 = vadd.f32 0.0, %v2685
      %v2687 = vpop.f32.mrf.mxu0
      %v2688 = vadd.f32 0.0, %v2687
      %2689 = vmatmul.bf16.gmra.mxu0 %v2646
      %v2690 = vpop.f32.mrf.mxu0
      %v2691 = vadd.f32 0.0, %v2690
      %v2692 = vpop.f32.mrf.mxu0
      %v2693 = vadd.f32 0.0, %v2692
      %2694 = vmatmul.bf16.gmra.mxu0 %v2649
      %v2695 = vpop.f32.mrf.mxu0
      %v2696 = vadd.f32 0.0, %v2695
      %v2697 = vpop.f32.mrf.mxu0
      %v2698 = vadd.f32 0.0, %v2697
      %2699 = vdwg.mxu0
      %v2700 = vadd.f32 %v2466, %v2661
      %v2701 = vadd.f32 %v2467, %v2663
      %v2702 = vadd.f32 %v2468, %v2666
      %v2703 = vadd.f32 %v2469, %v2668
      %v2704 = vadd.f32 %v2470, %v2671
      %v2705 = vadd.f32 %v2471, %v2673
      %v2706 = vadd.f32 %v2472, %v2676
      %v2707 = vadd.f32 %v2473, %v2678
      %v2708 = vadd.f32 %v2474, %v2681
      %v2709 = vadd.f32 %v2475, %v2683
      %v2710 = vadd.f32 %v2476, %v2686
      %v2711 = vadd.f32 %v2477, %v2688
      %v2712 = vadd.f32 %v2478, %v2691
      %v2713 = vadd.f32 %v2479, %v2693
      %v2714 = vadd.f32 %v2480, %v2696
      %v2715 = vadd.f32 %v2481, %v2698
      %v2716 = vpack.c.bf16 %v2700, %v2700
      %v2717 = vpack.c.bf16 %v2701, %v2701
      %v2718 = vpack.c.bf16 %v2702, %v2702
      %v2719 = vpack.c.bf16 %v2703, %v2703
      %v2720 = vpack.c.bf16 %v2704, %v2704
      %v2721 = vpack.c.bf16 %v2705, %v2705
      %v2722 = vpack.c.bf16 %v2706, %v2706
      %v2723 = vpack.c.bf16 %v2707, %v2707
      %v2724 = vpack.c.bf16 %v2708, %v2708
      %v2725 = vpack.c.bf16 %v2709, %v2709
      %v2726 = vpack.c.bf16 %v2710, %v2710
      %v2727 = vpack.c.bf16 %v2711, %v2711
      %v2728 = vpack.c.bf16 %v2712, %v2712
      %v2729 = vpack.c.bf16 %v2713, %v2713
      %v2730 = vpack.c.bf16 %v2714, %v2714
      %v2731 = vpack.c.bf16 %v2715, %v2715
      %2732 = vst [vmem:[%s364] sm:$0xf] %v2716
      %2733 = vst [vmem:[%s364 + $0x4] sm:$0xf] %v2717
      %2734 = vst [vmem:[%s364 + $0x8] sm:$0xf] %v2718
      %2735 = vst [vmem:[%s364 + $0xc] sm:$0xf] %v2719
      %2736 = vst [vmem:[%s364 + $0x10] sm:$0xf] %v2720
      %2737 = vst [vmem:[%s364 + $0x14] sm:$0xf] %v2721
      %2738 = vst [vmem:[%s364 + $0x18] sm:$0xf] %v2722
      %2739 = vst [vmem:[%s364 + $0x1c] sm:$0xf] %v2723
      %2740 = vst [vmem:[%s364 + $0x20] sm:$0xf] %v2724
      %2741 = vst [vmem:[%s364 + $0x24] sm:$0xf] %v2725
      %2742 = vst [vmem:[%s364 + $0x28] sm:$0xf] %v2726
      %2743 = vst [vmem:[%s364 + $0x2c] sm:$0xf] %v2727
      %2744 = vst [vmem:[%s364 + $0x30] sm:$0xf] %v2728
      %2745 = vst [vmem:[%s364 + $0x34] sm:$0xf] %v2729
      %2746 = vst [vmem:[%s364 + $0x38] sm:$0xf] %v2730
      %2747 = vst [vmem:[%s364 + $0x3c] sm:$0xf] %v2731
      %v2748 = vadd.f32 %v2700, %v2701
      %v2749 = vadd.f32 %v2748, %v2702
      %v2750 = vadd.f32 %v2749, %v2703
      %v2751 = vadd.f32 %v2750, %v2704
      %v2752 = vadd.f32 %v2751, %v2705
      %v2753 = vadd.f32 %v2752, %v2706
      %v2754 = vadd.f32 %v2753, %v2707
      %v2755 = vadd.f32 %v2754, %v2708
      %v2756 = vadd.f32 %v2755, %v2709
      %v2757 = vadd.f32 %v2756, %v2710
      %v2758 = vadd.f32 %v2757, %v2711
      %v2759 = vadd.f32 %v2758, %v2712
      %v2760 = vadd.f32 %v2759, %v2713
      %v2761 = vadd.f32 %v2760, %v2714
      %v2762 = vadd.f32 %v2761, %v2715
      %v2763 = vrot.slane %v2762, 4
      %v2764 = vadd.f32 %v2762, %v2763
      %v2765 = vrot.slane %v2764, 2
      %v2766 = vadd.f32 %v2764, %v2765
      %v2767 = vrot.slane %v2766, 1
      %v2768 = vadd.f32 %v2766, %v2767
      %2769 = vst [vmem:[%s371] sm:$0x1] %v2768
      %v2770 = vmul.f32 %v2700, %v2700
      %v2771 = vmul.f32 %v2701, %v2701
      %v2772 = vmul.f32 %v2702, %v2702
      %v2773 = vmul.f32 %v2703, %v2703
      %v2774 = vmul.f32 %v2704, %v2704
      %v2775 = vmul.f32 %v2705, %v2705
      %v2776 = vmul.f32 %v2706, %v2706
      %v2777 = vmul.f32 %v2707, %v2707
      %v2778 = vmul.f32 %v2708, %v2708
      %v2779 = vmul.f32 %v2709, %v2709
      %v2780 = vmul.f32 %v2710, %v2710
      %v2781 = vmul.f32 %v2711, %v2711
      %v2782 = vmul.f32 %v2712, %v2712
      %v2783 = vmul.f32 %v2713, %v2713
      %v2784 = vmul.f32 %v2714, %v2714
      %v2785 = vmul.f32 %v2715, %v2715
      %v2786 = vadd.f32 %v2770, %v2771
      %v2787 = vadd.f32 %v2786, %v2772
      %v2788 = vadd.f32 %v2787, %v2773
      %v2789 = vadd.f32 %v2788, %v2774
      %v2790 = vadd.f32 %v2789, %v2775
      %v2791 = vadd.f32 %v2790, %v2776
      %v2792 = vadd.f32 %v2791, %v2777
      %v2793 = vadd.f32 %v2792, %v2778
      %v2794 = vadd.f32 %v2793, %v2779
      %v2795 = vadd.f32 %v2794, %v2780
      %v2796 = vadd.f32 %v2795, %v2781
      %v2797 = vadd.f32 %v2796, %v2782
      %v2798 = vadd.f32 %v2797, %v2783
      %v2799 = vadd.f32 %v2798, %v2784
      %v2800 = vadd.f32 %v2799, %v2785
      %v2801 = vrot.slane %v2800, 4
      %v2802 = vadd.f32 %v2800, %v2801
      %v2803 = vrot.slane %v2802, 2
      %v2804 = vadd.f32 %v2802, %v2803
      %v2805 = vrot.slane %v2804, 1
      %v2806 = vadd.f32 %v2804, %v2805
      %2807 = vst [vmem:[%s377] sm:$0x1] %v2806
      %s2808 = smul.u32 16, %s22
      %p2809 = scmp.lt.s32.totalorder %s21, 1
      %s2810 = scalar_select %p2809, %s21, 1
      %p2811 = scmp.lt.s32.totalorder %s2808, 15
      %s2812 = scalar_select %p2811, %s2808, 15
      %s2813 = smul.addr %s2810, 16
      %s2814 = sadd.s32 %s2812, %s2813
      %s2815 = smul.addr %s2814, 4
      %s2816 = scalar_lea.vmem %s3, %s2815
      %p2817 = scmp.lt.s32.totalorder %s21, 1
      %s2818 = scalar_select %p2817, %s21, 1
      %p2819 = scmp.lt.s32.totalorder %s22, 0
      %s2820 = scalar_select %p2819, %s22, 0
      %s2821 = sadd.s32 %s2820, %s2818
      %s2822 = scalar_lea.vmem %s4, %s2821
      %p2823 = scmp.lt.s32.totalorder %s21, 1
      %s2824 = scalar_select %p2823, %s21, 1
      %p2825 = scmp.lt.s32.totalorder %s22, 0
      %s2826 = scalar_select %p2825, %s22, 0
      %s2827 = sadd.s32 %s2826, %s2824
      %s2828 = scalar_lea.vmem %s5, %s2827
      // Predicated region
      $region33: #{conv_bn_relu_3d.2} parent=31 // pred_check
        %p2829 = pneg %p130
      $region34: #{conv_bn_relu_3d.2} parent=31 // pred_check_branch
        %2831 = sbr.rel (%p2829) target = $region36
      $region35: #{conv_bn_relu_3d.2} parent=31 // pred_region
        %s2832 = smul.u32 16, %s22
      $region36: #{conv_bn_relu_3d.2} parent=31 // pred_fallthru
        _
      // Predicated region
      $region37: #{conv_bn_relu_3d.2} parent=31 // pred_check
        %p2833 = pneg %p158
      $region38: #{conv_bn_relu_3d.2} parent=31 // pred_check_branch
        %2835 = sbr.rel (%p2833) target = $region40
      $region39: #{conv_bn_relu_3d.2} parent=31 // pred_region
        _
      $region40: #{conv_bn_relu_3d.2} parent=31 // pred_fallthru
        _
      // Predicated region
      $region41: #{conv_bn_relu_3d.2} parent=31 // pred_check
        %p2836 = pneg %p186
      $region42: #{conv_bn_relu_3d.2} parent=31 // pred_check_branch
        %2838 = sbr.rel (%p2836) target = $region44
      $region43: #{conv_bn_relu_3d.2} parent=31 // pred_region
        _
      $region44: #{conv_bn_relu_3d.2} parent=31 // pred_fallthru
        _
    $region32: #{conv_bn_relu_3d.2} parent=5 // pred_fallthru
      _
    %p2839 = scmp.le.s32.totalorder 2, %s12
    // Predicated region
    $region45: #{conv_bn_relu_3d.2} parent=5 // pred_check
      %p2840 = pneg %p2839
    $region46: #{conv_bn_relu_3d.2} parent=5 // pred_check_branch
      %2842 = sbr.rel (%p2840) target = $region48
    $region47: #{conv_bn_relu_3d.2} parent=5 // pred_region
      %s2843 = ssub.s32 %s12, 2
      // Predicated region
      $region49: #{conv_bn_relu_3d.2} parent=47 // pred_check
        %p2844 = pneg %p136
      $region50: #{conv_bn_relu_3d.2} parent=47 // pred_check_branch
        %2846 = sbr.rel (%p2844) target = $region52
      $region51: #{conv_bn_relu_3d.2} parent=47 // pred_region
        %s2847 = smul.u32 16, %s24
        %p2848 = scmp.lt.s32.totalorder %s23, 1
        %s2849 = scalar_select %p2848, %s23, 1
        %p2850 = scmp.lt.s32.totalorder %s2847, 15
        %s2851 = scalar_select %p2850, %s2847, 15
        %s2852 = smul.addr %s2849, 16
        %s2853 = sadd.s32 %s2851, %s2852
        %s2854 = smul.addr %s2853, 4
        %s2855 = scalar_lea.vmem %s3, %s2854
      $region52: #{conv_bn_relu_3d.2} parent=47 // pred_fallthru
        _
      // Predicated region
      $region53: #{conv_bn_relu_3d.2} parent=47 // pred_check
        %p2856 = pneg %p164
      $region54: #{conv_bn_relu_3d.2} parent=47 // pred_check_branch
        %2858 = sbr.rel (%p2856) target = $region56
      $region55: #{conv_bn_relu_3d.2} parent=47 // pred_region
        %p2859 = scmp.lt.s32.totalorder %s23, 1
        %s2860 = scalar_select %p2859, %s23, 1
        %p2861 = scmp.lt.s32.totalorder %s24, 0
        %s2862 = scalar_select %p2861, %s24, 0
        %s2863 = sadd.s32 %s2862, %s2860
        %s2864 = scalar_lea.vmem %s4, %s2863
      $region56: #{conv_bn_relu_3d.2} parent=47 // pred_fallthru
        _
      // Predicated region
      $region57: #{conv_bn_relu_3d.2} parent=47 // pred_check
        %p2865 = pneg %p192
      $region58: #{conv_bn_relu_3d.2} parent=47 // pred_check_branch
        %2867 = sbr.rel (%p2865) target = $region60
      $region59: #{conv_bn_relu_3d.2} parent=47 // pred_region
        %p2868 = scmp.lt.s32.totalorder %s23, 1
        %s2869 = scalar_select %p2868, %s23, 1
        %p2870 = scmp.lt.s32.totalorder %s24, 0
        %s2871 = scalar_select %p2870, %s24, 0
        %s2872 = sadd.s32 %s2871, %s2869
        %s2873 = scalar_lea.vmem %s5, %s2872
      $region60: #{conv_bn_relu_3d.2} parent=47 // pred_fallthru
        _
    $region48: #{conv_bn_relu_3d.2} parent=5 // pred_fallthru
      _
  $region6: #{conv_bn_relu_3d.2} parent=0 // loop_footer
    %s16 = sadd.s32 1, %s12
  $region7: #{conv_bn_relu_3d.2} parent=0 // loop_footer_branch
    %11 = sbr.rel target = $region3
  $region8: #{conv_bn_relu_3d.2} parent=0 // loop_exit
    _

</llo_original>
